<compile_context>
chip_gen: v7x
topology: tpu7x:2x2x1
jax: 0.10.0
libtpu: 0.0.40
codegen_flags: <defaults>
</compile_context>

<pallas_src>
import jax
import jax.numpy as jnp
from jax.experimental import pallas as pl
from jax.experimental.pallas import tpu as pltpu


def cab_kernel(x_ref, m1_ref, m2_ref, wd_ref, wu_ref, alpha_ref, o_ref):
    bb, H, WC = o_ref.shape
    x = x_ref[...]                                        # (bb, H, WC) f32

    def conv3x3(v, m_ref):
        # v: (bb, H, WC) f32.  m_ref: (3, WC, WC) — the ky = 0,1,2 row blocks
        # of the block-tridiagonal ("Toeplitz") 3x3 conv weight.
        vc = v.astype(m_ref.dtype)                        # cast once (1x data)
        zrow = jnp.zeros((bb, 1, WC), m_ref.dtype)
        # shifted_ky[b, y] = x[b, y + ky - 1]; zero rows at each image border
        # (shift is per image inside the bb block, so no halo leaks between
        # images).
        up = jnp.concatenate([zrow, vc[:, :H - 1, :]], axis=1)   # ky = 0
        dn = jnp.concatenate([vc[:, 1:, :], zrow], axis=1)       # ky = 2
        acc = jnp.dot(up.reshape(bb * H, WC), m_ref[0],
                      preferred_element_type=jnp.float32)
        acc += jnp.dot(vc.reshape(bb * H, WC), m_ref[1],
                       preferred_element_type=jnp.float32)
        acc += jnp.dot(dn.reshape(bb * H, WC), m_ref[2],
                       preferred_element_type=jnp.float32)
        return acc.reshape(bb, H, WC)

    # conv1 -> PReLU (single shared alpha, nn.PReLU() default). alpha is an
    # SMEM scalar feeding the select directly.
    a = alpha_ref[0]
    y = conv3x3(x, m1_ref)
    y = jnp.where(y > 0, y, a * y)

    # conv2
    y = conv3x3(y, m2_ref)

    # Channel attention in the lane-fused W*C domain:
    #   GAP -> 1x1 conv -> ReLU -> 1x1 conv -> sigmoid.
    # GAP mean (1/(H*W)) and the channel broadcast are folded into wd/wu in
    # the wrapper, so no lane<->sublane relayout is needed here.
    col = jnp.sum(y, axis=1)                              # (bb, WC)
    r = jnp.maximum(
        jnp.dot(col, wd_ref[...], preferred_element_type=jnp.float32), 0.0)
    s = jax.nn.sigmoid(
        jnp.dot(r, wu_ref[...], preferred_element_type=jnp.float32))  # (bb, WC)

    # Scale + residual (residual from the in-VMEM input block).
    o_ref[...] = y * s[:, None, :] + x


def _toeplitz_conv_weight(w_hwio, W):
    """Fold the kx taps of a 3x3 conv into block-tridiagonal matrices.

    w_hwio: (3, 3, Cin, Cout).  Returns M of shape (3, W*Cin, W*Cout) such
    that for per-image input rows x[y] (lane-fused, length W*Cin, zero rows
    outside the image):
        conv(x)[y] = sum_ky x[y + ky - 1] @ M[ky]
    which equals the zero-padded stride-1 3x3 convolution.
    """
    kh, kw, cin, cout = w_hwio.shape
    blocks = []
    for ky in range(kh):
        m = jnp.zeros((W * cin, W * cout), w_hwio.dtype)
        for kx in range(kw):
            # shift[wi, w] = 1 iff wi == w + kx - 1 (zero-pad handled by
            # simply having no entry for out-of-range wi).
            shift = jnp.eye(W, W, k=1 - kx, dtype=w_hwio.dtype)
            m = m + jnp.kron(shift, w_hwio[ky, kx])
        blocks.append(m)
    return jnp.stack(blocks, axis=0)                      # (3, W*Cin, W*Cout)


def _pick_batch_block(B, H, WC, weight_bytes, *, target_rows=256,
                      vmem_budget=48 << 20):
    """Images per grid step.

    Goals (perf review): (a) bb*H >= target_rows so the conv matmul fills the
    256-row MXU on v6e/v7x (>=128 covers v5e as well), (b) keep >=2 —
    preferably an even number of — grid steps so v7x shards the 'parallel'
    axis across its two TensorCores, (c) stay inside the VMEM budget.
    """
    per_image = H * WC * 4                    # one f32 image block
    per_image_vmem = per_image * 10           # 2x in + 2x out bufs + temps

    def fits(bb):
        return weight_bytes + bb * per_image_vmem <= vmem_budget

    divisors = [d for d in range(1, B + 1) if B % d == 0 and fits(d)]
    if not divisors:
        return 1
    full = [d for d in divisors if d * H >= target_rows]
    if full:
        even = [d for d in full if (B // d) % 2 == 0]
        return min(even) if even else min(full)
    # Target unreachable (small batch): prefer an even grid (v7x megacore),
    # otherwise maximize matmul rows.
    even = [d for d in divisors if (B // d) % 2 == 0]
    return max(even) if even else max(divisors)


def cab_forward_nhwc(x_nhwc, params, *, matmul_dtype=jnp.bfloat16,
                     batch_block=None, single_buffer_weights=True):
    """x_nhwc: (B, H, W, C) float32.  Returns NHWC.  Native (preferred) API."""
    w1, alpha, w2, wd, wu = params
    x = x_nhwc.astype(jnp.float32)
    B, H, W, C = x.shape
    WC = W * C
    Cr = wd.shape[1]

    # Lane-dense input slab (free reshape); single HBM copy goes to the kernel.
    x_flat = x.reshape(B, H, WC)

    # Trace-time weight prep: Toeplitz conv row-blocks (bf16 MXU path by
    # default) + CA weights expanded to the fused W*C domain.
    m1 = _toeplitz_conv_weight(w1, W).astype(matmul_dtype)        # (3, WC, WC)
    m2 = _toeplitz_conv_weight(w2, W).astype(matmul_dtype)        # (3, WC, WC)
    wd_eff = (jnp.tile(wd, (W, 1)) / float(H * W)).astype(jnp.float32)  # (WC,Cr)
    wu_eff = jnp.tile(wu, (1, W)).astype(jnp.float32)                   # (Cr,WC)
    alpha1 = jnp.reshape(alpha, (1,)).astype(jnp.float32)

    weight_bytes = (2 * m1.size * m1.dtype.itemsize
                    + (wd_eff.size + wu_eff.size) * 4)

    bb = (batch_block if batch_block is not None
          else _pick_batch_block(B, H, WC, weight_bytes))
    assert B % bb == 0, "batch_block must divide the batch size"

    block_bytes = bb * H * WC * 4
    vmem_limit = int(min(max(2 * weight_bytes + 12 * block_bytes, 32 << 20),
                         64 << 20))

    def call(single_buffer):
        def wspec(shape):
            nd = len(shape)

            def idx(b):
                return (0,) * nd

            if single_buffer:
                # Grid-invariant operand: double-buffering buys nothing and
                # doubles the weight VMEM footprint.
                return pl.BlockSpec(shape, idx, pipeline_mode=pl.Buffered(1))
            return pl.BlockSpec(shape, idx)

        return pl.pallas_call(
            cab_kernel,
            out_shape=jax.ShapeDtypeStruct((B, H, WC), jnp.float32),
            grid_spec=pltpu.PrefetchScalarGridSpec(
                num_scalar_prefetch=0,
                grid=(B // bb,),
                in_specs=[
                    pl.BlockSpec((bb, H, WC), lambda b: (b, 0, 0)),
                    wspec((3, WC, WC)),
                    wspec((3, WC, WC)),
                    wspec((WC, Cr)),
                    wspec((Cr, WC)),
                    pl.BlockSpec(memory_space=pltpu.MemorySpace.SMEM),
                ],
                out_specs=pl.BlockSpec((bb, H, WC), lambda b: (b, 0, 0)),
            ),
            compiler_params=pltpu.CompilerParams(
                dimension_semantics=("parallel",),
                vmem_limit_bytes=vmem_limit),
        )(x_flat, m1, m2, wd_eff, wu_eff, alpha1)

    if single_buffer_weights:
        try:
            out = call(True)
        except Exception:  # older JAX without Buffered(1) support: fall back.
            out = call(False)
    else:
        out = call(False)

    return out.reshape(B, H, W, C)


def cab_forward(x_nchw, params, **kwargs):
    """NCHW convenience wrapper (PyTorch convention).

    Prefer cab_forward_nhwc in real pipelines: the NCHW<->NHWC transposes here
    are extra HBM round-trips of the activation tensor outside the kernel.
    """
    x = jnp.transpose(x_nchw, (0, 2, 3, 1))
    out = cab_forward_nhwc(x, params, **kwargs)
    return jnp.transpose(out, (0, 3, 1, 2))


def cab_reference(x_nchw, params):
    """Pure-JAX reference of the PyTorch CAB forward pass (for verification)."""
    w1, alpha, w2, wd, wu = params
    x = jnp.transpose(x_nchw, (0, 2, 3, 1))

    def conv3(v, w):
        return jax.lax.conv_general_dilated(
            v, w, (1, 1), ((1, 1), (1, 1)),
            dimension_numbers=("NHWC", "HWIO", "NHWC"))

    y = conv3(x, w1)
    y = jnp.where(y > 0, y, alpha * y)            # PReLU
    y = conv3(y, w2)
    m = jnp.mean(y, axis=(1, 2), keepdims=True)   # global avg pool (B,1,1,C)
    r = jnp.maximum(jnp.einsum("bijc,cd->bijd", m, wd), 0.0)
    s = jax.nn.sigmoid(jnp.einsum("bijd,dc->bijc", r, wu))
    out = y * s + x
    return jnp.transpose(out, (0, 3, 1, 2))


if __name__ == "__main__":
    key = jax.random.PRNGKey(0)
    n_feat, reduction = 16, 4            # bias=False in all convs
    B, H, W = 2, 16, 16

    k1, k2, k3, k4, k5 = jax.random.split(key, 5)
    x = jax.random.normal(k1, (B, n_feat, H, W), jnp.float32)        # NCHW
    scale = 0.1
    w1 = jax.random.normal(k2, (3, 3, n_feat, n_feat), jnp.float32) * scale
    w2 = jax.random.normal(k3, (3, 3, n_feat, n_feat), jnp.float32) * scale
    wd = jax.random.normal(k4, (n_feat, n_feat // reduction), jnp.float32) * scale
    wu = jax.random.normal(k5, (n_feat // reduction, n_feat), jnp.float32) * scale
    alpha = jnp.array(0.25, jnp.float32)  # nn.PReLU() default init

    params = (w1, alpha, w2, wd, wu)
    ref = cab_reference(x, params)

    # f32 matmul path (auto batch block): tight check against the reference.
    out_f32 = cab_forward(x, params, matmul_dtype=jnp.float32)
    jax.block_until_ready(out_f32)
    err_f32 = float(jnp.max(jnp.abs(out_f32 - ref)))
    assert jnp.allclose(out_f32, ref, rtol=1e-4, atol=1e-4), (
        f"f32 max abs err={err_f32}")

    # f32 path with bb=2 (multi-image block): checks per-image row-halo
    # handling inside a batch block.
    out_bb2 = cab_forward(x, params, matmul_dtype=jnp.float32, batch_block=2)
    jax.block_until_ready(out_bb2)
    err_bb2 = float(jnp.max(jnp.abs(out_bb2 - ref)))
    assert jnp.allclose(out_bb2, ref, rtol=1e-4, atol=1e-4), (
        f"bb=2 max abs err={err_bb2}")

    # Default path: bf16 conv matmuls (f32 accumulation) — the MXU fast path.
    out_bf16 = cab_forward(x, params)
    jax.block_until_ready(out_bf16)
    err_bf16 = float(jnp.max(jnp.abs(out_bf16 - ref)))
    assert jnp.allclose(out_bf16, ref, rtol=5e-2, atol=5e-2), (
        f"bf16 max abs err={err_bf16}")

    print("KERNEL_OK")
</pallas_src>

<mosaic_0001>
module attributes {stable_mosaic.version = 11 : i64} {
  func.func @cab_kernel(%arg0: i32, %arg1: memref<1x16x256xf32, #tpu.memory_space<vmem>>, %arg2: memref<3x256x256xf32, #tpu.memory_space<vmem>>, %arg3: memref<3x256x256xf32, #tpu.memory_space<vmem>>, %arg4: memref<256x4xf32, #tpu.memory_space<vmem>>, %arg5: memref<4x256xf32, #tpu.memory_space<vmem>>, %arg6: memref<1xf32, #tpu.memory_space<smem>>, %arg7: memref<1x16x256xf32, #tpu.memory_space<vmem>>) attributes {dimension_semantics = [#tpu.dimension_semantics<parallel>], iteration_bounds = array<i64: 2>, scalar_prefetch = 0 : i64, scratch_operands = 0 : i64, tpu.core_type = #tpu.core_type<tc>, window_params = [{transform_indices = @transform_0, window_bounds = array<i64: 1, 16, 256>}, {pipeline_mode = #tpu.pipeline_mode<synchronous>, transform_indices = @transform_1, window_bounds = array<i64: 3, 256, 256>}, {pipeline_mode = #tpu.pipeline_mode<synchronous>, transform_indices = @transform_2, window_bounds = array<i64: 3, 256, 256>}, {pipeline_mode = #tpu.pipeline_mode<synchronous>, transform_indices = @transform_3, window_bounds = array<i64: 256, 4>}, {pipeline_mode = #tpu.pipeline_mode<synchronous>, transform_indices = @transform_4, window_bounds = array<i64: 4, 256>}, {transform_indices = @transform_5, window_bounds = array<i64: 1>}, {transform_indices = @transform_6, window_bounds = array<i64: 1, 16, 256>}]} {
    %c0 = arith.constant 0 : index
    %c0_0 = arith.constant 0 : index
    %c0_1 = arith.constant 0 : index
    %0 = vector.load %arg1[%c0, %c0_0, %c0_1] : memref<1x16x256xf32, #tpu.memory_space<vmem>>, vector<1x16x256xf32>
    %c0_2 = arith.constant 0 : index
    %1 = memref.load %arg6[%c0_2] : memref<1xf32, #tpu.memory_space<smem>>
    %cst = arith.constant 0.000000e+00 : f32
    %2 = vector.broadcast %cst : f32 to vector<1x1x256xf32>
    %3 = vector.extract_strided_slice %0 {offsets = [0, 0, 0], sizes = [1, 15, 256], strides = [1, 1, 1]} : vector<1x16x256xf32> to vector<1x15x256xf32>
    %4 = tpu.concatenate %2, %3 in 1 : vector<1x1x256xf32>, vector<1x15x256xf32> -> vector<1x16x256xf32>
    %5 = vector.extract_strided_slice %0 {offsets = [0, 1, 0], sizes = [1, 15, 256], strides = [1, 1, 1]} : vector<1x16x256xf32> to vector<1x15x256xf32>
    %6 = tpu.concatenate %5, %2 in 1 : vector<1x15x256xf32>, vector<1x1x256xf32> -> vector<1x16x256xf32>
    %7 = vector.shape_cast %4 : vector<1x16x256xf32> to vector<16x256xf32>
    %c0_3 = arith.constant 0 : index
    %c0_4 = arith.constant 0 : index
    %c0_5 = arith.constant 0 : index
    %8 = vector.load %arg2[%c0_3, %c0_4, %c0_5] : memref<3x256x256xf32, #tpu.memory_space<vmem>>, vector<1x256x256xf32>
    %9 = vector.shape_cast %8 : vector<1x256x256xf32> to vector<256x256xf32>
    %cst_6 = arith.constant dense<0.000000e+00> : vector<16x256xf32>
    %10 = tpu.matmul %7, %9, %cst_6 {dimension_numbers = #tpu.dot_dimension_numbers<[1], [0], [0], [1], [0, 0, 1, 1], [], []>} : vector<16x256xf32>, vector<256x256xf32>, vector<16x256xf32> -> vector<16x256xf32>
    %11 = vector.shape_cast %0 : vector<1x16x256xf32> to vector<16x256xf32>
    %c1 = arith.constant 1 : index
    %c0_7 = arith.constant 0 : index
    %c0_8 = arith.constant 0 : index
    %12 = vector.load %arg2[%c1, %c0_7, %c0_8] : memref<3x256x256xf32, #tpu.memory_space<vmem>>, vector<1x256x256xf32>
    %13 = vector.shape_cast %12 : vector<1x256x256xf32> to vector<256x256xf32>
    %cst_9 = arith.constant dense<0.000000e+00> : vector<16x256xf32>
    %14 = tpu.matmul %11, %13, %cst_9 {dimension_numbers = #tpu.dot_dimension_numbers<[1], [0], [0], [1], [0, 0, 1, 1], [], []>} : vector<16x256xf32>, vector<256x256xf32>, vector<16x256xf32> -> vector<16x256xf32>
    %15 = arith.addf %10, %14 : vector<16x256xf32>
    %16 = vector.shape_cast %6 : vector<1x16x256xf32> to vector<16x256xf32>
    %c2 = arith.constant 2 : index
    %c0_10 = arith.constant 0 : index
    %c0_11 = arith.constant 0 : index
    %17 = vector.load %arg2[%c2, %c0_10, %c0_11] : memref<3x256x256xf32, #tpu.memory_space<vmem>>, vector<1x256x256xf32>
    %18 = vector.shape_cast %17 : vector<1x256x256xf32> to vector<256x256xf32>
    %cst_12 = arith.constant dense<0.000000e+00> : vector<16x256xf32>
    %19 = tpu.matmul %16, %18, %cst_12 {dimension_numbers = #tpu.dot_dimension_numbers<[1], [0], [0], [1], [0, 0, 1, 1], [], []>} : vector<16x256xf32>, vector<256x256xf32>, vector<16x256xf32> -> vector<16x256xf32>
    %20 = arith.addf %15, %19 : vector<16x256xf32>
    %21 = vector.shape_cast %20 : vector<16x256xf32> to vector<1x16x256xf32>
    %cst_13 = arith.constant 0.000000e+00 : f32
    %22 = vector.broadcast %cst_13 : f32 to vector<1x16x256xf32>
    %23 = arith.cmpf ogt, %21, %22 : vector<1x16x256xf32>
    %24 = vector.broadcast %1 : f32 to vector<1x16x256xf32>
    %25 = arith.mulf %24, %21 : vector<1x16x256xf32>
    %26 = arith.select %23, %21, %25 : vector<1x16x256xi1>, vector<1x16x256xf32>
    %cst_14 = arith.constant 0.000000e+00 : f32
    %27 = vector.broadcast %cst_14 : f32 to vector<1x1x256xf32>
    %28 = vector.extract_strided_slice %26 {offsets = [0, 0, 0], sizes = [1, 15, 256], strides = [1, 1, 1]} : vector<1x16x256xf32> to vector<1x15x256xf32>
    %29 = tpu.concatenate %27, %28 in 1 : vector<1x1x256xf32>, vector<1x15x256xf32> -> vector<1x16x256xf32>
    %30 = vector.extract_strided_slice %26 {offsets = [0, 1, 0], sizes = [1, 15, 256], strides = [1, 1, 1]} : vector<1x16x256xf32> to vector<1x15x256xf32>
    %31 = tpu.concatenate %30, %27 in 1 : vector<1x15x256xf32>, vector<1x1x256xf32> -> vector<1x16x256xf32>
    %32 = vector.shape_cast %29 : vector<1x16x256xf32> to vector<16x256xf32>
    %c0_15 = arith.constant 0 : index
    %c0_16 = arith.constant 0 : index
    %c0_17 = arith.constant 0 : index
    %33 = vector.load %arg3[%c0_15, %c0_16, %c0_17] : memref<3x256x256xf32, #tpu.memory_space<vmem>>, vector<1x256x256xf32>
    %34 = vector.shape_cast %33 : vector<1x256x256xf32> to vector<256x256xf32>
    %cst_18 = arith.constant dense<0.000000e+00> : vector<16x256xf32>
    %35 = tpu.matmul %32, %34, %cst_18 {dimension_numbers = #tpu.dot_dimension_numbers<[1], [0], [0], [1], [0, 0, 1, 1], [], []>} : vector<16x256xf32>, vector<256x256xf32>, vector<16x256xf32> -> vector<16x256xf32>
    %36 = vector.shape_cast %26 : vector<1x16x256xf32> to vector<16x256xf32>
    %c1_19 = arith.constant 1 : index
    %c0_20 = arith.constant 0 : index
    %c0_21 = arith.constant 0 : index
    %37 = vector.load %arg3[%c1_19, %c0_20, %c0_21] : memref<3x256x256xf32, #tpu.memory_space<vmem>>, vector<1x256x256xf32>
    %38 = vector.shape_cast %37 : vector<1x256x256xf32> to vector<256x256xf32>
    %cst_22 = arith.constant dense<0.000000e+00> : vector<16x256xf32>
    %39 = tpu.matmul %36, %38, %cst_22 {dimension_numbers = #tpu.dot_dimension_numbers<[1], [0], [0], [1], [0, 0, 1, 1], [], []>} : vector<16x256xf32>, vector<256x256xf32>, vector<16x256xf32> -> vector<16x256xf32>
    %40 = arith.addf %35, %39 : vector<16x256xf32>
    %41 = vector.shape_cast %31 : vector<1x16x256xf32> to vector<16x256xf32>
    %c2_23 = arith.constant 2 : index
    %c0_24 = arith.constant 0 : index
    %c0_25 = arith.constant 0 : index
    %42 = vector.load %arg3[%c2_23, %c0_24, %c0_25] : memref<3x256x256xf32, #tpu.memory_space<vmem>>, vector<1x256x256xf32>
    %43 = vector.shape_cast %42 : vector<1x256x256xf32> to vector<256x256xf32>
    %cst_26 = arith.constant dense<0.000000e+00> : vector<16x256xf32>
    %44 = tpu.matmul %41, %43, %cst_26 {dimension_numbers = #tpu.dot_dimension_numbers<[1], [0], [0], [1], [0, 0, 1, 1], [], []>} : vector<16x256xf32>, vector<256x256xf32>, vector<16x256xf32> -> vector<16x256xf32>
    %45 = arith.addf %40, %44 : vector<16x256xf32>
    %46 = vector.shape_cast %45 : vector<16x256xf32> to vector<1x16x256xf32>
    %cst_27 = arith.constant dense<0.000000e+00> : vector<1x256xf32>
    %47 = vector.multi_reduction <add>, %46, %cst_27 [1] : vector<1x16x256xf32> to vector<1x256xf32>
    %c0_28 = arith.constant 0 : index
    %c0_29 = arith.constant 0 : index
    %48 = vector.load %arg4[%c0_28, %c0_29] : memref<256x4xf32, #tpu.memory_space<vmem>>, vector<256x4xf32>
    %cst_30 = arith.constant dense<0.000000e+00> : vector<1x4xf32>
    %49 = tpu.matmul %47, %48, %cst_30 {dimension_numbers = #tpu.dot_dimension_numbers<[1], [0], [0], [1], [0, 0, 1, 1], [], []>} : vector<1x256xf32>, vector<256x4xf32>, vector<1x4xf32> -> vector<1x4xf32>
    %cst_31 = arith.constant 0.000000e+00 : f32
    %50 = vector.broadcast %cst_31 : f32 to vector<1x4xf32>
    %51 = arith.maximumf %49, %50 : vector<1x4xf32>
    %c0_32 = arith.constant 0 : index
    %c0_33 = arith.constant 0 : index
    %52 = vector.load %arg5[%c0_32, %c0_33] : memref<4x256xf32, #tpu.memory_space<vmem>>, vector<4x256xf32>
    %cst_34 = arith.constant dense<0.000000e+00> : vector<1x256xf32>
    %53 = tpu.matmul %51, %52, %cst_34 {dimension_numbers = #tpu.dot_dimension_numbers<[1], [0], [0], [1], [0, 0, 1, 1], [], []>} : vector<1x4xf32>, vector<4x256xf32>, vector<1x256xf32> -> vector<1x256xf32>
    %54 = arith.negf %53 : vector<1x256xf32>
    %55 = math.exp %54 : vector<1x256xf32>
    %cst_35 = arith.constant 1.000000e+00 : f32
    %56 = vector.broadcast %cst_35 : f32 to vector<1x256xf32>
    %57 = arith.addf %56, %55 : vector<1x256xf32>
    %58 = arith.divf %56, %57 : vector<1x256xf32>
    %59 = vector.shape_cast %58 : vector<1x256xf32> to vector<1x1x256xf32>
    %60 = vector.broadcast %59 : vector<1x1x256xf32> to vector<1x16x256xf32>
    %61 = arith.mulf %46, %60 : vector<1x16x256xf32>
    %62 = arith.addf %61, %0 : vector<1x16x256xf32>
    %c0_36 = arith.constant 0 : index
    %c0_37 = arith.constant 0 : index
    %c0_38 = arith.constant 0 : index
    %63 = vector.load %arg7[%c0_36, %c0_37, %c0_38] : memref<1x16x256xf32, #tpu.memory_space<vmem>>, vector<1x16x256xf32>
    tpu.vector_store %arg7[%c0_36, %c0_37, %c0_38], %62 {strides = array<i32>} : memref<1x16x256xf32, #tpu.memory_space<vmem>>, vector<1x16x256xf32>,
    return
  }
  func.func @transform_0(%arg0: i32) -> (i32, i32, i32) {
    %c0_i32 = arith.constant 0 : i32
    %c0_i32_0 = arith.constant 0 : i32
    %c0_i32_1 = arith.constant 0 : i32
    return %arg0, %c0_i32, %c0_i32_0 : i32, i32, i32
  }
  func.func @transform_1(%arg0: i32) -> (i32, i32, i32) {
    %c0_i32 = arith.constant 0 : i32
    %c0_i32_0 = arith.constant 0 : i32
    %c0_i32_1 = arith.constant 0 : i32
    %c0_i32_2 = arith.constant 0 : i32
    return %c0_i32, %c0_i32_0, %c0_i32_1 : i32, i32, i32
  }
  func.func @transform_2(%arg0: i32) -> (i32, i32, i32) {
    %c0_i32 = arith.constant 0 : i32
    %c0_i32_0 = arith.constant 0 : i32
    %c0_i32_1 = arith.constant 0 : i32
    %c0_i32_2 = arith.constant 0 : i32
    return %c0_i32, %c0_i32_0, %c0_i32_1 : i32, i32, i32
  }
  func.func @transform_3(%arg0: i32) -> (i32, i32) {
    %c0_i32 = arith.constant 0 : i32
    %c0_i32_0 = arith.constant 0 : i32
    %c0_i32_1 = arith.constant 0 : i32
    return %c0_i32, %c0_i32_0 : i32, i32
  }
  func.func @transform_4(%arg0: i32) -> (i32, i32) {
    %c0_i32 = arith.constant 0 : i32
    %c0_i32_0 = arith.constant 0 : i32
    %c0_i32_1 = arith.constant 0 : i32
    return %c0_i32, %c0_i32_0 : i32, i32
  }
  func.func @transform_5(%arg0: i32) -> i32 {
    %c0_i32 = arith.constant 0 : i32
    %c0_i32_0 = arith.constant 0 : i32
    return %c0_i32 : i32
  }
  func.func @transform_6(%arg0: i32) -> (i32, i32, i32) {
    %c0_i32 = arith.constant 0 : i32
    %c0_i32_0 = arith.constant 0 : i32
    %c0_i32_1 = arith.constant 0 : i32
    return %arg0, %c0_i32, %c0_i32_0 : i32, i32, i32
  }
}

module attributes {stable_mosaic.version = 11 : i64} {
  func.func @cab_kernel(%arg0: i32, %arg1: memref<1x16x256xf32, #tpu.memory_space<vmem>>, %arg2: memref<3x256x256xf32, #tpu.memory_space<vmem>>, %arg3: memref<3x256x256xf32, #tpu.memory_space<vmem>>, %arg4: memref<256x4xf32, #tpu.memory_space<vmem>>, %arg5: memref<4x256xf32, #tpu.memory_space<vmem>>, %arg6: memref<1xf32, #tpu.memory_space<smem>>, %arg7: memref<1x16x256xf32, #tpu.memory_space<vmem>>) attributes {dimension_semantics = [#tpu.dimension_semantics<parallel>], iteration_bounds = array<i64: 2>, scalar_prefetch = 0 : i64, scratch_operands = 0 : i64, tpu.core_type = #tpu.core_type<tc>, window_params = [{transform_indices = @transform_0, window_bounds = array<i64: 1, 16, 256>}, {pipeline_mode = #tpu.pipeline_mode<synchronous>, transform_indices = @transform_1, window_bounds = array<i64: 3, 256, 256>}, {pipeline_mode = #tpu.pipeline_mode<synchronous>, transform_indices = @transform_2, window_bounds = array<i64: 3, 256, 256>}, {pipeline_mode = #tpu.pipeline_mode<synchronous>, transform_indices = @transform_3, window_bounds = array<i64: 256, 4>}, {pipeline_mode = #tpu.pipeline_mode<synchronous>, transform_indices = @transform_4, window_bounds = array<i64: 4, 256>}, {transform_indices = @transform_5, window_bounds = array<i64: 1>}, {transform_indices = @transform_6, window_bounds = array<i64: 1, 16, 256>}]} {
    %c0 = arith.constant 0 : index
    %c0_0 = arith.constant 0 : index
    %c0_1 = arith.constant 0 : index
    %0 = vector.load %arg1[%c0, %c0_0, %c0_1] : memref<1x16x256xf32, #tpu.memory_space<vmem>>, vector<1x16x256xf32>
    %c0_2 = arith.constant 0 : index
    %1 = memref.load %arg6[%c0_2] : memref<1xf32, #tpu.memory_space<smem>>
    %cst = arith.constant 0.000000e+00 : f32
    %2 = vector.broadcast %cst : f32 to vector<1x1x256xf32>
    %3 = vector.extract_strided_slice %0 {offsets = [0, 0, 0], sizes = [1, 15, 256], strides = [1, 1, 1]} : vector<1x16x256xf32> to vector<1x15x256xf32>
    %4 = tpu.concatenate %2, %3 in 1 : vector<1x1x256xf32>, vector<1x15x256xf32> -> vector<1x16x256xf32>
    %5 = vector.extract_strided_slice %0 {offsets = [0, 1, 0], sizes = [1, 15, 256], strides = [1, 1, 1]} : vector<1x16x256xf32> to vector<1x15x256xf32>
    %6 = tpu.concatenate %5, %2 in 1 : vector<1x15x256xf32>, vector<1x1x256xf32> -> vector<1x16x256xf32>
    %7 = vector.shape_cast %4 : vector<1x16x256xf32> to vector<16x256xf32>
    %c0_3 = arith.constant 0 : index
    %c0_4 = arith.constant 0 : index
    %c0_5 = arith.constant 0 : index
    %8 = vector.load %arg2[%c0_3, %c0_4, %c0_5] : memref<3x256x256xf32, #tpu.memory_space<vmem>>, vector<1x256x256xf32>
    %9 = vector.shape_cast %8 : vector<1x256x256xf32> to vector<256x256xf32>
    %cst_6 = arith.constant dense<0.000000e+00> : vector<16x256xf32>
    %10 = tpu.matmul %7, %9, %cst_6 {dimension_numbers = #tpu.dot_dimension_numbers<[1], [0], [0], [1], [0, 0, 1, 1], [], []>} : vector<16x256xf32>, vector<256x256xf32>, vector<16x256xf32> -> vector<16x256xf32>
    %11 = vector.shape_cast %0 : vector<1x16x256xf32> to vector<16x256xf32>
    %c1 = arith.constant 1 : index
    %c0_7 = arith.constant 0 : index
    %c0_8 = arith.constant 0 : index
    %12 = vector.load %arg2[%c1, %c0_7, %c0_8] : memref<3x256x256xf32, #tpu.memory_space<vmem>>, vector<1x256x256xf32>
    %13 = vector.shape_cast %12 : vector<1x256x256xf32> to vector<256x256xf32>
    %cst_9 = arith.constant dense<0.000000e+00> : vector<16x256xf32>
    %14 = tpu.matmul %11, %13, %cst_9 {dimension_numbers = #tpu.dot_dimension_numbers<[1], [0], [0], [1], [0, 0, 1, 1], [], []>} : vector<16x256xf32>, vector<256x256xf32>, vector<16x256xf32> -> vector<16x256xf32>
    %15 = arith.addf %10, %14 : vector<16x256xf32>
    %16 = vector.shape_cast %6 : vector<1x16x256xf32> to vector<16x256xf32>
    %c2 = arith.constant 2 : index
    %c0_10 = arith.constant 0 : index
    %c0_11 = arith.constant 0 : index
    %17 = vector.load %arg2[%c2, %c0_10, %c0_11] : memref<3x256x256xf32, #tpu.memory_space<vmem>>, vector<1x256x256xf32>
    %18 = vector.shape_cast %17 : vector<1x256x256xf32> to vector<256x256xf32>
    %cst_12 = arith.constant dense<0.000000e+00> : vector<16x256xf32>
    %19 = tpu.matmul %16, %18, %cst_12 {dimension_numbers = #tpu.dot_dimension_numbers<[1], [0], [0], [1], [0, 0, 1, 1], [], []>} : vector<16x256xf32>, vector<256x256xf32>, vector<16x256xf32> -> vector<16x256xf32>
    %20 = arith.addf %15, %19 : vector<16x256xf32>
    %21 = vector.shape_cast %20 : vector<16x256xf32> to vector<1x16x256xf32>
    %cst_13 = arith.constant 0.000000e+00 : f32
    %22 = vector.broadcast %cst_13 : f32 to vector<1x16x256xf32>
    %23 = arith.cmpf ogt, %21, %22 : vector<1x16x256xf32>
    %24 = vector.broadcast %1 : f32 to vector<1x16x256xf32>
    %25 = arith.mulf %24, %21 : vector<1x16x256xf32>
    %26 = arith.select %23, %21, %25 : vector<1x16x256xi1>, vector<1x16x256xf32>
    %cst_14 = arith.constant 0.000000e+00 : f32
    %27 = vector.broadcast %cst_14 : f32 to vector<1x1x256xf32>
    %28 = vector.extract_strided_slice %26 {offsets = [0, 0, 0], sizes = [1, 15, 256], strides = [1, 1, 1]} : vector<1x16x256xf32> to vector<1x15x256xf32>
    %29 = tpu.concatenate %27, %28 in 1 : vector<1x1x256xf32>, vector<1x15x256xf32> -> vector<1x16x256xf32>
    %30 = vector.extract_strided_slice %26 {offsets = [0, 1, 0], sizes = [1, 15, 256], strides = [1, 1, 1]} : vector<1x16x256xf32> to vector<1x15x256xf32>
    %31 = tpu.concatenate %30, %27 in 1 : vector<1x15x256xf32>, vector<1x1x256xf32> -> vector<1x16x256xf32>
    %32 = vector.shape_cast %29 : vector<1x16x256xf32> to vector<16x256xf32>
    %c0_15 = arith.constant 0 : index
    %c0_16 = arith.constant 0 : index
    %c0_17 = arith.constant 0 : index
    %33 = vector.load %arg3[%c0_15, %c0_16, %c0_17] : memref<3x256x256xf32, #tpu.memory_space<vmem>>, vector<1x256x256xf32>
    %34 = vector.shape_cast %33 : vector<1x256x256xf32> to vector<256x256xf32>
    %cst_18 = arith.constant dense<0.000000e+00> : vector<16x256xf32>
    %35 = tpu.matmul %32, %34, %cst_18 {dimension_numbers = #tpu.dot_dimension_numbers<[1], [0], [0], [1], [0, 0, 1, 1], [], []>} : vector<16x256xf32>, vector<256x256xf32>, vector<16x256xf32> -> vector<16x256xf32>
    %36 = vector.shape_cast %26 : vector<1x16x256xf32> to vector<16x256xf32>
    %c1_19 = arith.constant 1 : index
    %c0_20 = arith.constant 0 : index
    %c0_21 = arith.constant 0 : index
    %37 = vector.load %arg3[%c1_19, %c0_20, %c0_21] : memref<3x256x256xf32, #tpu.memory_space<vmem>>, vector<1x256x256xf32>
    %38 = vector.shape_cast %37 : vector<1x256x256xf32> to vector<256x256xf32>
    %cst_22 = arith.constant dense<0.000000e+00> : vector<16x256xf32>
    %39 = tpu.matmul %36, %38, %cst_22 {dimension_numbers = #tpu.dot_dimension_numbers<[1], [0], [0], [1], [0, 0, 1, 1], [], []>} : vector<16x256xf32>, vector<256x256xf32>, vector<16x256xf32> -> vector<16x256xf32>
    %40 = arith.addf %35, %39 : vector<16x256xf32>
    %41 = vector.shape_cast %31 : vector<1x16x256xf32> to vector<16x256xf32>
    %c2_23 = arith.constant 2 : index
    %c0_24 = arith.constant 0 : index
    %c0_25 = arith.constant 0 : index
    %42 = vector.load %arg3[%c2_23, %c0_24, %c0_25] : memref<3x256x256xf32, #tpu.memory_space<vmem>>, vector<1x256x256xf32>
    %43 = vector.shape_cast %42 : vector<1x256x256xf32> to vector<256x256xf32>
    %cst_26 = arith.constant dense<0.000000e+00> : vector<16x256xf32>
    %44 = tpu.matmul %41, %43, %cst_26 {dimension_numbers = #tpu.dot_dimension_numbers<[1], [0], [0], [1], [0, 0, 1, 1], [], []>} : vector<16x256xf32>, vector<256x256xf32>, vector<16x256xf32> -> vector<16x256xf32>
    %45 = arith.addf %40, %44 : vector<16x256xf32>
    %46 = vector.shape_cast %45 : vector<16x256xf32> to vector<1x16x256xf32>
    %cst_27 = arith.constant dense<0.000000e+00> : vector<1x256xf32>
    %47 = vector.multi_reduction <add>, %46, %cst_27 [1] : vector<1x16x256xf32> to vector<1x256xf32>
    %c0_28 = arith.constant 0 : index
    %c0_29 = arith.constant 0 : index
    %48 = vector.load %arg4[%c0_28, %c0_29] : memref<256x4xf32, #tpu.memory_space<vmem>>, vector<256x4xf32>
    %cst_30 = arith.constant dense<0.000000e+00> : vector<1x4xf32>
    %49 = tpu.matmul %47, %48, %cst_30 {dimension_numbers = #tpu.dot_dimension_numbers<[1], [0], [0], [1], [0, 0, 1, 1], [], []>} : vector<1x256xf32>, vector<256x4xf32>, vector<1x4xf32> -> vector<1x4xf32>
    %cst_31 = arith.constant 0.000000e+00 : f32
    %50 = vector.broadcast %cst_31 : f32 to vector<1x4xf32>
    %51 = arith.maximumf %49, %50 : vector<1x4xf32>
    %c0_32 = arith.constant 0 : index
    %c0_33 = arith.constant 0 : index
    %52 = vector.load %arg5[%c0_32, %c0_33] : memref<4x256xf32, #tpu.memory_space<vmem>>, vector<4x256xf32>
    %cst_34 = arith.constant dense<0.000000e+00> : vector<1x256xf32>
    %53 = tpu.matmul %51, %52, %cst_34 {dimension_numbers = #tpu.dot_dimension_numbers<[1], [0], [0], [1], [0, 0, 1, 1], [], []>} : vector<1x4xf32>, vector<4x256xf32>, vector<1x256xf32> -> vector<1x256xf32>
    %54 = arith.negf %53 : vector<1x256xf32>
    %55 = math.exp %54 : vector<1x256xf32>
    %cst_35 = arith.constant 1.000000e+00 : f32
    %56 = vector.broadcast %cst_35 : f32 to vector<1x256xf32>
    %57 = arith.addf %56, %55 : vector<1x256xf32>
    %58 = arith.divf %56, %57 : vector<1x256xf32>
    %59 = vector.shape_cast %58 : vector<1x256xf32> to vector<1x1x256xf32>
    %60 = vector.broadcast %59 : vector<1x1x256xf32> to vector<1x16x256xf32>
    %61 = arith.mulf %46, %60 : vector<1x16x256xf32>
    %62 = arith.addf %61, %0 : vector<1x16x256xf32>
    %c0_36 = arith.constant 0 : index
    %c0_37 = arith.constant 0 : index
    %c0_38 = arith.constant 0 : index
    %63 = vector.load %arg7[%c0_36, %c0_37, %c0_38] : memref<1x16x256xf32, #tpu.memory_space<vmem>>, vector<1x16x256xf32>
    tpu.vector_store %arg7[%c0_36, %c0_37, %c0_38], %62 {strides = array<i32>} : memref<1x16x256xf32, #tpu.memory_space<vmem>>, vector<1x16x256xf32>,
    return
  }
  func.func @transform_0(%arg0: i32) -> (i32, i32, i32) {
    %c0_i32 = arith.constant 0 : i32
    %c0_i32_0 = arith.constant 0 : i32
    %c0_i32_1 = arith.constant 0 : i32
    return %arg0, %c0_i32, %c0_i32_0 : i32, i32, i32
  }
  func.func @transform_1(%arg0: i32) -> (i32, i32, i32) {
    %c0_i32 = arith.constant 0 : i32
    %c0_i32_0 = arith.constant 0 : i32
    %c0_i32_1 = arith.constant 0 : i32
    %c0_i32_2 = arith.constant 0 : i32
    return %c0_i32, %c0_i32_0, %c0_i32_1 : i32, i32, i32
  }
  func.func @transform_2(%arg0: i32) -> (i32, i32, i32) {
    %c0_i32 = arith.constant 0 : i32
    %c0_i32_0 = arith.constant 0 : i32
    %c0_i32_1 = arith.constant 0 : i32
    %c0_i32_2 = arith.constant 0 : i32
    return %c0_i32, %c0_i32_0, %c0_i32_1 : i32, i32, i32
  }
  func.func @transform_3(%arg0: i32) -> (i32, i32) {
    %c0_i32 = arith.constant 0 : i32
    %c0_i32_0 = arith.constant 0 : i32
    %c0_i32_1 = arith.constant 0 : i32
    return %c0_i32, %c0_i32_0 : i32, i32
  }
  func.func @transform_4(%arg0: i32) -> (i32, i32) {
    %c0_i32 = arith.constant 0 : i32
    %c0_i32_0 = arith.constant 0 : i32
    %c0_i32_1 = arith.constant 0 : i32
    return %c0_i32, %c0_i32_0 : i32, i32
  }
  func.func @transform_5(%arg0: i32) -> i32 {
    %c0_i32 = arith.constant 0 : i32
    %c0_i32_0 = arith.constant 0 : i32
    return %c0_i32 : i32
  }
  func.func @transform_6(%arg0: i32) -> (i32, i32, i32) {
    %c0_i32 = arith.constant 0 : i32
    %c0_i32_0 = arith.constant 0 : i32
    %c0_i32_1 = arith.constant 0 : i32
    return %arg0, %c0_i32, %c0_i32_0 : i32, i32, i32
  }
}

</mosaic_0001>

<llo_original>
// kernel: tpu_custom_call.1
$region0: #{tpu_custom_call.1}
  #allocation0 [shape = 'u32[]', space=smem, size = 0x4, offset = 0x4, fixed_abs, tag = 'smem constant byte address 0x4 - core index']
  #allocation1 [shape = 'u32[144,128]{1,0:T(1,128)}', space=vmem, size = 0x12000, scoped, tag = 'internal scratch']
  #allocation2 [shape = 'f32[1]{0:T(128)S(6)}', space=smem, size = 0x200, scoped, tag = 'scoped memory for tpu_custom_call.1']
  %s0 = inlined_call_operand.vmem [shape: f32[2,16,256], index: 0, kind: input, shape index: {}]
  %s1 = inlined_call_operand.hbm [shape: f32[3,256,256], index: 1, kind: input, shape index: {}]
  %s2 = inlined_call_operand.hbm [shape: f32[3,256,256], index: 2, kind: input, shape index: {}]
  %s3 = inlined_call_operand.vmem [shape: f32[256,4], index: 3, kind: input, shape index: {}]
  %s4 = inlined_call_operand.vmem [shape: f32[4,256], index: 4, kind: input, shape index: {}]
  %s5 = inlined_call_operand.<no memory space> [shape: f32[1], index: 5, kind: input, shape index: {}]
  %s6 = inlined_call_operand.hbm [shape: f32[2,16,256], index: 6, kind: output, shape index: {}]
  %s7 = sld [smem:[#allocation0]]
  $region65: #{tpu_custom_call.1} parent=0
    _
  %s9 = ssub.s32 1, %s7
  %s10 = scalar_select 0, %s9, %s7
  %11 = sst [smem:[#allocation2]] %s5
  $region1: #{tpu_custom_call.1} parent=0
    #allocation3 [shape = 'u8[786432]{0}', space=vmem, size = 0xc0000, scoped, tag = 'input window, operand 1, single buffered']
    #allocation4 [shape = 's32[2]{0}', space=sflag, size = 0x8, scoped, tag = 'scoped memory for tpu_custom_call.1']
    #allocation5 [shape = 's32[2]{0}', space=sflag, size = 0x8, scoped, tag = 'scoped memory for tpu_custom_call.1']
    #allocation6 [shape = 'u8[786432]{0}', space=vmem, size = 0xc0000, scoped, tag = 'input window, operand 2, single buffered']
    #allocation7 [shape = 's32[1]{0}', space=sflag, size = 0x4, scoped, tag = 'scoped memory for tpu_custom_call.1']
    #allocation8 [shape = 'u8[32768]{0}', space=vmem, size = 0x8000, scoped, tag = 'output window, operand 0']
    %12 = vsyncpa [#allocation4], 0
    %13 = vsyncpa [#allocation7], 0
    %14 = vsyncpa [#allocation5], 0
    %s15 = scalar_lea.sflag [#allocation5], 1
    %16 = vsyncpa %s15, 0
    loop: start=0, step=1, limit=4
    $region2: #{tpu_custom_call.1} parent=1 // loop_pre_header
      _
    $region3: #{tpu_custom_call.1} parent=1 // loop_header
      %s18 = sphi 0, %s22
      %p19 = scmp.ge.s32.totalorder %s18, 4
      %s28 = sphi 0, %s30
      %s31 = sphi 0, %s28
      %s32 = sphi 0, %s31
      %s48 = sphi 0, %s32
      %s52 = sphi 0, %s52
      %s54 = sphi 0, %s52
      %s55 = sphi 0, %s54
      %s69 = sphi 0, %s55
      %s73 = sphi 0, %s73
      %s75 = sphi 0, %s73
      %s76 = sphi 0, %s75
      %s90 = sphi 0, %s76
      %s94 = sphi 0, %s94
      %s96 = sphi 0, %s94
      %s97 = sphi 0, %s96
      %s111 = sphi 0, %s97
      %s115 = sphi 0, %s115
      %s117 = sphi 0, %s115
      %s118 = sphi 0, %s117
      %s132 = sphi 0, %s118
      %s136 = sphi 0, %s136
      %s138 = sphi 0, %s136
      %s139 = sphi 0, %s138
      %s153 = sphi 0, %s139
      %s159 = sphi 0, %s161
      %s162 = sphi 0, %s159
      %s163 = sphi 0, %s162
      %s179 = sphi 0, %s163
    $region4: #{tpu_custom_call.1} parent=1 // loop_header_branch
      %21 = sbr.rel (%p19) target = $region8
    $region5: #{tpu_custom_call.1} parent=1 // loop_body
      %s23 = ssub.s32 %s18, 1
      %s24 = ssub.s32 %s18, 2
      %s25 = sadd.s32 %s18, 1
      %s26 = ssub.s32 %s18, %s25
      %p27 = scmp.eq.s32.totalorder %s26, 0
      %s29 = sadd.s32 %s28, 1
      %s30 = scalar_select %p27, %s28, %s29
      %p33 = pneg %p27
      %p34 = scmp.eq.s32.totalorder %s18, 1
      %p35 = por %p33, %p34
      %p36 = scmp.ne.s32.totalorder %s28, %s31
      %p37 = scmp.eq.s32.totalorder %s18, 0
      %p38 = por %p36, %p37
      %p39 = scmp.ne.s32.totalorder %s28, %s31
      %p40 = scmp.eq.s32.totalorder %s23, 1
      %p41 = por %p39, %p40
      %p42 = scmp.ne.s32.totalorder %s31, %s32
      %p43 = scmp.eq.s32.totalorder %s23, 0
      %p44 = por %p42, %p43
      %p45 = scmp.ne.s32.totalorder %s31, %s32
      %p46 = scmp.eq.s32.totalorder %s24, 1
      %p47 = por %p45, %p46
      %p49 = scmp.ne.s32.totalorder %s32, %s48
      %p50 = scmp.eq.s32.totalorder %s24, 0
      %p51 = por %p49, %p50
      %s53 = sadd.s32 %s52, 1
      %p56 = scmp.eq.s32.totalorder %s18, 1
      %p57 = scmp.ne.s32.totalorder %s52, %s54
      %p58 = scmp.eq.s32.totalorder %s18, 0
      %p59 = por %p57, %p58
      %p60 = scmp.ne.s32.totalorder %s52, %s54
      %p61 = scmp.eq.s32.totalorder %s23, 1
      %p62 = por %p60, %p61
      %p63 = scmp.ne.s32.totalorder %s54, %s55
      %p64 = scmp.eq.s32.totalorder %s23, 0
      %p65 = por %p63, %p64
      %p66 = scmp.ne.s32.totalorder %s54, %s55
      %p67 = scmp.eq.s32.totalorder %s24, 1
      %p68 = por %p66, %p67
      %p70 = scmp.ne.s32.totalorder %s55, %s69
      %p71 = scmp.eq.s32.totalorder %s24, 0
      %p72 = por %p70, %p71
      %s74 = sadd.s32 %s73, 1
      %p77 = scmp.eq.s32.totalorder %s18, 1
      %p78 = scmp.ne.s32.totalorder %s73, %s75
      %p79 = scmp.eq.s32.totalorder %s18, 0
      %p80 = por %p78, %p79
      %p81 = scmp.ne.s32.totalorder %s73, %s75
      %p82 = scmp.eq.s32.totalorder %s23, 1
      %p83 = por %p81, %p82
      %p84 = scmp.ne.s32.totalorder %s75, %s76
      %p85 = scmp.eq.s32.totalorder %s23, 0
      %p86 = por %p84, %p85
      %p87 = scmp.ne.s32.totalorder %s75, %s76
      %p88 = scmp.eq.s32.totalorder %s24, 1
      %p89 = por %p87, %p88
      %p91 = scmp.ne.s32.totalorder %s76, %s90
      %p92 = scmp.eq.s32.totalorder %s24, 0
      %p93 = por %p91, %p92
      %s95 = sadd.s32 %s94, 1
      %p98 = scmp.eq.s32.totalorder %s18, 1
      %p99 = scmp.ne.s32.totalorder %s94, %s96
      %p100 = scmp.eq.s32.totalorder %s18, 0
      %p101 = por %p99, %p100
      %p102 = scmp.ne.s32.totalorder %s94, %s96
      %p103 = scmp.eq.s32.totalorder %s23, 1
      %p104 = por %p102, %p103
      %p105 = scmp.ne.s32.totalorder %s96, %s97
      %p106 = scmp.eq.s32.totalorder %s23, 0
      %p107 = por %p105, %p106
      %p108 = scmp.ne.s32.totalorder %s96, %s97
      %p109 = scmp.eq.s32.totalorder %s24, 1
      %p110 = por %p108, %p109
      %p112 = scmp.ne.s32.totalorder %s97, %s111
      %p113 = scmp.eq.s32.totalorder %s24, 0
      %p114 = por %p112, %p113
      %s116 = sadd.s32 %s115, 1
      %p119 = scmp.eq.s32.totalorder %s18, 1
      %p120 = scmp.ne.s32.totalorder %s115, %s117
      %p121 = scmp.eq.s32.totalorder %s18, 0
      %p122 = por %p120, %p121
      %p123 = scmp.ne.s32.totalorder %s115, %s117
      %p124 = scmp.eq.s32.totalorder %s23, 1
      %p125 = por %p123, %p124
      %p126 = scmp.ne.s32.totalorder %s117, %s118
      %p127 = scmp.eq.s32.totalorder %s23, 0
      %p128 = por %p126, %p127
      %p129 = scmp.ne.s32.totalorder %s117, %s118
      %p130 = scmp.eq.s32.totalorder %s24, 1
      %p131 = por %p129, %p130
      %p133 = scmp.ne.s32.totalorder %s118, %s132
      %p134 = scmp.eq.s32.totalorder %s24, 0
      %p135 = por %p133, %p134
      %s137 = sadd.s32 %s136, 1
      %p140 = scmp.eq.s32.totalorder %s18, 1
      %p141 = scmp.ne.s32.totalorder %s136, %s138
      %p142 = scmp.eq.s32.totalorder %s18, 0
      %p143 = por %p141, %p142
      %p144 = scmp.ne.s32.totalorder %s136, %s138
      %p145 = scmp.eq.s32.totalorder %s23, 1
      %p146 = por %p144, %p145
      %p147 = scmp.ne.s32.totalorder %s138, %s139
      %p148 = scmp.eq.s32.totalorder %s23, 0
      %p149 = por %p147, %p148
      %p150 = scmp.ne.s32.totalorder %s138, %s139
      %p151 = scmp.eq.s32.totalorder %s24, 1
      %p152 = por %p150, %p151
      %p154 = scmp.ne.s32.totalorder %s139, %s153
      %p155 = scmp.eq.s32.totalorder %s24, 0
      %p156 = por %p154, %p155
      %s157 = ssub.s32 %s18, %s25
      %p158 = scmp.eq.s32.totalorder %s157, 0
      %s160 = sadd.s32 %s159, 1
      %s161 = scalar_select %p158, %s159, %s160
      %p164 = pneg %p158
      %p165 = scmp.eq.s32.totalorder %s18, 1
      %p166 = por %p164, %p165
      %p167 = scmp.ne.s32.totalorder %s159, %s162
      %p168 = scmp.eq.s32.totalorder %s18, 0
      %p169 = por %p167, %p168
      %p170 = scmp.ne.s32.totalorder %s159, %s162
      %p171 = scmp.eq.s32.totalorder %s23, 1
      %p172 = por %p170, %p171
      %p173 = scmp.ne.s32.totalorder %s162, %s163
      %p174 = scmp.eq.s32.totalorder %s23, 0
      %p175 = por %p173, %p174
      %p176 = scmp.ne.s32.totalorder %s162, %s163
      %p177 = scmp.eq.s32.totalorder %s24, 1
      %p178 = por %p176, %p177
      %p180 = scmp.ne.s32.totalorder %s163, %s179
      %p181 = scmp.eq.s32.totalorder %s24, 0
      %p182 = por %p180, %p181
      %p183 = scmp.le.s32.totalorder 1, %s18
      %p184 = scmp.lt.s32.totalorder %s18, 3
      %p185 = pnand %p183, %p184
      %p186 = pneg %p185
      // Predicated region
      $region9: #{tpu_custom_call.1} parent=5 // pred_check
        _
      $region10: #{tpu_custom_call.1} parent=5 // pred_check_branch
        %188 = sbr.rel (%p185) target = $region12
      $region11: #{tpu_custom_call.1} parent=5 // pred_region
        %s189 = ssub.s32 %s18, 1
        // Predicated region
        $region13: #{tpu_custom_call.1} parent=11 // pred_check
          %p190 = pneg %p65
        $region14: #{tpu_custom_call.1} parent=11 // pred_check_branch
          %192 = sbr.rel (%p190) target = $region16
        $region15: #{tpu_custom_call.1} parent=11 // pred_region
          %s194 = ssub.s32 24576, 24576
          %195 = vsyncadd [#allocation4], %s194
          %s196 = sshll.u32 [#allocation3], 4
          %s197 = int_to_ptr.vmem [resolvable:$true] %s196
          %202 = dma.hbm_to_vmem [thread:$0]  %s1, 24576, %s197, [#allocation4], 256, 256, 16
        $region16: #{tpu_custom_call.1} parent=11 // pred_fallthru
          _
        // Predicated region
        $region17: #{tpu_custom_call.1} parent=11 // pred_check
          %p203 = pneg %p86
        $region18: #{tpu_custom_call.1} parent=11 // pred_check_branch
          %205 = sbr.rel (%p203) target = $region20
        $region19: #{tpu_custom_call.1} parent=11 // pred_region
          %s207 = ssub.s32 24576, 24576
          %208 = vsyncadd [#allocation7], %s207
          %s209 = sshll.u32 [#allocation6], 4
          %s210 = int_to_ptr.vmem [resolvable:$true] %s209
          %215 = dma.hbm_to_vmem [thread:$0]  %s2, 24576, %s210, [#allocation7], 256, 256, 16
        $region20: #{tpu_custom_call.1} parent=11 // pred_fallthru
          _
        // Predicated region
        $region21: #{tpu_custom_call.1} parent=11 // pred_check
          %p216 = pneg %p107
        $region22: #{tpu_custom_call.1} parent=11 // pred_check_branch
          %218 = sbr.rel (%p216) target = $region24
        $region23: #{tpu_custom_call.1} parent=11 // pred_region
          _
        $region24: #{tpu_custom_call.1} parent=11 // pred_fallthru
          _
        // Predicated region
        $region25: #{tpu_custom_call.1} parent=11 // pred_check
          %p219 = pneg %p128
        $region26: #{tpu_custom_call.1} parent=11 // pred_check_branch
          %221 = sbr.rel (%p219) target = $region28
        $region27: #{tpu_custom_call.1} parent=11 // pred_region
          _
        $region28: #{tpu_custom_call.1} parent=11 // pred_fallthru
          _
        // Predicated region
        $region29: #{tpu_custom_call.1} parent=11 // pred_check
          %p222 = pneg %p149
        $region30: #{tpu_custom_call.1} parent=11 // pred_check_branch
          %224 = sbr.rel (%p222) target = $region32
        $region31: #{tpu_custom_call.1} parent=11 // pred_region
          _
        $region32: #{tpu_custom_call.1} parent=11 // pred_fallthru
          _
      $region12: #{tpu_custom_call.1} parent=5 // pred_fallthru
        _
      %p225 = scmp.lt.s32.totalorder %s18, 2
      // Predicated region
      $region33: #{tpu_custom_call.1} parent=5 // pred_check
        %p226 = pneg %p225
      $region34: #{tpu_custom_call.1} parent=5 // pred_check_branch
        %228 = sbr.rel (%p226) target = $region36
      $region35: #{tpu_custom_call.1} parent=5 // pred_region
        // Predicated region
        $region37: #{tpu_custom_call.1} parent=35 // pred_check
          %p229 = pneg %p38
        $region38: #{tpu_custom_call.1} parent=35 // pred_check_branch
          %231 = sbr.rel (%p229) target = $region40
        $region39: #{tpu_custom_call.1} parent=35 // pred_region
          %p232 = scmp.lt.s32.totalorder %s18, 1
          %s233 = scalar_select %p232, %s18, 1
          %s234 = smul.addr %s233, 4
          %s235 = smul.addr %s234, 8
          %s236 = scalar_lea.vmem %s0, %s235
        $region40: #{tpu_custom_call.1} parent=35 // pred_fallthru
          _
      $region36: #{tpu_custom_call.1} parent=5 // pred_fallthru
        _
      %p237 = scmp.le.s32.totalorder 1, %s18
      %p238 = scmp.lt.s32.totalorder %s18, 3
      %p239 = pnand %p237, %p238
      %p240 = pneg %p239
      // Predicated region
      $region41: #{tpu_custom_call.1} parent=5 // pred_check
        _
      $region42: #{tpu_custom_call.1} parent=5 // pred_check_branch
        %242 = sbr.rel (%p239) target = $region44
      $region43: #{tpu_custom_call.1} parent=5 // pred_region
        %s243 = ssub.s32 %s18, 1
        // Predicated region
        $region45: #{tpu_custom_call.1} parent=43 // pred_check
          %p244 = pneg %p65
        $region46: #{tpu_custom_call.1} parent=43 // pred_check_branch
          %246 = sbr.rel (%p244) target = $region48
        $region47: #{tpu_custom_call.1} parent=43 // pred_region
          %247 = dma.done [#allocation4], 24576
        $region48: #{tpu_custom_call.1} parent=43 // pred_fallthru
          _
        // Predicated region
        $region49: #{tpu_custom_call.1} parent=43 // pred_check
          %p248 = pneg %p86
        $region50: #{tpu_custom_call.1} parent=43 // pred_check_branch
          %250 = sbr.rel (%p248) target = $region52
        $region51: #{tpu_custom_call.1} parent=43 // pred_region
          %251 = dma.done [#allocation7], 24576
        $region52: #{tpu_custom_call.1} parent=43 // pred_fallthru
          _
        %p252 = scmp.lt.s32.totalorder %s23, 1
        %s253 = scalar_select %p252, %s23, 1
        %s254 = smul.addr %s253, 4
        %s255 = smul.addr %s254, 8
        %s256 = scalar_lea.vmem %s0, %s255
        %p257 = pneg %p44
        %p258 = pneg %p41
        %p259 = pneg %p65
        %p260 = pneg %p62
        %p261 = pneg %p86
        %p262 = pneg %p83
        %p263 = pneg %p107
        %p264 = pneg %p104
        %p265 = pneg %p128
        %p266 = pneg %p125
        %p267 = pneg %p149
        %p268 = pneg %p146
        %p269 = pneg %p175
        %p270 = pneg %p172
        %s271 = sand.u32 %s162, 1
        %s272 = scalar_lea.sflag [#allocation5], %s271
        %s273 = sand.u32 %s162, 1
        %s274 = smul.addr %s273, 32
        %s275 = scalar_lea.vmem [#allocation8], %s274
        %p276 = scmp.lt.s32.totalorder %s23, 1
        %s277 = scalar_select %p276, %s23, 1
        %s278 = smul.addr %s277, 4
        %s279 = smul.addr %s278, 8
        %s280 = scalar_lea.vmem %s0, %s279
        %v281 = vld [vmem:[%s280] sm:$0xff]
        %v282 = vld [vmem:[%s280 + $0x8] sm:$0xff]
        %v283 = vld [vmem:[%s280 + $0x10] sm:$0xff]
        %v284 = vld [vmem:[%s280 + $0x18] sm:$0xff]
        %s285 = sld [smem:[#allocation2]]
        %vm290 = vcmask 1040384
        %v291 = vrot.slane %v281, 7
        %v292 = vrot.slane %v282, 7
        %v293 = vrot.slane %v283, 7
        %v294 = vsel %vm290, %v291, %v293
        %v295 = vrot.slane %v284, 7
        %v296 = vsel %vm290, %v292, %v295
        %v301 = vsel %vm290, 0.0, %v291
        %v302 = vsel %vm290, 0.0, %v292
        %vm303 = vcmask 1046528
        %v304 = vrot.slane %v281, 1
        %v305 = vrot.slane %v283, 1
        %v306 = vsel %vm303, %v304, %v305
        %v307 = vrot.slane %v282, 1
        %v308 = vrot.slane %v284, 1
        %v309 = vsel %vm303, %v307, %v308
        %v314 = vsel %vm303, %v305, 0.0
        %v315 = vsel %vm303, %v308, 0.0
        %v316 = vld [vmem:[#allocation3] sm:$0xff]
        %v317 = vld [vmem:[#allocation3 + $0x8] sm:$0xff]
        %v318 = vld [vmem:[#allocation3 + $0x10] sm:$0xff]
        %v319 = vld [vmem:[#allocation3 + $0x18] sm:$0xff]
        %v320 = vld [vmem:[#allocation3 + $0x20] sm:$0xff]
        %v321 = vld [vmem:[#allocation3 + $0x28] sm:$0xff]
        %v322 = vld [vmem:[#allocation3 + $0x30] sm:$0xff]
        %v323 = vld [vmem:[#allocation3 + $0x38] sm:$0xff]
        %v324 = vld [vmem:[#allocation3 + $0x40] sm:$0xff]
        %v325 = vld [vmem:[#allocation3 + $0x48] sm:$0xff]
        %v326 = vld [vmem:[#allocation3 + $0x50] sm:$0xff]
        %v327 = vld [vmem:[#allocation3 + $0x58] sm:$0xff]
        %v328 = vld [vmem:[#allocation3 + $0x60] sm:$0xff]
        %v329 = vld [vmem:[#allocation3 + $0x68] sm:$0xff]
        %v330 = vld [vmem:[#allocation3 + $0x70] sm:$0xff]
        %v331 = vld [vmem:[#allocation3 + $0x78] sm:$0xff]
        %v332 = vld [vmem:[#allocation3 + $0x80] sm:$0xff]
        %v333 = vld [vmem:[#allocation3 + $0x88] sm:$0xff]
        %v334 = vld [vmem:[#allocation3 + $0x90] sm:$0xff]
        %v335 = vld [vmem:[#allocation3 + $0x98] sm:$0xff]
        %v336 = vld [vmem:[#allocation3 + $0xa0] sm:$0xff]
        %v337 = vld [vmem:[#allocation3 + $0xa8] sm:$0xff]
        %v338 = vld [vmem:[#allocation3 + $0xb0] sm:$0xff]
        %v339 = vld [vmem:[#allocation3 + $0xb8] sm:$0xff]
        %v340 = vld [vmem:[#allocation3 + $0xc0] sm:$0xff]
        %v341 = vld [vmem:[#allocation3 + $0xc8] sm:$0xff]
        %v342 = vld [vmem:[#allocation3 + $0xd0] sm:$0xff]
        %v343 = vld [vmem:[#allocation3 + $0xd8] sm:$0xff]
        %v344 = vld [vmem:[#allocation3 + $0xe0] sm:$0xff]
        %v345 = vld [vmem:[#allocation3 + $0xe8] sm:$0xff]
        %v346 = vld [vmem:[#allocation3 + $0xf0] sm:$0xff]
        %v347 = vld [vmem:[#allocation3 + $0xf8] sm:$0xff]
        %v348 = vld [vmem:[#allocation3 + $0x100] sm:$0xff]
        %v349 = vld [vmem:[#allocation3 + $0x108] sm:$0xff]
        %v350 = vld [vmem:[#allocation3 + $0x110] sm:$0xff]
        %v351 = vld [vmem:[#allocation3 + $0x118] sm:$0xff]
        %v352 = vld [vmem:[#allocation3 + $0x120] sm:$0xff]
        %v353 = vld [vmem:[#allocation3 + $0x128] sm:$0xff]
        %v354 = vld [vmem:[#allocation3 + $0x130] sm:$0xff]
        %v355 = vld [vmem:[#allocation3 + $0x138] sm:$0xff]
        %v356 = vld [vmem:[#allocation3 + $0x140] sm:$0xff]
        %v357 = vld [vmem:[#allocation3 + $0x148] sm:$0xff]
        %v358 = vld [vmem:[#allocation3 + $0x150] sm:$0xff]
        %v359 = vld [vmem:[#allocation3 + $0x158] sm:$0xff]
        %v360 = vld [vmem:[#allocation3 + $0x160] sm:$0xff]
        %v361 = vld [vmem:[#allocation3 + $0x168] sm:$0xff]
        %v362 = vld [vmem:[#allocation3 + $0x170] sm:$0xff]
        %v363 = vld [vmem:[#allocation3 + $0x178] sm:$0xff]
        %v364 = vld [vmem:[#allocation3 + $0x180] sm:$0xff]
        %v365 = vld [vmem:[#allocation3 + $0x188] sm:$0xff]
        %v366 = vld [vmem:[#allocation3 + $0x190] sm:$0xff]
        %v367 = vld [vmem:[#allocation3 + $0x198] sm:$0xff]
        %v368 = vld [vmem:[#allocation3 + $0x1a0] sm:$0xff]
        %v369 = vld [vmem:[#allocation3 + $0x1a8] sm:$0xff]
        %v370 = vld [vmem:[#allocation3 + $0x1b0] sm:$0xff]
        %v371 = vld [vmem:[#allocation3 + $0x1b8] sm:$0xff]
        %v372 = vld [vmem:[#allocation3 + $0x1c0] sm:$0xff]
        %v373 = vld [vmem:[#allocation3 + $0x1c8] sm:$0xff]
        %v374 = vld [vmem:[#allocation3 + $0x1d0] sm:$0xff]
        %v375 = vld [vmem:[#allocation3 + $0x1d8] sm:$0xff]
        %v376 = vld [vmem:[#allocation3 + $0x1e0] sm:$0xff]
        %v377 = vld [vmem:[#allocation3 + $0x1e8] sm:$0xff]
        %v378 = vld [vmem:[#allocation3 + $0x1f0] sm:$0xff]
        %v379 = vld [vmem:[#allocation3 + $0x1f8] sm:$0xff]
        %s380 = scalar_lea.vmem [#allocation3], 512
        %v381 = vld [vmem:[%s380] sm:$0xff]
        %v382 = vld [vmem:[%s380 + $0x8] sm:$0xff]
        %v383 = vld [vmem:[%s380 + $0x10] sm:$0xff]
        %v384 = vld [vmem:[%s380 + $0x18] sm:$0xff]
        %v385 = vld [vmem:[%s380 + $0x20] sm:$0xff]
        %v386 = vld [vmem:[%s380 + $0x28] sm:$0xff]
        %v387 = vld [vmem:[%s380 + $0x30] sm:$0xff]
        %v388 = vld [vmem:[%s380 + $0x38] sm:$0xff]
        %v389 = vld [vmem:[%s380 + $0x40] sm:$0xff]
        %v390 = vld [vmem:[%s380 + $0x48] sm:$0xff]
        %v391 = vld [vmem:[%s380 + $0x50] sm:$0xff]
        %v392 = vld [vmem:[%s380 + $0x58] sm:$0xff]
        %v393 = vld [vmem:[%s380 + $0x60] sm:$0xff]
        %v394 = vld [vmem:[%s380 + $0x68] sm:$0xff]
        %v395 = vld [vmem:[%s380 + $0x70] sm:$0xff]
        %v396 = vld [vmem:[%s380 + $0x78] sm:$0xff]
        %v397 = vld [vmem:[%s380 + $0x80] sm:$0xff]
        %v398 = vld [vmem:[%s380 + $0x88] sm:$0xff]
        %v399 = vld [vmem:[%s380 + $0x90] sm:$0xff]
        %v400 = vld [vmem:[%s380 + $0x98] sm:$0xff]
        %v401 = vld [vmem:[%s380 + $0xa0] sm:$0xff]
        %v402 = vld [vmem:[%s380 + $0xa8] sm:$0xff]
        %v403 = vld [vmem:[%s380 + $0xb0] sm:$0xff]
        %v404 = vld [vmem:[%s380 + $0xb8] sm:$0xff]
        %v405 = vld [vmem:[%s380 + $0xc0] sm:$0xff]
        %v406 = vld [vmem:[%s380 + $0xc8] sm:$0xff]
        %v407 = vld [vmem:[%s380 + $0xd0] sm:$0xff]
        %v408 = vld [vmem:[%s380 + $0xd8] sm:$0xff]
        %v409 = vld [vmem:[%s380 + $0xe0] sm:$0xff]
        %v410 = vld [vmem:[%s380 + $0xe8] sm:$0xff]
        %v411 = vld [vmem:[%s380 + $0xf0] sm:$0xff]
        %v412 = vld [vmem:[%s380 + $0xf8] sm:$0xff]
        %v413 = vld [vmem:[%s380 + $0x100] sm:$0xff]
        %v414 = vld [vmem:[%s380 + $0x108] sm:$0xff]
        %v415 = vld [vmem:[%s380 + $0x110] sm:$0xff]
        %v416 = vld [vmem:[%s380 + $0x118] sm:$0xff]
        %v417 = vld [vmem:[%s380 + $0x120] sm:$0xff]
        %v418 = vld [vmem:[%s380 + $0x128] sm:$0xff]
        %v419 = vld [vmem:[%s380 + $0x130] sm:$0xff]
        %v420 = vld [vmem:[%s380 + $0x138] sm:$0xff]
        %v421 = vld [vmem:[%s380 + $0x140] sm:$0xff]
        %v422 = vld [vmem:[%s380 + $0x148] sm:$0xff]
        %v423 = vld [vmem:[%s380 + $0x150] sm:$0xff]
        %v424 = vld [vmem:[%s380 + $0x158] sm:$0xff]
        %v425 = vld [vmem:[%s380 + $0x160] sm:$0xff]
        %v426 = vld [vmem:[%s380 + $0x168] sm:$0xff]
        %v427 = vld [vmem:[%s380 + $0x170] sm:$0xff]
        %v428 = vld [vmem:[%s380 + $0x178] sm:$0xff]
        %v429 = vld [vmem:[%s380 + $0x180] sm:$0xff]
        %v430 = vld [vmem:[%s380 + $0x188] sm:$0xff]
        %v431 = vld [vmem:[%s380 + $0x190] sm:$0xff]
        %v432 = vld [vmem:[%s380 + $0x198] sm:$0xff]
        %v433 = vld [vmem:[%s380 + $0x1a0] sm:$0xff]
        %v434 = vld [vmem:[%s380 + $0x1a8] sm:$0xff]
        %v435 = vld [vmem:[%s380 + $0x1b0] sm:$0xff]
        %v436 = vld [vmem:[%s380 + $0x1b8] sm:$0xff]
        %v437 = vld [vmem:[%s380 + $0x1c0] sm:$0xff]
        %v438 = vld [vmem:[%s380 + $0x1c8] sm:$0xff]
        %v439 = vld [vmem:[%s380 + $0x1d0] sm:$0xff]
        %v440 = vld [vmem:[%s380 + $0x1d8] sm:$0xff]
        %v441 = vld [vmem:[%s380 + $0x1e0] sm:$0xff]
        %v442 = vld [vmem:[%s380 + $0x1e8] sm:$0xff]
        %v443 = vld [vmem:[%s380 + $0x1f0] sm:$0xff]
        %v444 = vld [vmem:[%s380 + $0x1f8] sm:$0xff]
        %445 = vmatprep.subr.mxu0 %v382
        %446 = vmatpush1.msra.mxu0 %v381
        %447 = vmatprep.subr.mxu0 %v384
        %448 = vmatpush1.msra.mxu0 %v383
        %449 = vmatprep.subr.mxu0 %v386
        %450 = vmatpush1.msra.mxu0 %v385
        %451 = vmatprep.subr.mxu0 %v388
        %452 = vmatpush1.msra.mxu0 %v387
        %453 = vmatprep.subr.mxu0 %v390
        %454 = vmatpush1.msra.mxu0 %v389
        %455 = vmatprep.subr.mxu0 %v392
        %456 = vmatpush1.msra.mxu0 %v391
        %457 = vmatprep.subr.mxu0 %v394
        %458 = vmatpush1.msra.mxu0 %v393
        %459 = vmatprep.subr.mxu0 %v396
        %460 = vmatpush1.msra.mxu0 %v395
        %461 = vmatprep.subr.mxu0 %v398
        %462 = vmatpush1.msra.mxu0 %v397
        %463 = vmatprep.subr.mxu0 %v400
        %464 = vmatpush1.msra.mxu0 %v399
        %465 = vmatprep.subr.mxu0 %v402
        %466 = vmatpush1.msra.mxu0 %v401
        %467 = vmatprep.subr.mxu0 %v404
        %468 = vmatpush1.msra.mxu0 %v403
        %469 = vmatprep.subr.mxu0 %v406
        %470 = vmatpush1.msra.mxu0 %v405
        %471 = vmatprep.subr.mxu0 %v408
        %472 = vmatpush1.msra.mxu0 %v407
        %473 = vmatprep.subr.mxu0 %v410
        %474 = vmatpush1.msra.mxu0 %v409
        %475 = vmatprep.subr.mxu0 %v412
        %476 = vmatpush1.msra.mxu0 %v411
        %477 = vmatprep.subr.mxu0 %v414
        %478 = vmatpush1.msra.mxu0 %v413
        %479 = vmatprep.subr.mxu0 %v416
        %480 = vmatpush1.msra.mxu0 %v415
        %481 = vmatprep.subr.mxu0 %v418
        %482 = vmatpush1.msra.mxu0 %v417
        %483 = vmatprep.subr.mxu0 %v420
        %484 = vmatpush1.msra.mxu0 %v419
        %485 = vmatprep.subr.mxu0 %v422
        %486 = vmatpush1.msra.mxu0 %v421
        %487 = vmatprep.subr.mxu0 %v424
        %488 = vmatpush1.msra.mxu0 %v423
        %489 = vmatprep.subr.mxu0 %v426
        %490 = vmatpush1.msra.mxu0 %v425
        %491 = vmatprep.subr.mxu0 %v428
        %492 = vmatpush1.msra.mxu0 %v427
        %493 = vmatprep.subr.mxu0 %v430
        %494 = vmatpush1.msra.mxu0 %v429
        %495 = vmatprep.subr.mxu0 %v432
        %496 = vmatpush1.msra.mxu0 %v431
        %497 = vmatprep.subr.mxu0 %v434
        %498 = vmatpush1.msra.mxu0 %v433
        %499 = vmatprep.subr.mxu0 %v436
        %500 = vmatpush1.msra.mxu0 %v435
        %501 = vmatprep.subr.mxu0 %v438
        %502 = vmatpush1.msra.mxu0 %v437
        %503 = vmatprep.subr.mxu0 %v440
        %504 = vmatpush1.msra.mxu0 %v439
        %505 = vmatprep.subr.mxu0 %v442
        %506 = vmatpush1.msra.mxu0 %v441
        %507 = vmatprep.subr.mxu0 %v444
        %508 = vmatpush1.msra.mxu0 %v443
        %509 = vmatprep.mubr.f32.mxu0 %v282
        %510 = vmatmul.mubr.f32.gmra.mrb[0].mxu0 %v281
        %v511 = vpop.f32.mrb[0].mxu0
        %v512 = vadd.f32 0.0, %v511
        %v513 = vpop.f32.mrb[0].mxu0
        %v514 = vadd.f32 0.0, %v513
        %515 = vmatprep.mubr.f32.mxu0 %v284
        %516 = vmatmul.mubr.f32.gmra.mrb[0].mxu0 %v283
        %v517 = vpop.f32.mrb[0].mxu0
        %v518 = vadd.f32 0.0, %v517
        %v519 = vpop.f32.mrb[0].mxu0
        %v520 = vadd.f32 0.0, %v519
        %521 = vdwg.mxu0
        %522 = vmatprep.subr.mxu0 %v317
        %523 = vmatpush1.msra.mxu0 %v316
        %524 = vmatprep.subr.mxu0 %v319
        %525 = vmatpush1.msra.mxu0 %v318
        %526 = vmatprep.subr.mxu0 %v321
        %527 = vmatpush1.msra.mxu0 %v320
        %528 = vmatprep.subr.mxu0 %v323
        %529 = vmatpush1.msra.mxu0 %v322
        %530 = vmatprep.subr.mxu0 %v325
        %531 = vmatpush1.msra.mxu0 %v324
        %532 = vmatprep.subr.mxu0 %v327
        %533 = vmatpush1.msra.mxu0 %v326
        %534 = vmatprep.subr.mxu0 %v329
        %535 = vmatpush1.msra.mxu0 %v328
        %536 = vmatprep.subr.mxu0 %v331
        %537 = vmatpush1.msra.mxu0 %v330
        %538 = vmatprep.subr.mxu0 %v333
        %539 = vmatpush1.msra.mxu0 %v332
        %540 = vmatprep.subr.mxu0 %v335
        %541 = vmatpush1.msra.mxu0 %v334
        %542 = vmatprep.subr.mxu0 %v337
        %543 = vmatpush1.msra.mxu0 %v336
        %544 = vmatprep.subr.mxu0 %v339
        %545 = vmatpush1.msra.mxu0 %v338
        %546 = vmatprep.subr.mxu0 %v341
        %547 = vmatpush1.msra.mxu0 %v340
        %548 = vmatprep.subr.mxu0 %v343
        %549 = vmatpush1.msra.mxu0 %v342
        %550 = vmatprep.subr.mxu0 %v345
        %551 = vmatpush1.msra.mxu0 %v344
        %552 = vmatprep.subr.mxu0 %v347
        %553 = vmatpush1.msra.mxu0 %v346
        %554 = vmatprep.subr.mxu0 %v349
        %555 = vmatpush1.msra.mxu0 %v348
        %556 = vmatprep.subr.mxu0 %v351
        %557 = vmatpush1.msra.mxu0 %v350
        %558 = vmatprep.subr.mxu0 %v353
        %559 = vmatpush1.msra.mxu0 %v352
        %560 = vmatprep.subr.mxu0 %v355
        %561 = vmatpush1.msra.mxu0 %v354
        %562 = vmatprep.subr.mxu0 %v357
        %563 = vmatpush1.msra.mxu0 %v356
        %564 = vmatprep.subr.mxu0 %v359
        %565 = vmatpush1.msra.mxu0 %v358
        %566 = vmatprep.subr.mxu0 %v361
        %567 = vmatpush1.msra.mxu0 %v360
        %568 = vmatprep.subr.mxu0 %v363
        %569 = vmatpush1.msra.mxu0 %v362
        %570 = vmatprep.subr.mxu0 %v365
        %571 = vmatpush1.msra.mxu0 %v364
        %572 = vmatprep.subr.mxu0 %v367
        %573 = vmatpush1.msra.mxu0 %v366
        %574 = vmatprep.subr.mxu0 %v369
        %575 = vmatpush1.msra.mxu0 %v368
        %576 = vmatprep.subr.mxu0 %v371
        %577 = vmatpush1.msra.mxu0 %v370
        %578 = vmatprep.subr.mxu0 %v373
        %579 = vmatpush1.msra.mxu0 %v372
        %580 = vmatprep.subr.mxu0 %v375
        %581 = vmatpush1.msra.mxu0 %v374
        %582 = vmatprep.subr.mxu0 %v377
        %583 = vmatpush1.msra.mxu0 %v376
        %584 = vmatprep.subr.mxu0 %v379
        %585 = vmatpush1.msra.mxu0 %v378
        %586 = vmatprep.mubr.f32.mxu0 %v302
        %587 = vmatmul.mubr.f32.gmra.mrb[0].mxu0 %v301
        %v588 = vpop.f32.mrb[0].mxu0
        %v589 = vadd.f32 %v512, %v588
        %v590 = vpop.f32.mrb[0].mxu0
        %v591 = vadd.f32 %v514, %v590
        %592 = vmatprep.mubr.f32.mxu0 %v296
        %593 = vmatmul.mubr.f32.gmra.mrb[0].mxu0 %v294
        %v594 = vpop.f32.mrb[0].mxu0
        %v595 = vadd.f32 %v518, %v594
        %v596 = vpop.f32.mrb[0].mxu0
        %v597 = vadd.f32 %v520, %v596
        %598 = vdwg.mxu0
        %s599 = scalar_lea.vmem [#allocation3], 1024
        %v600 = vld [vmem:[%s599] sm:$0xff]
        %v601 = vld [vmem:[%s599 + $0x8] sm:$0xff]
        %v602 = vld [vmem:[%s599 + $0x10] sm:$0xff]
        %v603 = vld [vmem:[%s599 + $0x18] sm:$0xff]
        %v604 = vld [vmem:[%s599 + $0x20] sm:$0xff]
        %v605 = vld [vmem:[%s599 + $0x28] sm:$0xff]
        %v606 = vld [vmem:[%s599 + $0x30] sm:$0xff]
        %v607 = vld [vmem:[%s599 + $0x38] sm:$0xff]
        %v608 = vld [vmem:[%s599 + $0x40] sm:$0xff]
        %v609 = vld [vmem:[%s599 + $0x48] sm:$0xff]
        %v610 = vld [vmem:[%s599 + $0x50] sm:$0xff]
        %v611 = vld [vmem:[%s599 + $0x58] sm:$0xff]
        %v612 = vld [vmem:[%s599 + $0x60] sm:$0xff]
        %v613 = vld [vmem:[%s599 + $0x68] sm:$0xff]
        %v614 = vld [vmem:[%s599 + $0x70] sm:$0xff]
        %v615 = vld [vmem:[%s599 + $0x78] sm:$0xff]
        %v616 = vld [vmem:[%s599 + $0x80] sm:$0xff]
        %v617 = vld [vmem:[%s599 + $0x88] sm:$0xff]
        %v618 = vld [vmem:[%s599 + $0x90] sm:$0xff]
        %v619 = vld [vmem:[%s599 + $0x98] sm:$0xff]
        %v620 = vld [vmem:[%s599 + $0xa0] sm:$0xff]
        %v621 = vld [vmem:[%s599 + $0xa8] sm:$0xff]
        %v622 = vld [vmem:[%s599 + $0xb0] sm:$0xff]
        %v623 = vld [vmem:[%s599 + $0xb8] sm:$0xff]
        %v624 = vld [vmem:[%s599 + $0xc0] sm:$0xff]
        %v625 = vld [vmem:[%s599 + $0xc8] sm:$0xff]
        %v626 = vld [vmem:[%s599 + $0xd0] sm:$0xff]
        %v627 = vld [vmem:[%s599 + $0xd8] sm:$0xff]
        %v628 = vld [vmem:[%s599 + $0xe0] sm:$0xff]
        %v629 = vld [vmem:[%s599 + $0xe8] sm:$0xff]
        %v630 = vld [vmem:[%s599 + $0xf0] sm:$0xff]
        %v631 = vld [vmem:[%s599 + $0xf8] sm:$0xff]
        %v632 = vld [vmem:[%s599 + $0x100] sm:$0xff]
        %v633 = vld [vmem:[%s599 + $0x108] sm:$0xff]
        %v634 = vld [vmem:[%s599 + $0x110] sm:$0xff]
        %v635 = vld [vmem:[%s599 + $0x118] sm:$0xff]
        %v636 = vld [vmem:[%s599 + $0x120] sm:$0xff]
        %v637 = vld [vmem:[%s599 + $0x128] sm:$0xff]
        %v638 = vld [vmem:[%s599 + $0x130] sm:$0xff]
        %v639 = vld [vmem:[%s599 + $0x138] sm:$0xff]
        %v640 = vld [vmem:[%s599 + $0x140] sm:$0xff]
        %v641 = vld [vmem:[%s599 + $0x148] sm:$0xff]
        %v642 = vld [vmem:[%s599 + $0x150] sm:$0xff]
        %v643 = vld [vmem:[%s599 + $0x158] sm:$0xff]
        %v644 = vld [vmem:[%s599 + $0x160] sm:$0xff]
        %v645 = vld [vmem:[%s599 + $0x168] sm:$0xff]
        %v646 = vld [vmem:[%s599 + $0x170] sm:$0xff]
        %v647 = vld [vmem:[%s599 + $0x178] sm:$0xff]
        %v648 = vld [vmem:[%s599 + $0x180] sm:$0xff]
        %v649 = vld [vmem:[%s599 + $0x188] sm:$0xff]
        %v650 = vld [vmem:[%s599 + $0x190] sm:$0xff]
        %v651 = vld [vmem:[%s599 + $0x198] sm:$0xff]
        %v652 = vld [vmem:[%s599 + $0x1a0] sm:$0xff]
        %v653 = vld [vmem:[%s599 + $0x1a8] sm:$0xff]
        %v654 = vld [vmem:[%s599 + $0x1b0] sm:$0xff]
        %v655 = vld [vmem:[%s599 + $0x1b8] sm:$0xff]
        %v656 = vld [vmem:[%s599 + $0x1c0] sm:$0xff]
        %v657 = vld [vmem:[%s599 + $0x1c8] sm:$0xff]
        %v658 = vld [vmem:[%s599 + $0x1d0] sm:$0xff]
        %v659 = vld [vmem:[%s599 + $0x1d8] sm:$0xff]
        %v660 = vld [vmem:[%s599 + $0x1e0] sm:$0xff]
        %v661 = vld [vmem:[%s599 + $0x1e8] sm:$0xff]
        %v662 = vld [vmem:[%s599 + $0x1f0] sm:$0xff]
        %v663 = vld [vmem:[%s599 + $0x1f8] sm:$0xff]
        %664 = vmatprep.subr.mxu0 %v601
        %665 = vmatpush1.msra.mxu0 %v600
        %666 = vmatprep.subr.mxu0 %v603
        %667 = vmatpush1.msra.mxu0 %v602
        %668 = vmatprep.subr.mxu0 %v605
        %669 = vmatpush1.msra.mxu0 %v604
        %670 = vmatprep.subr.mxu0 %v607
        %671 = vmatpush1.msra.mxu0 %v606
        %672 = vmatprep.subr.mxu0 %v609
        %673 = vmatpush1.msra.mxu0 %v608
        %674 = vmatprep.subr.mxu0 %v611
        %675 = vmatpush1.msra.mxu0 %v610
        %676 = vmatprep.subr.mxu0 %v613
        %677 = vmatpush1.msra.mxu0 %v612
        %678 = vmatprep.subr.mxu0 %v615
        %679 = vmatpush1.msra.mxu0 %v614
        %680 = vmatprep.subr.mxu0 %v617
        %681 = vmatpush1.msra.mxu0 %v616
        %682 = vmatprep.subr.mxu0 %v619
        %683 = vmatpush1.msra.mxu0 %v618
        %684 = vmatprep.subr.mxu0 %v621
        %685 = vmatpush1.msra.mxu0 %v620
        %686 = vmatprep.subr.mxu0 %v623
        %687 = vmatpush1.msra.mxu0 %v622
        %688 = vmatprep.subr.mxu0 %v625
        %689 = vmatpush1.msra.mxu0 %v624
        %690 = vmatprep.subr.mxu0 %v627
        %691 = vmatpush1.msra.mxu0 %v626
        %692 = vmatprep.subr.mxu0 %v629
        %693 = vmatpush1.msra.mxu0 %v628
        %694 = vmatprep.subr.mxu0 %v631
        %695 = vmatpush1.msra.mxu0 %v630
        %696 = vmatprep.subr.mxu0 %v633
        %697 = vmatpush1.msra.mxu0 %v632
        %698 = vmatprep.subr.mxu0 %v635
        %699 = vmatpush1.msra.mxu0 %v634
        %700 = vmatprep.subr.mxu0 %v637
        %701 = vmatpush1.msra.mxu0 %v636
        %702 = vmatprep.subr.mxu0 %v639
        %703 = vmatpush1.msra.mxu0 %v638
        %704 = vmatprep.subr.mxu0 %v641
        %705 = vmatpush1.msra.mxu0 %v640
        %706 = vmatprep.subr.mxu0 %v643
        %707 = vmatpush1.msra.mxu0 %v642
        %708 = vmatprep.subr.mxu0 %v645
        %709 = vmatpush1.msra.mxu0 %v644
        %710 = vmatprep.subr.mxu0 %v647
        %711 = vmatpush1.msra.mxu0 %v646
        %712 = vmatprep.subr.mxu0 %v649
        %713 = vmatpush1.msra.mxu0 %v648
        %714 = vmatprep.subr.mxu0 %v651
        %715 = vmatpush1.msra.mxu0 %v650
        %716 = vmatprep.subr.mxu0 %v653
        %717 = vmatpush1.msra.mxu0 %v652
        %718 = vmatprep.subr.mxu0 %v655
        %719 = vmatpush1.msra.mxu0 %v654
        %720 = vmatprep.subr.mxu0 %v657
        %721 = vmatpush1.msra.mxu0 %v656
        %722 = vmatprep.subr.mxu0 %v659
        %723 = vmatpush1.msra.mxu0 %v658
        %724 = vmatprep.subr.mxu0 %v661
        %725 = vmatpush1.msra.mxu0 %v660
        %726 = vmatprep.subr.mxu0 %v663
        %727 = vmatpush1.msra.mxu0 %v662
        %728 = vmatprep.mubr.f32.mxu0 %v309
        %729 = vmatmul.mubr.f32.gmra.mrb[0].mxu0 %v306
        %v730 = vpop.f32.mrb[0].mxu0
        %v731 = vadd.f32 0.0, %v730
        %v732 = vpop.f32.mrb[0].mxu0
        %v733 = vadd.f32 0.0, %v732
        %734 = vmatprep.mubr.f32.mxu0 %v315
        %735 = vmatmul.mubr.f32.gmra.mrb[0].mxu0 %v314
        %v736 = vpop.f32.mrb[0].mxu0
        %v737 = vadd.f32 0.0, %v736
        %v738 = vpop.f32.mrb[0].mxu0
        %v739 = vadd.f32 0.0, %v738
        %740 = vdwg.mxu0
        %v741 = vadd.f32 %v589, %v731
        %v742 = vadd.f32 %v591, %v733
        %v743 = vadd.f32 %v595, %v737
        %v744 = vadd.f32 %v597, %v739
        %vm745 = vcmp.gt.f32.partialorder %v741, 0.0
        %vm746 = vcmp.gt.f32.partialorder %v742, 0.0
        %vm747 = vcmp.gt.f32.partialorder %v743, 0.0
        %vm748 = vcmp.gt.f32.partialorder %v744, 0.0
        %v749 = vstv %s285
        %v750 = vmul.f32 %v749, %v741
        %v751 = vmul.f32 %v749, %v742
        %v752 = vmul.f32 %v749, %v743
        %v753 = vmul.f32 %v749, %v744
        %v754 = vsel %vm745, %v741, %v750
        %v755 = vsel %vm746, %v742, %v751
        %v756 = vsel %vm747, %v743, %v752
        %v757 = vsel %vm748, %v744, %v753
        %v762 = vrot.slane %v754, 7
        %v763 = vrot.slane %v755, 7
        %v764 = vrot.slane %v756, 7
        %v765 = vsel %vm290, %v762, %v764
        %v766 = vrot.slane %v757, 7
        %v767 = vsel %vm290, %v763, %v766
        %v772 = vsel %vm290, 0.0, %v762
        %v773 = vsel %vm290, 0.0, %v763
        %v774 = vrot.slane %v754, 1
        %v775 = vrot.slane %v756, 1
        %v776 = vsel %vm303, %v774, %v775
        %v777 = vrot.slane %v755, 1
        %v778 = vrot.slane %v757, 1
        %v779 = vsel %vm303, %v777, %v778
        %v784 = vsel %vm303, %v775, 0.0
        %v785 = vsel %vm303, %v778, 0.0
        %v786 = vld [vmem:[#allocation6] sm:$0xff]
        %v787 = vld [vmem:[#allocation6 + $0x8] sm:$0xff]
        %v788 = vld [vmem:[#allocation6 + $0x10] sm:$0xff]
        %v789 = vld [vmem:[#allocation6 + $0x18] sm:$0xff]
        %v790 = vld [vmem:[#allocation6 + $0x20] sm:$0xff]
        %v791 = vld [vmem:[#allocation6 + $0x28] sm:$0xff]
        %v792 = vld [vmem:[#allocation6 + $0x30] sm:$0xff]
        %v793 = vld [vmem:[#allocation6 + $0x38] sm:$0xff]
        %v794 = vld [vmem:[#allocation6 + $0x40] sm:$0xff]
        %v795 = vld [vmem:[#allocation6 + $0x48] sm:$0xff]
        %v796 = vld [vmem:[#allocation6 + $0x50] sm:$0xff]
        %v797 = vld [vmem:[#allocation6 + $0x58] sm:$0xff]
        %v798 = vld [vmem:[#allocation6 + $0x60] sm:$0xff]
        %v799 = vld [vmem:[#allocation6 + $0x68] sm:$0xff]
        %v800 = vld [vmem:[#allocation6 + $0x70] sm:$0xff]
        %v801 = vld [vmem:[#allocation6 + $0x78] sm:$0xff]
        %v802 = vld [vmem:[#allocation6 + $0x80] sm:$0xff]
        %v803 = vld [vmem:[#allocation6 + $0x88] sm:$0xff]
        %v804 = vld [vmem:[#allocation6 + $0x90] sm:$0xff]
        %v805 = vld [vmem:[#allocation6 + $0x98] sm:$0xff]
        %v806 = vld [vmem:[#allocation6 + $0xa0] sm:$0xff]
        %v807 = vld [vmem:[#allocation6 + $0xa8] sm:$0xff]
        %v808 = vld [vmem:[#allocation6 + $0xb0] sm:$0xff]
        %v809 = vld [vmem:[#allocation6 + $0xb8] sm:$0xff]
        %v810 = vld [vmem:[#allocation6 + $0xc0] sm:$0xff]
        %v811 = vld [vmem:[#allocation6 + $0xc8] sm:$0xff]
        %v812 = vld [vmem:[#allocation6 + $0xd0] sm:$0xff]
        %v813 = vld [vmem:[#allocation6 + $0xd8] sm:$0xff]
        %v814 = vld [vmem:[#allocation6 + $0xe0] sm:$0xff]
        %v815 = vld [vmem:[#allocation6 + $0xe8] sm:$0xff]
        %v816 = vld [vmem:[#allocation6 + $0xf0] sm:$0xff]
        %v817 = vld [vmem:[#allocation6 + $0xf8] sm:$0xff]
        %v818 = vld [vmem:[#allocation6 + $0x100] sm:$0xff]
        %v819 = vld [vmem:[#allocation6 + $0x108] sm:$0xff]
        %v820 = vld [vmem:[#allocation6 + $0x110] sm:$0xff]
        %v821 = vld [vmem:[#allocation6 + $0x118] sm:$0xff]
        %v822 = vld [vmem:[#allocation6 + $0x120] sm:$0xff]
        %v823 = vld [vmem:[#allocation6 + $0x128] sm:$0xff]
        %v824 = vld [vmem:[#allocation6 + $0x130] sm:$0xff]
        %v825 = vld [vmem:[#allocation6 + $0x138] sm:$0xff]
        %v826 = vld [vmem:[#allocation6 + $0x140] sm:$0xff]
        %v827 = vld [vmem:[#allocation6 + $0x148] sm:$0xff]
        %v828 = vld [vmem:[#allocation6 + $0x150] sm:$0xff]
        %v829 = vld [vmem:[#allocation6 + $0x158] sm:$0xff]
        %v830 = vld [vmem:[#allocation6 + $0x160] sm:$0xff]
        %v831 = vld [vmem:[#allocation6 + $0x168] sm:$0xff]
        %v832 = vld [vmem:[#allocation6 + $0x170] sm:$0xff]
        %v833 = vld [vmem:[#allocation6 + $0x178] sm:$0xff]
        %v834 = vld [vmem:[#allocation6 + $0x180] sm:$0xff]
        %v835 = vld [vmem:[#allocation6 + $0x188] sm:$0xff]
        %v836 = vld [vmem:[#allocation6 + $0x190] sm:$0xff]
        %v837 = vld [vmem:[#allocation6 + $0x198] sm:$0xff]
        %v838 = vld [vmem:[#allocation6 + $0x1a0] sm:$0xff]
        %v839 = vld [vmem:[#allocation6 + $0x1a8] sm:$0xff]
        %v840 = vld [vmem:[#allocation6 + $0x1b0] sm:$0xff]
        %v841 = vld [vmem:[#allocation6 + $0x1b8] sm:$0xff]
        %v842 = vld [vmem:[#allocation6 + $0x1c0] sm:$0xff]
        %v843 = vld [vmem:[#allocation6 + $0x1c8] sm:$0xff]
        %v844 = vld [vmem:[#allocation6 + $0x1d0] sm:$0xff]
        %v845 = vld [vmem:[#allocation6 + $0x1d8] sm:$0xff]
        %v846 = vld [vmem:[#allocation6 + $0x1e0] sm:$0xff]
        %v847 = vld [vmem:[#allocation6 + $0x1e8] sm:$0xff]
        %v848 = vld [vmem:[#allocation6 + $0x1f0] sm:$0xff]
        %v849 = vld [vmem:[#allocation6 + $0x1f8] sm:$0xff]
        %s850 = scalar_lea.vmem [#allocation6], 512
        %v851 = vld [vmem:[%s850] sm:$0xff]
        %v852 = vld [vmem:[%s850 + $0x8] sm:$0xff]
        %v853 = vld [vmem:[%s850 + $0x10] sm:$0xff]
        %v854 = vld [vmem:[%s850 + $0x18] sm:$0xff]
        %v855 = vld [vmem:[%s850 + $0x20] sm:$0xff]
        %v856 = vld [vmem:[%s850 + $0x28] sm:$0xff]
        %v857 = vld [vmem:[%s850 + $0x30] sm:$0xff]
        %v858 = vld [vmem:[%s850 + $0x38] sm:$0xff]
        %v859 = vld [vmem:[%s850 + $0x40] sm:$0xff]
        %v860 = vld [vmem:[%s850 + $0x48] sm:$0xff]
        %v861 = vld [vmem:[%s850 + $0x50] sm:$0xff]
        %v862 = vld [vmem:[%s850 + $0x58] sm:$0xff]
        %v863 = vld [vmem:[%s850 + $0x60] sm:$0xff]
        %v864 = vld [vmem:[%s850 + $0x68] sm:$0xff]
        %v865 = vld [vmem:[%s850 + $0x70] sm:$0xff]
        %v866 = vld [vmem:[%s850 + $0x78] sm:$0xff]
        %v867 = vld [vmem:[%s850 + $0x80] sm:$0xff]
        %v868 = vld [vmem:[%s850 + $0x88] sm:$0xff]
        %v869 = vld [vmem:[%s850 + $0x90] sm:$0xff]
        %v870 = vld [vmem:[%s850 + $0x98] sm:$0xff]
        %v871 = vld [vmem:[%s850 + $0xa0] sm:$0xff]
        %v872 = vld [vmem:[%s850 + $0xa8] sm:$0xff]
        %v873 = vld [vmem:[%s850 + $0xb0] sm:$0xff]
        %v874 = vld [vmem:[%s850 + $0xb8] sm:$0xff]
        %v875 = vld [vmem:[%s850 + $0xc0] sm:$0xff]
        %v876 = vld [vmem:[%s850 + $0xc8] sm:$0xff]
        %v877 = vld [vmem:[%s850 + $0xd0] sm:$0xff]
        %v878 = vld [vmem:[%s850 + $0xd8] sm:$0xff]
        %v879 = vld [vmem:[%s850 + $0xe0] sm:$0xff]
        %v880 = vld [vmem:[%s850 + $0xe8] sm:$0xff]
        %v881 = vld [vmem:[%s850 + $0xf0] sm:$0xff]
        %v882 = vld [vmem:[%s850 + $0xf8] sm:$0xff]
        %v883 = vld [vmem:[%s850 + $0x100] sm:$0xff]
        %v884 = vld [vmem:[%s850 + $0x108] sm:$0xff]
        %v885 = vld [vmem:[%s850 + $0x110] sm:$0xff]
        %v886 = vld [vmem:[%s850 + $0x118] sm:$0xff]
        %v887 = vld [vmem:[%s850 + $0x120] sm:$0xff]
        %v888 = vld [vmem:[%s850 + $0x128] sm:$0xff]
        %v889 = vld [vmem:[%s850 + $0x130] sm:$0xff]
        %v890 = vld [vmem:[%s850 + $0x138] sm:$0xff]
        %v891 = vld [vmem:[%s850 + $0x140] sm:$0xff]
        %v892 = vld [vmem:[%s850 + $0x148] sm:$0xff]
        %v893 = vld [vmem:[%s850 + $0x150] sm:$0xff]
        %v894 = vld [vmem:[%s850 + $0x158] sm:$0xff]
        %v895 = vld [vmem:[%s850 + $0x160] sm:$0xff]
        %v896 = vld [vmem:[%s850 + $0x168] sm:$0xff]
        %v897 = vld [vmem:[%s850 + $0x170] sm:$0xff]
        %v898 = vld [vmem:[%s850 + $0x178] sm:$0xff]
        %v899 = vld [vmem:[%s850 + $0x180] sm:$0xff]
        %v900 = vld [vmem:[%s850 + $0x188] sm:$0xff]
        %v901 = vld [vmem:[%s850 + $0x190] sm:$0xff]
        %v902 = vld [vmem:[%s850 + $0x198] sm:$0xff]
        %v903 = vld [vmem:[%s850 + $0x1a0] sm:$0xff]
        %v904 = vld [vmem:[%s850 + $0x1a8] sm:$0xff]
        %v905 = vld [vmem:[%s850 + $0x1b0] sm:$0xff]
        %v906 = vld [vmem:[%s850 + $0x1b8] sm:$0xff]
        %v907 = vld [vmem:[%s850 + $0x1c0] sm:$0xff]
        %v908 = vld [vmem:[%s850 + $0x1c8] sm:$0xff]
        %v909 = vld [vmem:[%s850 + $0x1d0] sm:$0xff]
        %v910 = vld [vmem:[%s850 + $0x1d8] sm:$0xff]
        %v911 = vld [vmem:[%s850 + $0x1e0] sm:$0xff]
        %v912 = vld [vmem:[%s850 + $0x1e8] sm:$0xff]
        %v913 = vld [vmem:[%s850 + $0x1f0] sm:$0xff]
        %v914 = vld [vmem:[%s850 + $0x1f8] sm:$0xff]
        %915 = vmatprep.subr.mxu0 %v852
        %916 = vmatpush1.msra.mxu0 %v851
        %917 = vmatprep.subr.mxu0 %v854
        %918 = vmatpush1.msra.mxu0 %v853
        %919 = vmatprep.subr.mxu0 %v856
        %920 = vmatpush1.msra.mxu0 %v855
        %921 = vmatprep.subr.mxu0 %v858
        %922 = vmatpush1.msra.mxu0 %v857
        %923 = vmatprep.subr.mxu0 %v860
        %924 = vmatpush1.msra.mxu0 %v859
        %925 = vmatprep.subr.mxu0 %v862
        %926 = vmatpush1.msra.mxu0 %v861
        %927 = vmatprep.subr.mxu0 %v864
        %928 = vmatpush1.msra.mxu0 %v863
        %929 = vmatprep.subr.mxu0 %v866
        %930 = vmatpush1.msra.mxu0 %v865
        %931 = vmatprep.subr.mxu0 %v868
        %932 = vmatpush1.msra.mxu0 %v867
        %933 = vmatprep.subr.mxu0 %v870
        %934 = vmatpush1.msra.mxu0 %v869
        %935 = vmatprep.subr.mxu0 %v872
        %936 = vmatpush1.msra.mxu0 %v871
        %937 = vmatprep.subr.mxu0 %v874
        %938 = vmatpush1.msra.mxu0 %v873
        %939 = vmatprep.subr.mxu0 %v876
        %940 = vmatpush1.msra.mxu0 %v875
        %941 = vmatprep.subr.mxu0 %v878
        %942 = vmatpush1.msra.mxu0 %v877
        %943 = vmatprep.subr.mxu0 %v880
        %944 = vmatpush1.msra.mxu0 %v879
        %945 = vmatprep.subr.mxu0 %v882
        %946 = vmatpush1.msra.mxu0 %v881
        %947 = vmatprep.subr.mxu0 %v884
        %948 = vmatpush1.msra.mxu0 %v883
        %949 = vmatprep.subr.mxu0 %v886
        %950 = vmatpush1.msra.mxu0 %v885
        %951 = vmatprep.subr.mxu0 %v888
        %952 = vmatpush1.msra.mxu0 %v887
        %953 = vmatprep.subr.mxu0 %v890
        %954 = vmatpush1.msra.mxu0 %v889
        %955 = vmatprep.subr.mxu0 %v892
        %956 = vmatpush1.msra.mxu0 %v891
        %957 = vmatprep.subr.mxu0 %v894
        %958 = vmatpush1.msra.mxu0 %v893
        %959 = vmatprep.subr.mxu0 %v896
        %960 = vmatpush1.msra.mxu0 %v895
        %961 = vmatprep.subr.mxu0 %v898
        %962 = vmatpush1.msra.mxu0 %v897
        %963 = vmatprep.subr.mxu0 %v900
        %964 = vmatpush1.msra.mxu0 %v899
        %965 = vmatprep.subr.mxu0 %v902
        %966 = vmatpush1.msra.mxu0 %v901
        %967 = vmatprep.subr.mxu0 %v904
        %968 = vmatpush1.msra.mxu0 %v903
        %969 = vmatprep.subr.mxu0 %v906
        %970 = vmatpush1.msra.mxu0 %v905
        %971 = vmatprep.subr.mxu0 %v908
        %972 = vmatpush1.msra.mxu0 %v907
        %973 = vmatprep.subr.mxu0 %v910
        %974 = vmatpush1.msra.mxu0 %v909
        %975 = vmatprep.subr.mxu0 %v912
        %976 = vmatpush1.msra.mxu0 %v911
        %977 = vmatprep.subr.mxu0 %v914
        %978 = vmatpush1.msra.mxu0 %v913
        %979 = vmatprep.mubr.f32.mxu0 %v755
        %980 = vmatmul.mubr.f32.gmra.mrb[0].mxu0 %v754
        %v981 = vpop.f32.mrb[0].mxu0
        %v982 = vadd.f32 0.0, %v981
        %v983 = vpop.f32.mrb[0].mxu0
        %v984 = vadd.f32 0.0, %v983
        %985 = vmatprep.mubr.f32.mxu0 %v757
        %986 = vmatmul.mubr.f32.gmra.mrb[0].mxu0 %v756
        %v987 = vpop.f32.mrb[0].mxu0
        %v988 = vadd.f32 0.0, %v987
        %v989 = vpop.f32.mrb[0].mxu0
        %v990 = vadd.f32 0.0, %v989
        %991 = vdwg.mxu0
        %992 = vmatprep.subr.mxu0 %v787
        %993 = vmatpush1.msra.mxu0 %v786
        %994 = vmatprep.subr.mxu0 %v789
        %995 = vmatpush1.msra.mxu0 %v788
        %996 = vmatprep.subr.mxu0 %v791
        %997 = vmatpush1.msra.mxu0 %v790
        %998 = vmatprep.subr.mxu0 %v793
        %999 = vmatpush1.msra.mxu0 %v792
        %1000 = vmatprep.subr.mxu0 %v795
        %1001 = vmatpush1.msra.mxu0 %v794
        %1002 = vmatprep.subr.mxu0 %v797
        %1003 = vmatpush1.msra.mxu0 %v796
        %1004 = vmatprep.subr.mxu0 %v799
        %1005 = vmatpush1.msra.mxu0 %v798
        %1006 = vmatprep.subr.mxu0 %v801
        %1007 = vmatpush1.msra.mxu0 %v800
        %1008 = vmatprep.subr.mxu0 %v803
        %1009 = vmatpush1.msra.mxu0 %v802
        %1010 = vmatprep.subr.mxu0 %v805
        %1011 = vmatpush1.msra.mxu0 %v804
        %1012 = vmatprep.subr.mxu0 %v807
        %1013 = vmatpush1.msra.mxu0 %v806
        %1014 = vmatprep.subr.mxu0 %v809
        %1015 = vmatpush1.msra.mxu0 %v808
        %1016 = vmatprep.subr.mxu0 %v811
        %1017 = vmatpush1.msra.mxu0 %v810
        %1018 = vmatprep.subr.mxu0 %v813
        %1019 = vmatpush1.msra.mxu0 %v812
        %1020 = vmatprep.subr.mxu0 %v815
        %1021 = vmatpush1.msra.mxu0 %v814
        %1022 = vmatprep.subr.mxu0 %v817
        %1023 = vmatpush1.msra.mxu0 %v816
        %1024 = vmatprep.subr.mxu0 %v819
        %1025 = vmatpush1.msra.mxu0 %v818
        %1026 = vmatprep.subr.mxu0 %v821
        %1027 = vmatpush1.msra.mxu0 %v820
        %1028 = vmatprep.subr.mxu0 %v823
        %1029 = vmatpush1.msra.mxu0 %v822
        %1030 = vmatprep.subr.mxu0 %v825
        %1031 = vmatpush1.msra.mxu0 %v824
        %1032 = vmatprep.subr.mxu0 %v827
        %1033 = vmatpush1.msra.mxu0 %v826
        %1034 = vmatprep.subr.mxu0 %v829
        %1035 = vmatpush1.msra.mxu0 %v828
        %1036 = vmatprep.subr.mxu0 %v831
        %1037 = vmatpush1.msra.mxu0 %v830
        %1038 = vmatprep.subr.mxu0 %v833
        %1039 = vmatpush1.msra.mxu0 %v832
        %1040 = vmatprep.subr.mxu0 %v835
        %1041 = vmatpush1.msra.mxu0 %v834
        %1042 = vmatprep.subr.mxu0 %v837
        %1043 = vmatpush1.msra.mxu0 %v836
        %1044 = vmatprep.subr.mxu0 %v839
        %1045 = vmatpush1.msra.mxu0 %v838
        %1046 = vmatprep.subr.mxu0 %v841
        %1047 = vmatpush1.msra.mxu0 %v840
        %1048 = vmatprep.subr.mxu0 %v843
        %1049 = vmatpush1.msra.mxu0 %v842
        %1050 = vmatprep.subr.mxu0 %v845
        %1051 = vmatpush1.msra.mxu0 %v844
        %1052 = vmatprep.subr.mxu0 %v847
        %1053 = vmatpush1.msra.mxu0 %v846
        %1054 = vmatprep.subr.mxu0 %v849
        %1055 = vmatpush1.msra.mxu0 %v848
        %1056 = vmatprep.mubr.f32.mxu0 %v773
        %1057 = vmatmul.mubr.f32.gmra.mrb[0].mxu0 %v772
        %v1058 = vpop.f32.mrb[0].mxu0
        %v1059 = vadd.f32 %v982, %v1058
        %v1060 = vpop.f32.mrb[0].mxu0
        %v1061 = vadd.f32 %v984, %v1060
        %1062 = vmatprep.mubr.f32.mxu0 %v767
        %1063 = vmatmul.mubr.f32.gmra.mrb[0].mxu0 %v765
        %v1064 = vpop.f32.mrb[0].mxu0
        %v1065 = vadd.f32 %v988, %v1064
        %v1066 = vpop.f32.mrb[0].mxu0
        %v1067 = vadd.f32 %v990, %v1066
        %1068 = vdwg.mxu0
        %s1069 = scalar_lea.vmem [#allocation6], 1024
        %v1070 = vld [vmem:[%s1069] sm:$0xff]
        %v1071 = vld [vmem:[%s1069 + $0x8] sm:$0xff]
        %v1072 = vld [vmem:[%s1069 + $0x10] sm:$0xff]
        %v1073 = vld [vmem:[%s1069 + $0x18] sm:$0xff]
        %v1074 = vld [vmem:[%s1069 + $0x20] sm:$0xff]
        %v1075 = vld [vmem:[%s1069 + $0x28] sm:$0xff]
        %v1076 = vld [vmem:[%s1069 + $0x30] sm:$0xff]
        %v1077 = vld [vmem:[%s1069 + $0x38] sm:$0xff]
        %v1078 = vld [vmem:[%s1069 + $0x40] sm:$0xff]
        %v1079 = vld [vmem:[%s1069 + $0x48] sm:$0xff]
        %v1080 = vld [vmem:[%s1069 + $0x50] sm:$0xff]
        %v1081 = vld [vmem:[%s1069 + $0x58] sm:$0xff]
        %v1082 = vld [vmem:[%s1069 + $0x60] sm:$0xff]
        %v1083 = vld [vmem:[%s1069 + $0x68] sm:$0xff]
        %v1084 = vld [vmem:[%s1069 + $0x70] sm:$0xff]
        %v1085 = vld [vmem:[%s1069 + $0x78] sm:$0xff]
        %v1086 = vld [vmem:[%s1069 + $0x80] sm:$0xff]
        %v1087 = vld [vmem:[%s1069 + $0x88] sm:$0xff]
        %v1088 = vld [vmem:[%s1069 + $0x90] sm:$0xff]
        %v1089 = vld [vmem:[%s1069 + $0x98] sm:$0xff]
        %v1090 = vld [vmem:[%s1069 + $0xa0] sm:$0xff]
        %v1091 = vld [vmem:[%s1069 + $0xa8] sm:$0xff]
        %v1092 = vld [vmem:[%s1069 + $0xb0] sm:$0xff]
        %v1093 = vld [vmem:[%s1069 + $0xb8] sm:$0xff]
        %v1094 = vld [vmem:[%s1069 + $0xc0] sm:$0xff]
        %v1095 = vld [vmem:[%s1069 + $0xc8] sm:$0xff]
        %v1096 = vld [vmem:[%s1069 + $0xd0] sm:$0xff]
        %v1097 = vld [vmem:[%s1069 + $0xd8] sm:$0xff]
        %v1098 = vld [vmem:[%s1069 + $0xe0] sm:$0xff]
        %v1099 = vld [vmem:[%s1069 + $0xe8] sm:$0xff]
        %v1100 = vld [vmem:[%s1069 + $0xf0] sm:$0xff]
        %v1101 = vld [vmem:[%s1069 + $0xf8] sm:$0xff]
        %v1102 = vld [vmem:[%s1069 + $0x100] sm:$0xff]
        %v1103 = vld [vmem:[%s1069 + $0x108] sm:$0xff]
        %v1104 = vld [vmem:[%s1069 + $0x110] sm:$0xff]
        %v1105 = vld [vmem:[%s1069 + $0x118] sm:$0xff]
        %v1106 = vld [vmem:[%s1069 + $0x120] sm:$0xff]
        %v1107 = vld [vmem:[%s1069 + $0x128] sm:$0xff]
        %v1108 = vld [vmem:[%s1069 + $0x130] sm:$0xff]
        %v1109 = vld [vmem:[%s1069 + $0x138] sm:$0xff]
        %v1110 = vld [vmem:[%s1069 + $0x140] sm:$0xff]
        %v1111 = vld [vmem:[%s1069 + $0x148] sm:$0xff]
        %v1112 = vld [vmem:[%s1069 + $0x150] sm:$0xff]
        %v1113 = vld [vmem:[%s1069 + $0x158] sm:$0xff]
        %v1114 = vld [vmem:[%s1069 + $0x160] sm:$0xff]
        %v1115 = vld [vmem:[%s1069 + $0x168] sm:$0xff]
        %v1116 = vld [vmem:[%s1069 + $0x170] sm:$0xff]
        %v1117 = vld [vmem:[%s1069 + $0x178] sm:$0xff]
        %v1118 = vld [vmem:[%s1069 + $0x180] sm:$0xff]
        %v1119 = vld [vmem:[%s1069 + $0x188] sm:$0xff]
        %v1120 = vld [vmem:[%s1069 + $0x190] sm:$0xff]
        %v1121 = vld [vmem:[%s1069 + $0x198] sm:$0xff]
        %v1122 = vld [vmem:[%s1069 + $0x1a0] sm:$0xff]
        %v1123 = vld [vmem:[%s1069 + $0x1a8] sm:$0xff]
        %v1124 = vld [vmem:[%s1069 + $0x1b0] sm:$0xff]
        %v1125 = vld [vmem:[%s1069 + $0x1b8] sm:$0xff]
        %v1126 = vld [vmem:[%s1069 + $0x1c0] sm:$0xff]
        %v1127 = vld [vmem:[%s1069 + $0x1c8] sm:$0xff]
        %v1128 = vld [vmem:[%s1069 + $0x1d0] sm:$0xff]
        %v1129 = vld [vmem:[%s1069 + $0x1d8] sm:$0xff]
        %v1130 = vld [vmem:[%s1069 + $0x1e0] sm:$0xff]
        %v1131 = vld [vmem:[%s1069 + $0x1e8] sm:$0xff]
        %v1132 = vld [vmem:[%s1069 + $0x1f0] sm:$0xff]
        %v1133 = vld [vmem:[%s1069 + $0x1f8] sm:$0xff]
        %1134 = vmatprep.subr.mxu0 %v1071
        %1135 = vmatpush1.msra.mxu0 %v1070
        %1136 = vmatprep.subr.mxu0 %v1073
        %1137 = vmatpush1.msra.mxu0 %v1072
        %1138 = vmatprep.subr.mxu0 %v1075
        %1139 = vmatpush1.msra.mxu0 %v1074
        %1140 = vmatprep.subr.mxu0 %v1077
        %1141 = vmatpush1.msra.mxu0 %v1076
        %1142 = vmatprep.subr.mxu0 %v1079
        %1143 = vmatpush1.msra.mxu0 %v1078
        %1144 = vmatprep.subr.mxu0 %v1081
        %1145 = vmatpush1.msra.mxu0 %v1080
        %1146 = vmatprep.subr.mxu0 %v1083
        %1147 = vmatpush1.msra.mxu0 %v1082
        %1148 = vmatprep.subr.mxu0 %v1085
        %1149 = vmatpush1.msra.mxu0 %v1084
        %1150 = vmatprep.subr.mxu0 %v1087
        %1151 = vmatpush1.msra.mxu0 %v1086
        %1152 = vmatprep.subr.mxu0 %v1089
        %1153 = vmatpush1.msra.mxu0 %v1088
        %1154 = vmatprep.subr.mxu0 %v1091
        %1155 = vmatpush1.msra.mxu0 %v1090
        %1156 = vmatprep.subr.mxu0 %v1093
        %1157 = vmatpush1.msra.mxu0 %v1092
        %1158 = vmatprep.subr.mxu0 %v1095
        %1159 = vmatpush1.msra.mxu0 %v1094
        %1160 = vmatprep.subr.mxu0 %v1097
        %1161 = vmatpush1.msra.mxu0 %v1096
        %1162 = vmatprep.subr.mxu0 %v1099
        %1163 = vmatpush1.msra.mxu0 %v1098
        %1164 = vmatprep.subr.mxu0 %v1101
        %1165 = vmatpush1.msra.mxu0 %v1100
        %1166 = vmatprep.subr.mxu0 %v1103
        %1167 = vmatpush1.msra.mxu0 %v1102
        %1168 = vmatprep.subr.mxu0 %v1105
        %1169 = vmatpush1.msra.mxu0 %v1104
        %1170 = vmatprep.subr.mxu0 %v1107
        %1171 = vmatpush1.msra.mxu0 %v1106
        %1172 = vmatprep.subr.mxu0 %v1109
        %1173 = vmatpush1.msra.mxu0 %v1108
        %1174 = vmatprep.subr.mxu0 %v1111
        %1175 = vmatpush1.msra.mxu0 %v1110
        %1176 = vmatprep.subr.mxu0 %v1113
        %1177 = vmatpush1.msra.mxu0 %v1112
        %1178 = vmatprep.subr.mxu0 %v1115
        %1179 = vmatpush1.msra.mxu0 %v1114
        %1180 = vmatprep.subr.mxu0 %v1117
        %1181 = vmatpush1.msra.mxu0 %v1116
        %1182 = vmatprep.subr.mxu0 %v1119
        %1183 = vmatpush1.msra.mxu0 %v1118
        %1184 = vmatprep.subr.mxu0 %v1121
        %1185 = vmatpush1.msra.mxu0 %v1120
        %1186 = vmatprep.subr.mxu0 %v1123
        %1187 = vmatpush1.msra.mxu0 %v1122
        %1188 = vmatprep.subr.mxu0 %v1125
        %1189 = vmatpush1.msra.mxu0 %v1124
        %1190 = vmatprep.subr.mxu0 %v1127
        %1191 = vmatpush1.msra.mxu0 %v1126
        %1192 = vmatprep.subr.mxu0 %v1129
        %1193 = vmatpush1.msra.mxu0 %v1128
        %1194 = vmatprep.subr.mxu0 %v1131
        %1195 = vmatpush1.msra.mxu0 %v1130
        %1196 = vmatprep.subr.mxu0 %v1133
        %1197 = vmatpush1.msra.mxu0 %v1132
        %1198 = vmatprep.mubr.f32.mxu0 %v779
        %1199 = vmatmul.mubr.f32.gmra.mrb[0].mxu0 %v776
        %v1200 = vpop.f32.mrb[0].mxu0
        %v1201 = vadd.f32 0.0, %v1200
        %v1202 = vpop.f32.mrb[0].mxu0
        %v1203 = vadd.f32 0.0, %v1202
        %1204 = vmatprep.mubr.f32.mxu0 %v785
        %1205 = vmatmul.mubr.f32.gmra.mrb[0].mxu0 %v784
        %v1206 = vpop.f32.mrb[0].mxu0
        %v1207 = vadd.f32 0.0, %v1206
        %v1208 = vpop.f32.mrb[0].mxu0
        %v1209 = vadd.f32 0.0, %v1208
        %1210 = vdwg.mxu0
        %v1211 = vadd.f32 %v1059, %v1201
        %v1212 = vadd.f32 %v1061, %v1203
        %v1213 = vadd.f32 %v1065, %v1207
        %v1214 = vadd.f32 %v1067, %v1209
        %v1215 = vadd.f32 %v1211, %v1213
        %v1216 = vrot.slane %v1215, 4
        %v1217 = vadd.f32 %v1215, %v1216
        %v1218 = vrot.slane %v1217, 2
        %v1219 = vadd.f32 %v1217, %v1218
        %v1220 = vrot.slane %v1219, 1
        %v1221 = vadd.f32 %v1219, %v1220
        %v1222 = vadd.f32 %v1212, %v1214
        %v1223 = vrot.slane %v1222, 4
        %v1224 = vadd.f32 %v1222, %v1223
        %v1225 = vrot.slane %v1224, 2
        %v1226 = vadd.f32 %v1224, %v1225
        %v1227 = vrot.slane %v1226, 1
        %v1228 = vadd.f32 %v1226, %v1227
        %v1229 = vld [vmem:[%s3] sm:$0xff]
        %v1230 = vld [vmem:[%s3 + $0x8] sm:$0xff]
        %v1231 = vld [vmem:[%s3 + $0x10] sm:$0xff]
        %v1232 = vld [vmem:[%s3 + $0x18] sm:$0xff]
        %v1233 = vld [vmem:[%s3 + $0x20] sm:$0xff]
        %v1234 = vld [vmem:[%s3 + $0x28] sm:$0xff]
        %v1235 = vld [vmem:[%s3 + $0x30] sm:$0xff]
        %v1236 = vld [vmem:[%s3 + $0x38] sm:$0xff]
        %v1237 = vld [vmem:[%s3 + $0x40] sm:$0xff]
        %v1238 = vld [vmem:[%s3 + $0x48] sm:$0xff]
        %v1239 = vld [vmem:[%s3 + $0x50] sm:$0xff]
        %v1240 = vld [vmem:[%s3 + $0x58] sm:$0xff]
        %v1241 = vld [vmem:[%s3 + $0x60] sm:$0xff]
        %v1242 = vld [vmem:[%s3 + $0x68] sm:$0xff]
        %v1243 = vld [vmem:[%s3 + $0x70] sm:$0xff]
        %v1244 = vld [vmem:[%s3 + $0x78] sm:$0xff]
        %v1245 = vld [vmem:[%s3 + $0x80] sm:$0xff]
        %v1246 = vld [vmem:[%s3 + $0x88] sm:$0xff]
        %v1247 = vld [vmem:[%s3 + $0x90] sm:$0xff]
        %v1248 = vld [vmem:[%s3 + $0x98] sm:$0xff]
        %v1249 = vld [vmem:[%s3 + $0xa0] sm:$0xff]
        %v1250 = vld [vmem:[%s3 + $0xa8] sm:$0xff]
        %v1251 = vld [vmem:[%s3 + $0xb0] sm:$0xff]
        %v1252 = vld [vmem:[%s3 + $0xb8] sm:$0xff]
        %v1253 = vld [vmem:[%s3 + $0xc0] sm:$0xff]
        %v1254 = vld [vmem:[%s3 + $0xc8] sm:$0xff]
        %v1255 = vld [vmem:[%s3 + $0xd0] sm:$0xff]
        %v1256 = vld [vmem:[%s3 + $0xd8] sm:$0xff]
        %v1257 = vld [vmem:[%s3 + $0xe0] sm:$0xff]
        %v1258 = vld [vmem:[%s3 + $0xe8] sm:$0xff]
        %v1259 = vld [vmem:[%s3 + $0xf0] sm:$0xff]
        %v1260 = vld [vmem:[%s3 + $0xf8] sm:$0xff]
        %1261 = vmatprep.subr.mxu0 0.0
        %1262 = vmatpush1.msra.mxu0 %v1229
        %1263 = vmatprep.subr.mxu0 0.0
        %1264 = vmatpush1.msra.mxu0 %v1230
        %1265 = vmatprep.subr.mxu0 0.0
        %1266 = vmatpush1.msra.mxu0 %v1231
        %1267 = vmatprep.subr.mxu0 0.0
        %1268 = vmatpush1.msra.mxu0 %v1232
        %1269 = vmatprep.subr.mxu0 0.0
        %1270 = vmatpush1.msra.mxu0 %v1233
        %1271 = vmatprep.subr.mxu0 0.0
        %1272 = vmatpush1.msra.mxu0 %v1234
        %1273 = vmatprep.subr.mxu0 0.0
        %1274 = vmatpush1.msra.mxu0 %v1235
        %1275 = vmatprep.subr.mxu0 0.0
        %1276 = vmatpush1.msra.mxu0 %v1236
        %1277 = vmatprep.subr.mxu0 0.0
        %1278 = vmatpush1.msra.mxu0 %v1237
        %1279 = vmatprep.subr.mxu0 0.0
        %1280 = vmatpush1.msra.mxu0 %v1238
        %1281 = vmatprep.subr.mxu0 0.0
        %1282 = vmatpush1.msra.mxu0 %v1239
        %1283 = vmatprep.subr.mxu0 0.0
        %1284 = vmatpush1.msra.mxu0 %v1240
        %1285 = vmatprep.subr.mxu0 0.0
        %1286 = vmatpush1.msra.mxu0 %v1241
        %1287 = vmatprep.subr.mxu0 0.0
        %1288 = vmatpush1.msra.mxu0 %v1242
        %1289 = vmatprep.subr.mxu0 0.0
        %1290 = vmatpush1.msra.mxu0 %v1243
        %1291 = vmatprep.subr.mxu0 0.0
        %1292 = vmatpush1.msra.mxu0 %v1244
        %1293 = vmatprep.subr.mxu0 0.0
        %1294 = vmatpush1.msra.mxu0 %v1245
        %1295 = vmatprep.subr.mxu0 0.0
        %1296 = vmatpush1.msra.mxu0 %v1246
        %1297 = vmatprep.subr.mxu0 0.0
        %1298 = vmatpush1.msra.mxu0 %v1247
        %1299 = vmatprep.subr.mxu0 0.0
        %1300 = vmatpush1.msra.mxu0 %v1248
        %1301 = vmatprep.subr.mxu0 0.0
        %1302 = vmatpush1.msra.mxu0 %v1249
        %1303 = vmatprep.subr.mxu0 0.0
        %1304 = vmatpush1.msra.mxu0 %v1250
        %1305 = vmatprep.subr.mxu0 0.0
        %1306 = vmatpush1.msra.mxu0 %v1251
        %1307 = vmatprep.subr.mxu0 0.0
        %1308 = vmatpush1.msra.mxu0 %v1252
        %1309 = vmatprep.subr.mxu0 0.0
        %1310 = vmatpush1.msra.mxu0 %v1253
        %1311 = vmatprep.subr.mxu0 0.0
        %1312 = vmatpush1.msra.mxu0 %v1254
        %1313 = vmatprep.subr.mxu0 0.0
        %1314 = vmatpush1.msra.mxu0 %v1255
        %1315 = vmatprep.subr.mxu0 0.0
        %1316 = vmatpush1.msra.mxu0 %v1256
        %1317 = vmatprep.subr.mxu0 0.0
        %1318 = vmatpush1.msra.mxu0 %v1257
        %1319 = vmatprep.subr.mxu0 0.0
        %1320 = vmatpush1.msra.mxu0 %v1258
        %1321 = vmatprep.subr.mxu0 0.0
        %1322 = vmatpush1.msra.mxu0 %v1259
        %1323 = vmatprep.subr.mxu0 0.0
        %1324 = vmatpush1.msra.mxu0 %v1260
        %1325 = vmatprep.mubr.f32.mxu0 %v1228
        %1326 = vmatmul.mubr.f32.gmra.mrb[0].mxu0 %v1221
        %v1327 = vpop.f32.mrb[0].mxu0
        %v1328 = vadd.f32 0.0, %v1327
        %v1329 = vpop.f32.mrb[0].mxu0
        %1330 = vdwg.mxu0
        %v1331 = vmax.f32 %v1328, 0.0
        %v1332 = vld [vmem:[%s4] sm:$0xff]
        %v1334 = vcombine.high %v1332, %v1332
        %vm1335 = vcmask 31744
        %v1337 = vsel %vm1335, %v1331, 0
        %vm1339 = vcmask 1043456
        %v1340 = vsel %vm1339, %v1332, 0
        %v1342 = vsel %vm1339, %v1334, 0
        %1344 = vmatprep.subr.mxu0 %v1342
        %1345 = vmatpush1.msra.mxu0 %v1340
        %1346 = vmatprep.subr.mxu0 0.0
        %1347 = vmatpush1.msra.mxu0 0.0
        %1348 = vmatprep.subr.mxu0 0.0
        %1349 = vmatpush1.msra.mxu0 0.0
        %1350 = vmatprep.subr.mxu0 0.0
        %1351 = vmatpush1.msra.mxu0 0.0
        %1352 = vmatprep.subr.mxu0 0.0
        %1353 = vmatpush1.msra.mxu0 0.0
        %1354 = vmatprep.subr.mxu0 0.0
        %1355 = vmatpush1.msra.mxu0 0.0
        %1356 = vmatprep.subr.mxu0 0.0
        %1357 = vmatpush1.msra.mxu0 0.0
        %1358 = vmatprep.subr.mxu0 0.0
        %1359 = vmatpush1.msra.mxu0 0.0
        %1360 = vmatprep.subr.mxu0 0.0
        %1361 = vmatpush1.msra.mxu0 0.0
        %1362 = vmatprep.subr.mxu0 0.0
        %1363 = vmatpush1.msra.mxu0 0.0
        %1364 = vmatprep.subr.mxu0 0.0
        %1365 = vmatpush1.msra.mxu0 0.0
        %1366 = vmatprep.subr.mxu0 0.0
        %1367 = vmatpush1.msra.mxu0 0.0
        %1368 = vmatprep.subr.mxu0 0.0
        %1369 = vmatpush1.msra.mxu0 0.0
        %1370 = vmatprep.subr.mxu0 0.0
        %1371 = vmatpush1.msra.mxu0 0.0
        %1372 = vmatprep.subr.mxu0 0.0
        %1373 = vmatpush1.msra.mxu0 0.0
        %1374 = vmatprep.subr.mxu0 0.0
        %1375 = vmatpush1.msra.mxu0 0.0
        %1376 = vmatprep.subr.mxu0 0.0
        %1377 = vmatpush1.msra.mxu0 0.0
        %1378 = vmatprep.subr.mxu0 0.0
        %1379 = vmatpush1.msra.mxu0 0.0
        %1380 = vmatprep.subr.mxu0 0.0
        %1381 = vmatpush1.msra.mxu0 0.0
        %1382 = vmatprep.subr.mxu0 0.0
        %1383 = vmatpush1.msra.mxu0 0.0
        %1384 = vmatprep.subr.mxu0 0.0
        %1385 = vmatpush1.msra.mxu0 0.0
        %1386 = vmatprep.subr.mxu0 0.0
        %1387 = vmatpush1.msra.mxu0 0.0
        %1388 = vmatprep.subr.mxu0 0.0
        %1389 = vmatpush1.msra.mxu0 0.0
        %1390 = vmatprep.subr.mxu0 0.0
        %1391 = vmatpush1.msra.mxu0 0.0
        %1392 = vmatprep.subr.mxu0 0.0
        %1393 = vmatpush1.msra.mxu0 0.0
        %1394 = vmatprep.subr.mxu0 0.0
        %1395 = vmatpush1.msra.mxu0 0.0
        %1396 = vmatprep.subr.mxu0 0.0
        %1397 = vmatpush1.msra.mxu0 0.0
        %1398 = vmatprep.subr.mxu0 0.0
        %1399 = vmatpush1.msra.mxu0 0.0
        %1400 = vmatprep.subr.mxu0 0.0
        %1401 = vmatpush1.msra.mxu0 0.0
        %1402 = vmatprep.subr.mxu0 0.0
        %1403 = vmatpush1.msra.mxu0 0.0
        %1404 = vmatprep.subr.mxu0 0.0
        %1405 = vmatpush1.msra.mxu0 0.0
        %1406 = vmatprep.subr.mxu0 0.0
        %1407 = vmatpush1.msra.mxu0 0.0
        %1408 = vmatprep.mubr.f32.mxu0 0.0
        %1409 = vmatmul.mubr.f32.gmra.mrb[0].mxu0 %v1337
        %v1410 = vpop.f32.mrb[0].mxu0
        %v1411 = vadd.f32 0.0, %v1410
        %v1412 = vpop.f32.mrb[0].mxu0
        %v1413 = vadd.f32 0.0, %v1412
        %1414 = vdwg.mxu0
        %v1415 = vxor.u32 %v1411, 2147483648
        %v1416 = vxor.u32 %v1413, 2147483648
        %v1417 = vmul.f32 %v1415, 1.442695
        %v1418 = vpow.pop %v1417
        %v1419 = vmul.f32 %v1416, 1.442695
        %v1420 = vpow.pop %v1419
        %v1421 = vadd.f32 %v1418, 1.0
        %v1422 = vadd.f32 %v1420, 1.0
        %v1423 = vrcp.pop %v1421
        %v1424 = vmul.f32 1.0, %v1423
        %v1425 = vrcp.pop %v1422
        %v1426 = vmul.f32 1.0, %v1425
        %v1427 = vlaneseq
        %v1428 = vshrl.u32 %v1427, 7
        %v1429 = vsub.s32 0, %v1428
        %v1430 = vrot.slane %v1424, %v1429
        %v1431 = vlaneseq
        %v1432 = vshrl.u32 %v1431, 7
        %v1433 = vsub.s32 0, %v1432
        %v1434 = vrot.slane %v1426, %v1433
        %v1435 = vmul.f32 %v1211, %v1430
        %v1436 = vmul.f32 %v1212, %v1434
        %v1437 = vmul.f32 %v1213, %v1430
        %v1438 = vmul.f32 %v1214, %v1434
        %v1439 = vadd.f32 %v1435, %v281
        %v1440 = vadd.f32 %v1436, %v282
        %v1441 = vadd.f32 %v1437, %v283
        %v1442 = vadd.f32 %v1438, %v284
        %1443 = vst [vmem:[%s275] sm:$0xff] %v1439
        %1444 = vst [vmem:[%s275 + $0x8] sm:$0xff] %v1440
        %1445 = vst [vmem:[%s275 + $0x10] sm:$0xff] %v1441
        %1446 = vst [vmem:[%s275 + $0x18] sm:$0xff] %v1442
        %s1447 = sand.u32 %s162, 1
        %s1448 = scalar_lea.sflag [#allocation5], %s1447
        %s1449 = sand.u32 %s162, 1
        %s1450 = smul.addr %s1449, 32
        %s1451 = scalar_lea.vmem [#allocation8], %s1450
        // Predicated region
        $region53: #{tpu_custom_call.1} parent=43 // pred_check
          %p1452 = pneg %p172
        $region54: #{tpu_custom_call.1} parent=43 // pred_check_branch
          %1454 = sbr.rel (%p1452) target = $region56
        $region55: #{tpu_custom_call.1} parent=43 // pred_region
          %s1456 = ssub.s32 512, 512
          %1457 = vsyncadd %s1448, %s1456
          %s1458 = smul.addr %s23, 4
          %s1459 = smul.addr %s1458, 128
          %s1460 = scalar_lea.hbm %s6, %s1459
          %s1461 = sshll.u32 %s1451, 4
          %s1462 = int_to_ptr.vmem [resolvable:$true] %s1461
          %1467 = dma.vmem_to_hbm [thread:$0]  %s1462, 512, %s1460, %s1448, 256, 256, 16
        $region56: #{tpu_custom_call.1} parent=43 // pred_fallthru
          _
      $region44: #{tpu_custom_call.1} parent=5 // pred_fallthru
        _
      %p1468 = scmp.le.s32.totalorder 2, %s18
      // Predicated region
      $region57: #{tpu_custom_call.1} parent=5 // pred_check
        %p1469 = pneg %p1468
      $region58: #{tpu_custom_call.1} parent=5 // pred_check_branch
        %1471 = sbr.rel (%p1469) target = $region60
      $region59: #{tpu_custom_call.1} parent=5 // pred_region
        %s1472 = ssub.s32 %s18, 2
        // Predicated region
        $region61: #{tpu_custom_call.1} parent=59 // pred_check
          %p1473 = pneg %p178
        $region62: #{tpu_custom_call.1} parent=59 // pred_check_branch
          %1475 = sbr.rel (%p1473) target = $region64
        $region63: #{tpu_custom_call.1} parent=59 // pred_region
          %s1476 = sand.u32 %s163, 1
          %s1477 = scalar_lea.sflag [#allocation5], %s1476
          %s1478 = sand.u32 %s163, 1
          %s1479 = smul.addr %s1478, 32
          %s1480 = scalar_lea.vmem [#allocation8], %s1479
          %1481 = dma.done %s1477, 512
        $region64: #{tpu_custom_call.1} parent=59 // pred_fallthru
          _
      $region60: #{tpu_custom_call.1} parent=5 // pred_fallthru
        _
    $region6: #{tpu_custom_call.1} parent=1 // loop_footer
      %s22 = sadd.s32 1, %s18
    $region7: #{tpu_custom_call.1} parent=1 // loop_footer_branch
      %17 = sbr.rel target = $region3
    $region8: #{tpu_custom_call.1} parent=1 // loop_exit
      _
    %1482 = vsyncpa [#allocation4], 1
    %s1483 = scalar_lea.sflag [#allocation4], 1
    %1484 = vsyncpa %s1483, 1
    %1485 = vsyncpa [#allocation7], 1
    %1486 = vsyncpa [#allocation5], 1
    %s1487 = scalar_lea.sflag [#allocation5], 1
    %1488 = vsyncpa %s1487, 1

// kernel: tpu_custom_call.1
$region0: #{tpu_custom_call.1}
  #allocation0 [shape = 'u32[]', space=smem, size = 0x4, offset = 0x4, fixed_abs, tag = 'smem constant byte address 0x4 - core index']
  #allocation1 [shape = 'u32[144,128]{1,0:T(1,128)}', space=vmem, size = 0x12000, scoped, tag = 'internal scratch']
  #allocation2 [shape = 'f32[1]{0:T(128)S(6)}', space=smem, size = 0x200, scoped, tag = 'scoped memory for tpu_custom_call.1']
  %s0 = inlined_call_operand.vmem [shape: f32[2,16,256], index: 0, kind: input, shape index: {}]
  %s1 = inlined_call_operand.hbm [shape: f32[3,256,256], index: 1, kind: input, shape index: {}]
  %s2 = inlined_call_operand.hbm [shape: f32[3,256,256], index: 2, kind: input, shape index: {}]
  %s3 = inlined_call_operand.vmem [shape: f32[256,4], index: 3, kind: input, shape index: {}]
  %s4 = inlined_call_operand.vmem [shape: f32[4,256], index: 4, kind: input, shape index: {}]
  %s5 = inlined_call_operand.<no memory space> [shape: f32[1], index: 5, kind: input, shape index: {}]
  %s6 = inlined_call_operand.hbm [shape: f32[2,16,256], index: 6, kind: output, shape index: {}]
  %s7 = sld [smem:[#allocation0]]
  $region65: #{tpu_custom_call.1} parent=0
    _
  %s9 = ssub.s32 1, %s7
  %s10 = scalar_select 0, %s9, %s7
  %11 = sst [smem:[#allocation2]] %s5
  $region1: #{tpu_custom_call.1} parent=0
    #allocation3 [shape = 'u8[786432]{0}', space=vmem, size = 0xc0000, scoped, tag = 'input window, operand 1, single buffered']
    #allocation4 [shape = 's32[2]{0}', space=sflag, size = 0x8, scoped, tag = 'scoped memory for tpu_custom_call.1']
    #allocation5 [shape = 's32[2]{0}', space=sflag, size = 0x8, scoped, tag = 'scoped memory for tpu_custom_call.1']
    #allocation6 [shape = 'u8[786432]{0}', space=vmem, size = 0xc0000, scoped, tag = 'input window, operand 2, single buffered']
    #allocation7 [shape = 's32[1]{0}', space=sflag, size = 0x4, scoped, tag = 'scoped memory for tpu_custom_call.1']
    #allocation8 [shape = 'u8[32768]{0}', space=vmem, size = 0x8000, scoped, tag = 'output window, operand 0']
    %12 = vsyncpa [#allocation4], 0
    %13 = vsyncpa [#allocation7], 0
    %14 = vsyncpa [#allocation5], 0
    %s15 = scalar_lea.sflag [#allocation5], 1
    %16 = vsyncpa %s15, 0
    loop: start=0, step=1, limit=4
    $region2: #{tpu_custom_call.1} parent=1 // loop_pre_header
      _
    $region3: #{tpu_custom_call.1} parent=1 // loop_header
      %s18 = sphi 0, %s22
      %p19 = scmp.ge.s32.totalorder %s18, 4
      %s28 = sphi 0, %s30
      %s31 = sphi 0, %s28
      %s32 = sphi 0, %s31
      %s48 = sphi 0, %s32
      %s52 = sphi 0, %s52
      %s54 = sphi 0, %s52
      %s55 = sphi 0, %s54
      %s69 = sphi 0, %s55
      %s73 = sphi 0, %s73
      %s75 = sphi 0, %s73
      %s76 = sphi 0, %s75
      %s90 = sphi 0, %s76
      %s94 = sphi 0, %s94
      %s96 = sphi 0, %s94
      %s97 = sphi 0, %s96
      %s111 = sphi 0, %s97
      %s115 = sphi 0, %s115
      %s117 = sphi 0, %s115
      %s118 = sphi 0, %s117
      %s132 = sphi 0, %s118
      %s136 = sphi 0, %s136
      %s138 = sphi 0, %s136
      %s139 = sphi 0, %s138
      %s153 = sphi 0, %s139
      %s159 = sphi 0, %s161
      %s162 = sphi 0, %s159
      %s163 = sphi 0, %s162
      %s179 = sphi 0, %s163
    $region4: #{tpu_custom_call.1} parent=1 // loop_header_branch
      %21 = sbr.rel (%p19) target = $region8
    $region5: #{tpu_custom_call.1} parent=1 // loop_body
      %s23 = ssub.s32 %s18, 1
      %s24 = ssub.s32 %s18, 2
      %s25 = sadd.s32 %s18, 1
      %s26 = ssub.s32 %s18, %s25
      %p27 = scmp.eq.s32.totalorder %s26, 0
      %s29 = sadd.s32 %s28, 1
      %s30 = scalar_select %p27, %s28, %s29
      %p33 = pneg %p27
      %p34 = scmp.eq.s32.totalorder %s18, 1
      %p35 = por %p33, %p34
      %p36 = scmp.ne.s32.totalorder %s28, %s31
      %p37 = scmp.eq.s32.totalorder %s18, 0
      %p38 = por %p36, %p37
      %p39 = scmp.ne.s32.totalorder %s28, %s31
      %p40 = scmp.eq.s32.totalorder %s23, 1
      %p41 = por %p39, %p40
      %p42 = scmp.ne.s32.totalorder %s31, %s32
      %p43 = scmp.eq.s32.totalorder %s23, 0
      %p44 = por %p42, %p43
      %p45 = scmp.ne.s32.totalorder %s31, %s32
      %p46 = scmp.eq.s32.totalorder %s24, 1
      %p47 = por %p45, %p46
      %p49 = scmp.ne.s32.totalorder %s32, %s48
      %p50 = scmp.eq.s32.totalorder %s24, 0
      %p51 = por %p49, %p50
      %s53 = sadd.s32 %s52, 1
      %p56 = scmp.eq.s32.totalorder %s18, 1
      %p57 = scmp.ne.s32.totalorder %s52, %s54
      %p58 = scmp.eq.s32.totalorder %s18, 0
      %p59 = por %p57, %p58
      %p60 = scmp.ne.s32.totalorder %s52, %s54
      %p61 = scmp.eq.s32.totalorder %s23, 1
      %p62 = por %p60, %p61
      %p63 = scmp.ne.s32.totalorder %s54, %s55
      %p64 = scmp.eq.s32.totalorder %s23, 0
      %p65 = por %p63, %p64
      %p66 = scmp.ne.s32.totalorder %s54, %s55
      %p67 = scmp.eq.s32.totalorder %s24, 1
      %p68 = por %p66, %p67
      %p70 = scmp.ne.s32.totalorder %s55, %s69
      %p71 = scmp.eq.s32.totalorder %s24, 0
      %p72 = por %p70, %p71
      %s74 = sadd.s32 %s73, 1
      %p77 = scmp.eq.s32.totalorder %s18, 1
      %p78 = scmp.ne.s32.totalorder %s73, %s75
      %p79 = scmp.eq.s32.totalorder %s18, 0
      %p80 = por %p78, %p79
      %p81 = scmp.ne.s32.totalorder %s73, %s75
      %p82 = scmp.eq.s32.totalorder %s23, 1
      %p83 = por %p81, %p82
      %p84 = scmp.ne.s32.totalorder %s75, %s76
      %p85 = scmp.eq.s32.totalorder %s23, 0
      %p86 = por %p84, %p85
      %p87 = scmp.ne.s32.totalorder %s75, %s76
      %p88 = scmp.eq.s32.totalorder %s24, 1
      %p89 = por %p87, %p88
      %p91 = scmp.ne.s32.totalorder %s76, %s90
      %p92 = scmp.eq.s32.totalorder %s24, 0
      %p93 = por %p91, %p92
      %s95 = sadd.s32 %s94, 1
      %p98 = scmp.eq.s32.totalorder %s18, 1
      %p99 = scmp.ne.s32.totalorder %s94, %s96
      %p100 = scmp.eq.s32.totalorder %s18, 0
      %p101 = por %p99, %p100
      %p102 = scmp.ne.s32.totalorder %s94, %s96
      %p103 = scmp.eq.s32.totalorder %s23, 1
      %p104 = por %p102, %p103
      %p105 = scmp.ne.s32.totalorder %s96, %s97
      %p106 = scmp.eq.s32.totalorder %s23, 0
      %p107 = por %p105, %p106
      %p108 = scmp.ne.s32.totalorder %s96, %s97
      %p109 = scmp.eq.s32.totalorder %s24, 1
      %p110 = por %p108, %p109
      %p112 = scmp.ne.s32.totalorder %s97, %s111
      %p113 = scmp.eq.s32.totalorder %s24, 0
      %p114 = por %p112, %p113
      %s116 = sadd.s32 %s115, 1
      %p119 = scmp.eq.s32.totalorder %s18, 1
      %p120 = scmp.ne.s32.totalorder %s115, %s117
      %p121 = scmp.eq.s32.totalorder %s18, 0
      %p122 = por %p120, %p121
      %p123 = scmp.ne.s32.totalorder %s115, %s117
      %p124 = scmp.eq.s32.totalorder %s23, 1
      %p125 = por %p123, %p124
      %p126 = scmp.ne.s32.totalorder %s117, %s118
      %p127 = scmp.eq.s32.totalorder %s23, 0
      %p128 = por %p126, %p127
      %p129 = scmp.ne.s32.totalorder %s117, %s118
      %p130 = scmp.eq.s32.totalorder %s24, 1
      %p131 = por %p129, %p130
      %p133 = scmp.ne.s32.totalorder %s118, %s132
      %p134 = scmp.eq.s32.totalorder %s24, 0
      %p135 = por %p133, %p134
      %s137 = sadd.s32 %s136, 1
      %p140 = scmp.eq.s32.totalorder %s18, 1
      %p141 = scmp.ne.s32.totalorder %s136, %s138
      %p142 = scmp.eq.s32.totalorder %s18, 0
      %p143 = por %p141, %p142
      %p144 = scmp.ne.s32.totalorder %s136, %s138
      %p145 = scmp.eq.s32.totalorder %s23, 1
      %p146 = por %p144, %p145
      %p147 = scmp.ne.s32.totalorder %s138, %s139
      %p148 = scmp.eq.s32.totalorder %s23, 0
      %p149 = por %p147, %p148
      %p150 = scmp.ne.s32.totalorder %s138, %s139
      %p151 = scmp.eq.s32.totalorder %s24, 1
      %p152 = por %p150, %p151
      %p154 = scmp.ne.s32.totalorder %s139, %s153
      %p155 = scmp.eq.s32.totalorder %s24, 0
      %p156 = por %p154, %p155
      %s157 = ssub.s32 %s18, %s25
      %p158 = scmp.eq.s32.totalorder %s157, 0
      %s160 = sadd.s32 %s159, 1
      %s161 = scalar_select %p158, %s159, %s160
      %p164 = pneg %p158
      %p165 = scmp.eq.s32.totalorder %s18, 1
      %p166 = por %p164, %p165
      %p167 = scmp.ne.s32.totalorder %s159, %s162
      %p168 = scmp.eq.s32.totalorder %s18, 0
      %p169 = por %p167, %p168
      %p170 = scmp.ne.s32.totalorder %s159, %s162
      %p171 = scmp.eq.s32.totalorder %s23, 1
      %p172 = por %p170, %p171
      %p173 = scmp.ne.s32.totalorder %s162, %s163
      %p174 = scmp.eq.s32.totalorder %s23, 0
      %p175 = por %p173, %p174
      %p176 = scmp.ne.s32.totalorder %s162, %s163
      %p177 = scmp.eq.s32.totalorder %s24, 1
      %p178 = por %p176, %p177
      %p180 = scmp.ne.s32.totalorder %s163, %s179
      %p181 = scmp.eq.s32.totalorder %s24, 0
      %p182 = por %p180, %p181
      %p183 = scmp.le.s32.totalorder 1, %s18
      %p184 = scmp.lt.s32.totalorder %s18, 3
      %p185 = pnand %p183, %p184
      %p186 = pneg %p185
      // Predicated region
      $region9: #{tpu_custom_call.1} parent=5 // pred_check
        _
      $region10: #{tpu_custom_call.1} parent=5 // pred_check_branch
        %188 = sbr.rel (%p185) target = $region12
      $region11: #{tpu_custom_call.1} parent=5 // pred_region
        %s189 = ssub.s32 %s18, 1
        // Predicated region
        $region13: #{tpu_custom_call.1} parent=11 // pred_check
          %p190 = pneg %p65
        $region14: #{tpu_custom_call.1} parent=11 // pred_check_branch
          %192 = sbr.rel (%p190) target = $region16
        $region15: #{tpu_custom_call.1} parent=11 // pred_region
          %s194 = ssub.s32 24576, 24576
          %195 = vsyncadd [#allocation4], %s194
          %s196 = sshll.u32 [#allocation3], 4
          %s197 = int_to_ptr.vmem [resolvable:$true] %s196
          %202 = dma.hbm_to_vmem [thread:$0]  %s1, 24576, %s197, [#allocation4], 256, 256, 16
        $region16: #{tpu_custom_call.1} parent=11 // pred_fallthru
          _
        // Predicated region
        $region17: #{tpu_custom_call.1} parent=11 // pred_check
          %p203 = pneg %p86
        $region18: #{tpu_custom_call.1} parent=11 // pred_check_branch
          %205 = sbr.rel (%p203) target = $region20
        $region19: #{tpu_custom_call.1} parent=11 // pred_region
          %s207 = ssub.s32 24576, 24576
          %208 = vsyncadd [#allocation7], %s207
          %s209 = sshll.u32 [#allocation6], 4
          %s210 = int_to_ptr.vmem [resolvable:$true] %s209
          %215 = dma.hbm_to_vmem [thread:$0]  %s2, 24576, %s210, [#allocation7], 256, 256, 16
        $region20: #{tpu_custom_call.1} parent=11 // pred_fallthru
          _
        // Predicated region
        $region21: #{tpu_custom_call.1} parent=11 // pred_check
          %p216 = pneg %p107
        $region22: #{tpu_custom_call.1} parent=11 // pred_check_branch
          %218 = sbr.rel (%p216) target = $region24
        $region23: #{tpu_custom_call.1} parent=11 // pred_region
          _
        $region24: #{tpu_custom_call.1} parent=11 // pred_fallthru
          _
        // Predicated region
        $region25: #{tpu_custom_call.1} parent=11 // pred_check
          %p219 = pneg %p128
        $region26: #{tpu_custom_call.1} parent=11 // pred_check_branch
          %221 = sbr.rel (%p219) target = $region28
        $region27: #{tpu_custom_call.1} parent=11 // pred_region
          _
        $region28: #{tpu_custom_call.1} parent=11 // pred_fallthru
          _
        // Predicated region
        $region29: #{tpu_custom_call.1} parent=11 // pred_check
          %p222 = pneg %p149
        $region30: #{tpu_custom_call.1} parent=11 // pred_check_branch
          %224 = sbr.rel (%p222) target = $region32
        $region31: #{tpu_custom_call.1} parent=11 // pred_region
          _
        $region32: #{tpu_custom_call.1} parent=11 // pred_fallthru
          _
      $region12: #{tpu_custom_call.1} parent=5 // pred_fallthru
        _
      %p225 = scmp.lt.s32.totalorder %s18, 2
      // Predicated region
      $region33: #{tpu_custom_call.1} parent=5 // pred_check
        %p226 = pneg %p225
      $region34: #{tpu_custom_call.1} parent=5 // pred_check_branch
        %228 = sbr.rel (%p226) target = $region36
      $region35: #{tpu_custom_call.1} parent=5 // pred_region
        // Predicated region
        $region37: #{tpu_custom_call.1} parent=35 // pred_check
          %p229 = pneg %p38
        $region38: #{tpu_custom_call.1} parent=35 // pred_check_branch
          %231 = sbr.rel (%p229) target = $region40
        $region39: #{tpu_custom_call.1} parent=35 // pred_region
          %p232 = scmp.lt.s32.totalorder %s18, 1
          %s233 = scalar_select %p232, %s18, 1
          %s234 = smul.addr %s233, 4
          %s235 = smul.addr %s234, 8
          %s236 = scalar_lea.vmem %s0, %s235
        $region40: #{tpu_custom_call.1} parent=35 // pred_fallthru
          _
      $region36: #{tpu_custom_call.1} parent=5 // pred_fallthru
        _
      %p237 = scmp.le.s32.totalorder 1, %s18
      %p238 = scmp.lt.s32.totalorder %s18, 3
      %p239 = pnand %p237, %p238
      %p240 = pneg %p239
      // Predicated region
      $region41: #{tpu_custom_call.1} parent=5 // pred_check
        _
      $region42: #{tpu_custom_call.1} parent=5 // pred_check_branch
        %242 = sbr.rel (%p239) target = $region44
      $region43: #{tpu_custom_call.1} parent=5 // pred_region
        %s243 = ssub.s32 %s18, 1
        // Predicated region
        $region45: #{tpu_custom_call.1} parent=43 // pred_check
          %p244 = pneg %p65
        $region46: #{tpu_custom_call.1} parent=43 // pred_check_branch
          %246 = sbr.rel (%p244) target = $region48
        $region47: #{tpu_custom_call.1} parent=43 // pred_region
          %247 = dma.done [#allocation4], 24576
        $region48: #{tpu_custom_call.1} parent=43 // pred_fallthru
          _
        // Predicated region
        $region49: #{tpu_custom_call.1} parent=43 // pred_check
          %p248 = pneg %p86
        $region50: #{tpu_custom_call.1} parent=43 // pred_check_branch
          %250 = sbr.rel (%p248) target = $region52
        $region51: #{tpu_custom_call.1} parent=43 // pred_region
          %251 = dma.done [#allocation7], 24576
        $region52: #{tpu_custom_call.1} parent=43 // pred_fallthru
          _
        %p252 = scmp.lt.s32.totalorder %s23, 1
        %s253 = scalar_select %p252, %s23, 1
        %s254 = smul.addr %s253, 4
        %s255 = smul.addr %s254, 8
        %s256 = scalar_lea.vmem %s0, %s255
        %p257 = pneg %p44
        %p258 = pneg %p41
        %p259 = pneg %p65
        %p260 = pneg %p62
        %p261 = pneg %p86
        %p262 = pneg %p83
        %p263 = pneg %p107
        %p264 = pneg %p104
        %p265 = pneg %p128
        %p266 = pneg %p125
        %p267 = pneg %p149
        %p268 = pneg %p146
        %p269 = pneg %p175
        %p270 = pneg %p172
        %s271 = sand.u32 %s162, 1
        %s272 = scalar_lea.sflag [#allocation5], %s271
        %s273 = sand.u32 %s162, 1
        %s274 = smul.addr %s273, 32
        %s275 = scalar_lea.vmem [#allocation8], %s274
        %p276 = scmp.lt.s32.totalorder %s23, 1
        %s277 = scalar_select %p276, %s23, 1
        %s278 = smul.addr %s277, 4
        %s279 = smul.addr %s278, 8
        %s280 = scalar_lea.vmem %s0, %s279
        %v281 = vld [vmem:[%s280] sm:$0xff]
        %v282 = vld [vmem:[%s280 + $0x8] sm:$0xff]
        %v283 = vld [vmem:[%s280 + $0x10] sm:$0xff]
        %v284 = vld [vmem:[%s280 + $0x18] sm:$0xff]
        %s285 = sld [smem:[#allocation2]]
        %vm290 = vcmask 1040384
        %v291 = vrot.slane %v281, 7
        %v292 = vrot.slane %v282, 7
        %v293 = vrot.slane %v283, 7
        %v294 = vsel %vm290, %v291, %v293
        %v295 = vrot.slane %v284, 7
        %v296 = vsel %vm290, %v292, %v295
        %v301 = vsel %vm290, 0.0, %v291
        %v302 = vsel %vm290, 0.0, %v292
        %vm303 = vcmask 1046528
        %v304 = vrot.slane %v281, 1
        %v305 = vrot.slane %v283, 1
        %v306 = vsel %vm303, %v304, %v305
        %v307 = vrot.slane %v282, 1
        %v308 = vrot.slane %v284, 1
        %v309 = vsel %vm303, %v307, %v308
        %v314 = vsel %vm303, %v305, 0.0
        %v315 = vsel %vm303, %v308, 0.0
        %v316 = vld [vmem:[#allocation3] sm:$0xff]
        %v317 = vld [vmem:[#allocation3 + $0x8] sm:$0xff]
        %v318 = vld [vmem:[#allocation3 + $0x10] sm:$0xff]
        %v319 = vld [vmem:[#allocation3 + $0x18] sm:$0xff]
        %v320 = vld [vmem:[#allocation3 + $0x20] sm:$0xff]
        %v321 = vld [vmem:[#allocation3 + $0x28] sm:$0xff]
        %v322 = vld [vmem:[#allocation3 + $0x30] sm:$0xff]
        %v323 = vld [vmem:[#allocation3 + $0x38] sm:$0xff]
        %v324 = vld [vmem:[#allocation3 + $0x40] sm:$0xff]
        %v325 = vld [vmem:[#allocation3 + $0x48] sm:$0xff]
        %v326 = vld [vmem:[#allocation3 + $0x50] sm:$0xff]
        %v327 = vld [vmem:[#allocation3 + $0x58] sm:$0xff]
        %v328 = vld [vmem:[#allocation3 + $0x60] sm:$0xff]
        %v329 = vld [vmem:[#allocation3 + $0x68] sm:$0xff]
        %v330 = vld [vmem:[#allocation3 + $0x70] sm:$0xff]
        %v331 = vld [vmem:[#allocation3 + $0x78] sm:$0xff]
        %v332 = vld [vmem:[#allocation3 + $0x80] sm:$0xff]
        %v333 = vld [vmem:[#allocation3 + $0x88] sm:$0xff]
        %v334 = vld [vmem:[#allocation3 + $0x90] sm:$0xff]
        %v335 = vld [vmem:[#allocation3 + $0x98] sm:$0xff]
        %v336 = vld [vmem:[#allocation3 + $0xa0] sm:$0xff]
        %v337 = vld [vmem:[#allocation3 + $0xa8] sm:$0xff]
        %v338 = vld [vmem:[#allocation3 + $0xb0] sm:$0xff]
        %v339 = vld [vmem:[#allocation3 + $0xb8] sm:$0xff]
        %v340 = vld [vmem:[#allocation3 + $0xc0] sm:$0xff]
        %v341 = vld [vmem:[#allocation3 + $0xc8] sm:$0xff]
        %v342 = vld [vmem:[#allocation3 + $0xd0] sm:$0xff]
        %v343 = vld [vmem:[#allocation3 + $0xd8] sm:$0xff]
        %v344 = vld [vmem:[#allocation3 + $0xe0] sm:$0xff]
        %v345 = vld [vmem:[#allocation3 + $0xe8] sm:$0xff]
        %v346 = vld [vmem:[#allocation3 + $0xf0] sm:$0xff]
        %v347 = vld [vmem:[#allocation3 + $0xf8] sm:$0xff]
        %v348 = vld [vmem:[#allocation3 + $0x100] sm:$0xff]
        %v349 = vld [vmem:[#allocation3 + $0x108] sm:$0xff]
        %v350 = vld [vmem:[#allocation3 + $0x110] sm:$0xff]
        %v351 = vld [vmem:[#allocation3 + $0x118] sm:$0xff]
        %v352 = vld [vmem:[#allocation3 + $0x120] sm:$0xff]
        %v353 = vld [vmem:[#allocation3 + $0x128] sm:$0xff]
        %v354 = vld [vmem:[#allocation3 + $0x130] sm:$0xff]
        %v355 = vld [vmem:[#allocation3 + $0x138] sm:$0xff]
        %v356 = vld [vmem:[#allocation3 + $0x140] sm:$0xff]
        %v357 = vld [vmem:[#allocation3 + $0x148] sm:$0xff]
        %v358 = vld [vmem:[#allocation3 + $0x150] sm:$0xff]
        %v359 = vld [vmem:[#allocation3 + $0x158] sm:$0xff]
        %v360 = vld [vmem:[#allocation3 + $0x160] sm:$0xff]
        %v361 = vld [vmem:[#allocation3 + $0x168] sm:$0xff]
        %v362 = vld [vmem:[#allocation3 + $0x170] sm:$0xff]
        %v363 = vld [vmem:[#allocation3 + $0x178] sm:$0xff]
        %v364 = vld [vmem:[#allocation3 + $0x180] sm:$0xff]
        %v365 = vld [vmem:[#allocation3 + $0x188] sm:$0xff]
        %v366 = vld [vmem:[#allocation3 + $0x190] sm:$0xff]
        %v367 = vld [vmem:[#allocation3 + $0x198] sm:$0xff]
        %v368 = vld [vmem:[#allocation3 + $0x1a0] sm:$0xff]
        %v369 = vld [vmem:[#allocation3 + $0x1a8] sm:$0xff]
        %v370 = vld [vmem:[#allocation3 + $0x1b0] sm:$0xff]
        %v371 = vld [vmem:[#allocation3 + $0x1b8] sm:$0xff]
        %v372 = vld [vmem:[#allocation3 + $0x1c0] sm:$0xff]
        %v373 = vld [vmem:[#allocation3 + $0x1c8] sm:$0xff]
        %v374 = vld [vmem:[#allocation3 + $0x1d0] sm:$0xff]
        %v375 = vld [vmem:[#allocation3 + $0x1d8] sm:$0xff]
        %v376 = vld [vmem:[#allocation3 + $0x1e0] sm:$0xff]
        %v377 = vld [vmem:[#allocation3 + $0x1e8] sm:$0xff]
        %v378 = vld [vmem:[#allocation3 + $0x1f0] sm:$0xff]
        %v379 = vld [vmem:[#allocation3 + $0x1f8] sm:$0xff]
        %s380 = scalar_lea.vmem [#allocation3], 512
        %v381 = vld [vmem:[%s380] sm:$0xff]
        %v382 = vld [vmem:[%s380 + $0x8] sm:$0xff]
        %v383 = vld [vmem:[%s380 + $0x10] sm:$0xff]
        %v384 = vld [vmem:[%s380 + $0x18] sm:$0xff]
        %v385 = vld [vmem:[%s380 + $0x20] sm:$0xff]
        %v386 = vld [vmem:[%s380 + $0x28] sm:$0xff]
        %v387 = vld [vmem:[%s380 + $0x30] sm:$0xff]
        %v388 = vld [vmem:[%s380 + $0x38] sm:$0xff]
        %v389 = vld [vmem:[%s380 + $0x40] sm:$0xff]
        %v390 = vld [vmem:[%s380 + $0x48] sm:$0xff]
        %v391 = vld [vmem:[%s380 + $0x50] sm:$0xff]
        %v392 = vld [vmem:[%s380 + $0x58] sm:$0xff]
        %v393 = vld [vmem:[%s380 + $0x60] sm:$0xff]
        %v394 = vld [vmem:[%s380 + $0x68] sm:$0xff]
        %v395 = vld [vmem:[%s380 + $0x70] sm:$0xff]
        %v396 = vld [vmem:[%s380 + $0x78] sm:$0xff]
        %v397 = vld [vmem:[%s380 + $0x80] sm:$0xff]
        %v398 = vld [vmem:[%s380 + $0x88] sm:$0xff]
        %v399 = vld [vmem:[%s380 + $0x90] sm:$0xff]
        %v400 = vld [vmem:[%s380 + $0x98] sm:$0xff]
        %v401 = vld [vmem:[%s380 + $0xa0] sm:$0xff]
        %v402 = vld [vmem:[%s380 + $0xa8] sm:$0xff]
        %v403 = vld [vmem:[%s380 + $0xb0] sm:$0xff]
        %v404 = vld [vmem:[%s380 + $0xb8] sm:$0xff]
        %v405 = vld [vmem:[%s380 + $0xc0] sm:$0xff]
        %v406 = vld [vmem:[%s380 + $0xc8] sm:$0xff]
        %v407 = vld [vmem:[%s380 + $0xd0] sm:$0xff]
        %v408 = vld [vmem:[%s380 + $0xd8] sm:$0xff]
        %v409 = vld [vmem:[%s380 + $0xe0] sm:$0xff]
        %v410 = vld [vmem:[%s380 + $0xe8] sm:$0xff]
        %v411 = vld [vmem:[%s380 + $0xf0] sm:$0xff]
        %v412 = vld [vmem:[%s380 + $0xf8] sm:$0xff]
        %v413 = vld [vmem:[%s380 + $0x100] sm:$0xff]
        %v414 = vld [vmem:[%s380 + $0x108] sm:$0xff]
        %v415 = vld [vmem:[%s380 + $0x110] sm:$0xff]
        %v416 = vld [vmem:[%s380 + $0x118] sm:$0xff]
        %v417 = vld [vmem:[%s380 + $0x120] sm:$0xff]
        %v418 = vld [vmem:[%s380 + $0x128] sm:$0xff]
        %v419 = vld [vmem:[%s380 + $0x130] sm:$0xff]
        %v420 = vld [vmem:[%s380 + $0x138] sm:$0xff]
        %v421 = vld [vmem:[%s380 + $0x140] sm:$0xff]
        %v422 = vld [vmem:[%s380 + $0x148] sm:$0xff]
        %v423 = vld [vmem:[%s380 + $0x150] sm:$0xff]
        %v424 = vld [vmem:[%s380 + $0x158] sm:$0xff]
        %v425 = vld [vmem:[%s380 + $0x160] sm:$0xff]
        %v426 = vld [vmem:[%s380 + $0x168] sm:$0xff]
        %v427 = vld [vmem:[%s380 + $0x170] sm:$0xff]
        %v428 = vld [vmem:[%s380 + $0x178] sm:$0xff]
        %v429 = vld [vmem:[%s380 + $0x180] sm:$0xff]
        %v430 = vld [vmem:[%s380 + $0x188] sm:$0xff]
        %v431 = vld [vmem:[%s380 + $0x190] sm:$0xff]
        %v432 = vld [vmem:[%s380 + $0x198] sm:$0xff]
        %v433 = vld [vmem:[%s380 + $0x1a0] sm:$0xff]
        %v434 = vld [vmem:[%s380 + $0x1a8] sm:$0xff]
        %v435 = vld [vmem:[%s380 + $0x1b0] sm:$0xff]
        %v436 = vld [vmem:[%s380 + $0x1b8] sm:$0xff]
        %v437 = vld [vmem:[%s380 + $0x1c0] sm:$0xff]
        %v438 = vld [vmem:[%s380 + $0x1c8] sm:$0xff]
        %v439 = vld [vmem:[%s380 + $0x1d0] sm:$0xff]
        %v440 = vld [vmem:[%s380 + $0x1d8] sm:$0xff]
        %v441 = vld [vmem:[%s380 + $0x1e0] sm:$0xff]
        %v442 = vld [vmem:[%s380 + $0x1e8] sm:$0xff]
        %v443 = vld [vmem:[%s380 + $0x1f0] sm:$0xff]
        %v444 = vld [vmem:[%s380 + $0x1f8] sm:$0xff]
        %445 = vmatprep.subr.mxu0 %v382
        %446 = vmatpush1.msra.mxu0 %v381
        %447 = vmatprep.subr.mxu0 %v384
        %448 = vmatpush1.msra.mxu0 %v383
        %449 = vmatprep.subr.mxu0 %v386
        %450 = vmatpush1.msra.mxu0 %v385
        %451 = vmatprep.subr.mxu0 %v388
        %452 = vmatpush1.msra.mxu0 %v387
        %453 = vmatprep.subr.mxu0 %v390
        %454 = vmatpush1.msra.mxu0 %v389
        %455 = vmatprep.subr.mxu0 %v392
        %456 = vmatpush1.msra.mxu0 %v391
        %457 = vmatprep.subr.mxu0 %v394
        %458 = vmatpush1.msra.mxu0 %v393
        %459 = vmatprep.subr.mxu0 %v396
        %460 = vmatpush1.msra.mxu0 %v395
        %461 = vmatprep.subr.mxu0 %v398
        %462 = vmatpush1.msra.mxu0 %v397
        %463 = vmatprep.subr.mxu0 %v400
        %464 = vmatpush1.msra.mxu0 %v399
        %465 = vmatprep.subr.mxu0 %v402
        %466 = vmatpush1.msra.mxu0 %v401
        %467 = vmatprep.subr.mxu0 %v404
        %468 = vmatpush1.msra.mxu0 %v403
        %469 = vmatprep.subr.mxu0 %v406
        %470 = vmatpush1.msra.mxu0 %v405
        %471 = vmatprep.subr.mxu0 %v408
        %472 = vmatpush1.msra.mxu0 %v407
        %473 = vmatprep.subr.mxu0 %v410
        %474 = vmatpush1.msra.mxu0 %v409
        %475 = vmatprep.subr.mxu0 %v412
        %476 = vmatpush1.msra.mxu0 %v411
        %477 = vmatprep.subr.mxu0 %v414
        %478 = vmatpush1.msra.mxu0 %v413
        %479 = vmatprep.subr.mxu0 %v416
        %480 = vmatpush1.msra.mxu0 %v415
        %481 = vmatprep.subr.mxu0 %v418
        %482 = vmatpush1.msra.mxu0 %v417
        %483 = vmatprep.subr.mxu0 %v420
        %484 = vmatpush1.msra.mxu0 %v419
        %485 = vmatprep.subr.mxu0 %v422
        %486 = vmatpush1.msra.mxu0 %v421
        %487 = vmatprep.subr.mxu0 %v424
        %488 = vmatpush1.msra.mxu0 %v423
        %489 = vmatprep.subr.mxu0 %v426
        %490 = vmatpush1.msra.mxu0 %v425
        %491 = vmatprep.subr.mxu0 %v428
        %492 = vmatpush1.msra.mxu0 %v427
        %493 = vmatprep.subr.mxu0 %v430
        %494 = vmatpush1.msra.mxu0 %v429
        %495 = vmatprep.subr.mxu0 %v432
        %496 = vmatpush1.msra.mxu0 %v431
        %497 = vmatprep.subr.mxu0 %v434
        %498 = vmatpush1.msra.mxu0 %v433
        %499 = vmatprep.subr.mxu0 %v436
        %500 = vmatpush1.msra.mxu0 %v435
        %501 = vmatprep.subr.mxu0 %v438
        %502 = vmatpush1.msra.mxu0 %v437
        %503 = vmatprep.subr.mxu0 %v440
        %504 = vmatpush1.msra.mxu0 %v439
        %505 = vmatprep.subr.mxu0 %v442
        %506 = vmatpush1.msra.mxu0 %v441
        %507 = vmatprep.subr.mxu0 %v444
        %508 = vmatpush1.msra.mxu0 %v443
        %509 = vmatprep.mubr.f32.mxu0 %v282
        %510 = vmatmul.mubr.f32.gmra.mrb[0].mxu0 %v281
        %v511 = vpop.f32.mrb[0].mxu0
        %v512 = vadd.f32 0.0, %v511
        %v513 = vpop.f32.mrb[0].mxu0
        %v514 = vadd.f32 0.0, %v513
        %515 = vmatprep.mubr.f32.mxu0 %v284
        %516 = vmatmul.mubr.f32.gmra.mrb[0].mxu0 %v283
        %v517 = vpop.f32.mrb[0].mxu0
        %v518 = vadd.f32 0.0, %v517
        %v519 = vpop.f32.mrb[0].mxu0
        %v520 = vadd.f32 0.0, %v519
        %521 = vdwg.mxu0
        %522 = vmatprep.subr.mxu0 %v317
        %523 = vmatpush1.msra.mxu0 %v316
        %524 = vmatprep.subr.mxu0 %v319
        %525 = vmatpush1.msra.mxu0 %v318
        %526 = vmatprep.subr.mxu0 %v321
        %527 = vmatpush1.msra.mxu0 %v320
        %528 = vmatprep.subr.mxu0 %v323
        %529 = vmatpush1.msra.mxu0 %v322
        %530 = vmatprep.subr.mxu0 %v325
        %531 = vmatpush1.msra.mxu0 %v324
        %532 = vmatprep.subr.mxu0 %v327
        %533 = vmatpush1.msra.mxu0 %v326
        %534 = vmatprep.subr.mxu0 %v329
        %535 = vmatpush1.msra.mxu0 %v328
        %536 = vmatprep.subr.mxu0 %v331
        %537 = vmatpush1.msra.mxu0 %v330
        %538 = vmatprep.subr.mxu0 %v333
        %539 = vmatpush1.msra.mxu0 %v332
        %540 = vmatprep.subr.mxu0 %v335
        %541 = vmatpush1.msra.mxu0 %v334
        %542 = vmatprep.subr.mxu0 %v337
        %543 = vmatpush1.msra.mxu0 %v336
        %544 = vmatprep.subr.mxu0 %v339
        %545 = vmatpush1.msra.mxu0 %v338
        %546 = vmatprep.subr.mxu0 %v341
        %547 = vmatpush1.msra.mxu0 %v340
        %548 = vmatprep.subr.mxu0 %v343
        %549 = vmatpush1.msra.mxu0 %v342
        %550 = vmatprep.subr.mxu0 %v345
        %551 = vmatpush1.msra.mxu0 %v344
        %552 = vmatprep.subr.mxu0 %v347
        %553 = vmatpush1.msra.mxu0 %v346
        %554 = vmatprep.subr.mxu0 %v349
        %555 = vmatpush1.msra.mxu0 %v348
        %556 = vmatprep.subr.mxu0 %v351
        %557 = vmatpush1.msra.mxu0 %v350
        %558 = vmatprep.subr.mxu0 %v353
        %559 = vmatpush1.msra.mxu0 %v352
        %560 = vmatprep.subr.mxu0 %v355
        %561 = vmatpush1.msra.mxu0 %v354
        %562 = vmatprep.subr.mxu0 %v357
        %563 = vmatpush1.msra.mxu0 %v356
        %564 = vmatprep.subr.mxu0 %v359
        %565 = vmatpush1.msra.mxu0 %v358
        %566 = vmatprep.subr.mxu0 %v361
        %567 = vmatpush1.msra.mxu0 %v360
        %568 = vmatprep.subr.mxu0 %v363
        %569 = vmatpush1.msra.mxu0 %v362
        %570 = vmatprep.subr.mxu0 %v365
        %571 = vmatpush1.msra.mxu0 %v364
        %572 = vmatprep.subr.mxu0 %v367
        %573 = vmatpush1.msra.mxu0 %v366
        %574 = vmatprep.subr.mxu0 %v369
        %575 = vmatpush1.msra.mxu0 %v368
        %576 = vmatprep.subr.mxu0 %v371
        %577 = vmatpush1.msra.mxu0 %v370
        %578 = vmatprep.subr.mxu0 %v373
        %579 = vmatpush1.msra.mxu0 %v372
        %580 = vmatprep.subr.mxu0 %v375
        %581 = vmatpush1.msra.mxu0 %v374
        %582 = vmatprep.subr.mxu0 %v377
        %583 = vmatpush1.msra.mxu0 %v376
        %584 = vmatprep.subr.mxu0 %v379
        %585 = vmatpush1.msra.mxu0 %v378
        %586 = vmatprep.mubr.f32.mxu0 %v302
        %587 = vmatmul.mubr.f32.gmra.mrb[0].mxu0 %v301
        %v588 = vpop.f32.mrb[0].mxu0
        %v589 = vadd.f32 %v512, %v588
        %v590 = vpop.f32.mrb[0].mxu0
        %v591 = vadd.f32 %v514, %v590
        %592 = vmatprep.mubr.f32.mxu0 %v296
        %593 = vmatmul.mubr.f32.gmra.mrb[0].mxu0 %v294
        %v594 = vpop.f32.mrb[0].mxu0
        %v595 = vadd.f32 %v518, %v594
        %v596 = vpop.f32.mrb[0].mxu0
        %v597 = vadd.f32 %v520, %v596
        %598 = vdwg.mxu0
        %s599 = scalar_lea.vmem [#allocation3], 1024
        %v600 = vld [vmem:[%s599] sm:$0xff]
        %v601 = vld [vmem:[%s599 + $0x8] sm:$0xff]
        %v602 = vld [vmem:[%s599 + $0x10] sm:$0xff]
        %v603 = vld [vmem:[%s599 + $0x18] sm:$0xff]
        %v604 = vld [vmem:[%s599 + $0x20] sm:$0xff]
        %v605 = vld [vmem:[%s599 + $0x28] sm:$0xff]
        %v606 = vld [vmem:[%s599 + $0x30] sm:$0xff]
        %v607 = vld [vmem:[%s599 + $0x38] sm:$0xff]
        %v608 = vld [vmem:[%s599 + $0x40] sm:$0xff]
        %v609 = vld [vmem:[%s599 + $0x48] sm:$0xff]
        %v610 = vld [vmem:[%s599 + $0x50] sm:$0xff]
        %v611 = vld [vmem:[%s599 + $0x58] sm:$0xff]
        %v612 = vld [vmem:[%s599 + $0x60] sm:$0xff]
        %v613 = vld [vmem:[%s599 + $0x68] sm:$0xff]
        %v614 = vld [vmem:[%s599 + $0x70] sm:$0xff]
        %v615 = vld [vmem:[%s599 + $0x78] sm:$0xff]
        %v616 = vld [vmem:[%s599 + $0x80] sm:$0xff]
        %v617 = vld [vmem:[%s599 + $0x88] sm:$0xff]
        %v618 = vld [vmem:[%s599 + $0x90] sm:$0xff]
        %v619 = vld [vmem:[%s599 + $0x98] sm:$0xff]
        %v620 = vld [vmem:[%s599 + $0xa0] sm:$0xff]
        %v621 = vld [vmem:[%s599 + $0xa8] sm:$0xff]
        %v622 = vld [vmem:[%s599 + $0xb0] sm:$0xff]
        %v623 = vld [vmem:[%s599 + $0xb8] sm:$0xff]
        %v624 = vld [vmem:[%s599 + $0xc0] sm:$0xff]
        %v625 = vld [vmem:[%s599 + $0xc8] sm:$0xff]
        %v626 = vld [vmem:[%s599 + $0xd0] sm:$0xff]
        %v627 = vld [vmem:[%s599 + $0xd8] sm:$0xff]
        %v628 = vld [vmem:[%s599 + $0xe0] sm:$0xff]
        %v629 = vld [vmem:[%s599 + $0xe8] sm:$0xff]
        %v630 = vld [vmem:[%s599 + $0xf0] sm:$0xff]
        %v631 = vld [vmem:[%s599 + $0xf8] sm:$0xff]
        %v632 = vld [vmem:[%s599 + $0x100] sm:$0xff]
        %v633 = vld [vmem:[%s599 + $0x108] sm:$0xff]
        %v634 = vld [vmem:[%s599 + $0x110] sm:$0xff]
        %v635 = vld [vmem:[%s599 + $0x118] sm:$0xff]
        %v636 = vld [vmem:[%s599 + $0x120] sm:$0xff]
        %v637 = vld [vmem:[%s599 + $0x128] sm:$0xff]
        %v638 = vld [vmem:[%s599 + $0x130] sm:$0xff]
        %v639 = vld [vmem:[%s599 + $0x138] sm:$0xff]
        %v640 = vld [vmem:[%s599 + $0x140] sm:$0xff]
        %v641 = vld [vmem:[%s599 + $0x148] sm:$0xff]
        %v642 = vld [vmem:[%s599 + $0x150] sm:$0xff]
        %v643 = vld [vmem:[%s599 + $0x158] sm:$0xff]
        %v644 = vld [vmem:[%s599 + $0x160] sm:$0xff]
        %v645 = vld [vmem:[%s599 + $0x168] sm:$0xff]
        %v646 = vld [vmem:[%s599 + $0x170] sm:$0xff]
        %v647 = vld [vmem:[%s599 + $0x178] sm:$0xff]
        %v648 = vld [vmem:[%s599 + $0x180] sm:$0xff]
        %v649 = vld [vmem:[%s599 + $0x188] sm:$0xff]
        %v650 = vld [vmem:[%s599 + $0x190] sm:$0xff]
        %v651 = vld [vmem:[%s599 + $0x198] sm:$0xff]
        %v652 = vld [vmem:[%s599 + $0x1a0] sm:$0xff]
        %v653 = vld [vmem:[%s599 + $0x1a8] sm:$0xff]
        %v654 = vld [vmem:[%s599 + $0x1b0] sm:$0xff]
        %v655 = vld [vmem:[%s599 + $0x1b8] sm:$0xff]
        %v656 = vld [vmem:[%s599 + $0x1c0] sm:$0xff]
        %v657 = vld [vmem:[%s599 + $0x1c8] sm:$0xff]
        %v658 = vld [vmem:[%s599 + $0x1d0] sm:$0xff]
        %v659 = vld [vmem:[%s599 + $0x1d8] sm:$0xff]
        %v660 = vld [vmem:[%s599 + $0x1e0] sm:$0xff]
        %v661 = vld [vmem:[%s599 + $0x1e8] sm:$0xff]
        %v662 = vld [vmem:[%s599 + $0x1f0] sm:$0xff]
        %v663 = vld [vmem:[%s599 + $0x1f8] sm:$0xff]
        %664 = vmatprep.subr.mxu0 %v601
        %665 = vmatpush1.msra.mxu0 %v600
        %666 = vmatprep.subr.mxu0 %v603
        %667 = vmatpush1.msra.mxu0 %v602
        %668 = vmatprep.subr.mxu0 %v605
        %669 = vmatpush1.msra.mxu0 %v604
        %670 = vmatprep.subr.mxu0 %v607
        %671 = vmatpush1.msra.mxu0 %v606
        %672 = vmatprep.subr.mxu0 %v609
        %673 = vmatpush1.msra.mxu0 %v608
        %674 = vmatprep.subr.mxu0 %v611
        %675 = vmatpush1.msra.mxu0 %v610
        %676 = vmatprep.subr.mxu0 %v613
        %677 = vmatpush1.msra.mxu0 %v612
        %678 = vmatprep.subr.mxu0 %v615
        %679 = vmatpush1.msra.mxu0 %v614
        %680 = vmatprep.subr.mxu0 %v617
        %681 = vmatpush1.msra.mxu0 %v616
        %682 = vmatprep.subr.mxu0 %v619
        %683 = vmatpush1.msra.mxu0 %v618
        %684 = vmatprep.subr.mxu0 %v621
        %685 = vmatpush1.msra.mxu0 %v620
        %686 = vmatprep.subr.mxu0 %v623
        %687 = vmatpush1.msra.mxu0 %v622
        %688 = vmatprep.subr.mxu0 %v625
        %689 = vmatpush1.msra.mxu0 %v624
        %690 = vmatprep.subr.mxu0 %v627
        %691 = vmatpush1.msra.mxu0 %v626
        %692 = vmatprep.subr.mxu0 %v629
        %693 = vmatpush1.msra.mxu0 %v628
        %694 = vmatprep.subr.mxu0 %v631
        %695 = vmatpush1.msra.mxu0 %v630
        %696 = vmatprep.subr.mxu0 %v633
        %697 = vmatpush1.msra.mxu0 %v632
        %698 = vmatprep.subr.mxu0 %v635
        %699 = vmatpush1.msra.mxu0 %v634
        %700 = vmatprep.subr.mxu0 %v637
        %701 = vmatpush1.msra.mxu0 %v636
        %702 = vmatprep.subr.mxu0 %v639
        %703 = vmatpush1.msra.mxu0 %v638
        %704 = vmatprep.subr.mxu0 %v641
        %705 = vmatpush1.msra.mxu0 %v640
        %706 = vmatprep.subr.mxu0 %v643
        %707 = vmatpush1.msra.mxu0 %v642
        %708 = vmatprep.subr.mxu0 %v645
        %709 = vmatpush1.msra.mxu0 %v644
        %710 = vmatprep.subr.mxu0 %v647
        %711 = vmatpush1.msra.mxu0 %v646
        %712 = vmatprep.subr.mxu0 %v649
        %713 = vmatpush1.msra.mxu0 %v648
        %714 = vmatprep.subr.mxu0 %v651
        %715 = vmatpush1.msra.mxu0 %v650
        %716 = vmatprep.subr.mxu0 %v653
        %717 = vmatpush1.msra.mxu0 %v652
        %718 = vmatprep.subr.mxu0 %v655
        %719 = vmatpush1.msra.mxu0 %v654
        %720 = vmatprep.subr.mxu0 %v657
        %721 = vmatpush1.msra.mxu0 %v656
        %722 = vmatprep.subr.mxu0 %v659
        %723 = vmatpush1.msra.mxu0 %v658
        %724 = vmatprep.subr.mxu0 %v661
        %725 = vmatpush1.msra.mxu0 %v660
        %726 = vmatprep.subr.mxu0 %v663
        %727 = vmatpush1.msra.mxu0 %v662
        %728 = vmatprep.mubr.f32.mxu0 %v309
        %729 = vmatmul.mubr.f32.gmra.mrb[0].mxu0 %v306
        %v730 = vpop.f32.mrb[0].mxu0
        %v731 = vadd.f32 0.0, %v730
        %v732 = vpop.f32.mrb[0].mxu0
        %v733 = vadd.f32 0.0, %v732
        %734 = vmatprep.mubr.f32.mxu0 %v315
        %735 = vmatmul.mubr.f32.gmra.mrb[0].mxu0 %v314
        %v736 = vpop.f32.mrb[0].mxu0
        %v737 = vadd.f32 0.0, %v736
        %v738 = vpop.f32.mrb[0].mxu0
        %v739 = vadd.f32 0.0, %v738
        %740 = vdwg.mxu0
        %v741 = vadd.f32 %v589, %v731
        %v742 = vadd.f32 %v591, %v733
        %v743 = vadd.f32 %v595, %v737
        %v744 = vadd.f32 %v597, %v739
        %vm745 = vcmp.gt.f32.partialorder %v741, 0.0
        %vm746 = vcmp.gt.f32.partialorder %v742, 0.0
        %vm747 = vcmp.gt.f32.partialorder %v743, 0.0
        %vm748 = vcmp.gt.f32.partialorder %v744, 0.0
        %v749 = vstv %s285
        %v750 = vmul.f32 %v749, %v741
        %v751 = vmul.f32 %v749, %v742
        %v752 = vmul.f32 %v749, %v743
        %v753 = vmul.f32 %v749, %v744
        %v754 = vsel %vm745, %v741, %v750
        %v755 = vsel %vm746, %v742, %v751
        %v756 = vsel %vm747, %v743, %v752
        %v757 = vsel %vm748, %v744, %v753
        %v762 = vrot.slane %v754, 7
        %v763 = vrot.slane %v755, 7
        %v764 = vrot.slane %v756, 7
        %v765 = vsel %vm290, %v762, %v764
        %v766 = vrot.slane %v757, 7
        %v767 = vsel %vm290, %v763, %v766
        %v772 = vsel %vm290, 0.0, %v762
        %v773 = vsel %vm290, 0.0, %v763
        %v774 = vrot.slane %v754, 1
        %v775 = vrot.slane %v756, 1
        %v776 = vsel %vm303, %v774, %v775
        %v777 = vrot.slane %v755, 1
        %v778 = vrot.slane %v757, 1
        %v779 = vsel %vm303, %v777, %v778
        %v784 = vsel %vm303, %v775, 0.0
        %v785 = vsel %vm303, %v778, 0.0
        %v786 = vld [vmem:[#allocation6] sm:$0xff]
        %v787 = vld [vmem:[#allocation6 + $0x8] sm:$0xff]
        %v788 = vld [vmem:[#allocation6 + $0x10] sm:$0xff]
        %v789 = vld [vmem:[#allocation6 + $0x18] sm:$0xff]
        %v790 = vld [vmem:[#allocation6 + $0x20] sm:$0xff]
        %v791 = vld [vmem:[#allocation6 + $0x28] sm:$0xff]
        %v792 = vld [vmem:[#allocation6 + $0x30] sm:$0xff]
        %v793 = vld [vmem:[#allocation6 + $0x38] sm:$0xff]
        %v794 = vld [vmem:[#allocation6 + $0x40] sm:$0xff]
        %v795 = vld [vmem:[#allocation6 + $0x48] sm:$0xff]
        %v796 = vld [vmem:[#allocation6 + $0x50] sm:$0xff]
        %v797 = vld [vmem:[#allocation6 + $0x58] sm:$0xff]
        %v798 = vld [vmem:[#allocation6 + $0x60] sm:$0xff]
        %v799 = vld [vmem:[#allocation6 + $0x68] sm:$0xff]
        %v800 = vld [vmem:[#allocation6 + $0x70] sm:$0xff]
        %v801 = vld [vmem:[#allocation6 + $0x78] sm:$0xff]
        %v802 = vld [vmem:[#allocation6 + $0x80] sm:$0xff]
        %v803 = vld [vmem:[#allocation6 + $0x88] sm:$0xff]
        %v804 = vld [vmem:[#allocation6 + $0x90] sm:$0xff]
        %v805 = vld [vmem:[#allocation6 + $0x98] sm:$0xff]
        %v806 = vld [vmem:[#allocation6 + $0xa0] sm:$0xff]
        %v807 = vld [vmem:[#allocation6 + $0xa8] sm:$0xff]
        %v808 = vld [vmem:[#allocation6 + $0xb0] sm:$0xff]
        %v809 = vld [vmem:[#allocation6 + $0xb8] sm:$0xff]
        %v810 = vld [vmem:[#allocation6 + $0xc0] sm:$0xff]
        %v811 = vld [vmem:[#allocation6 + $0xc8] sm:$0xff]
        %v812 = vld [vmem:[#allocation6 + $0xd0] sm:$0xff]
        %v813 = vld [vmem:[#allocation6 + $0xd8] sm:$0xff]
        %v814 = vld [vmem:[#allocation6 + $0xe0] sm:$0xff]
        %v815 = vld [vmem:[#allocation6 + $0xe8] sm:$0xff]
        %v816 = vld [vmem:[#allocation6 + $0xf0] sm:$0xff]
        %v817 = vld [vmem:[#allocation6 + $0xf8] sm:$0xff]
        %v818 = vld [vmem:[#allocation6 + $0x100] sm:$0xff]
        %v819 = vld [vmem:[#allocation6 + $0x108] sm:$0xff]
        %v820 = vld [vmem:[#allocation6 + $0x110] sm:$0xff]
        %v821 = vld [vmem:[#allocation6 + $0x118] sm:$0xff]
        %v822 = vld [vmem:[#allocation6 + $0x120] sm:$0xff]
        %v823 = vld [vmem:[#allocation6 + $0x128] sm:$0xff]
        %v824 = vld [vmem:[#allocation6 + $0x130] sm:$0xff]
        %v825 = vld [vmem:[#allocation6 + $0x138] sm:$0xff]
        %v826 = vld [vmem:[#allocation6 + $0x140] sm:$0xff]
        %v827 = vld [vmem:[#allocation6 + $0x148] sm:$0xff]
        %v828 = vld [vmem:[#allocation6 + $0x150] sm:$0xff]
        %v829 = vld [vmem:[#allocation6 + $0x158] sm:$0xff]
        %v830 = vld [vmem:[#allocation6 + $0x160] sm:$0xff]
        %v831 = vld [vmem:[#allocation6 + $0x168] sm:$0xff]
        %v832 = vld [vmem:[#allocation6 + $0x170] sm:$0xff]
        %v833 = vld [vmem:[#allocation6 + $0x178] sm:$0xff]
        %v834 = vld [vmem:[#allocation6 + $0x180] sm:$0xff]
        %v835 = vld [vmem:[#allocation6 + $0x188] sm:$0xff]
        %v836 = vld [vmem:[#allocation6 + $0x190] sm:$0xff]
        %v837 = vld [vmem:[#allocation6 + $0x198] sm:$0xff]
        %v838 = vld [vmem:[#allocation6 + $0x1a0] sm:$0xff]
        %v839 = vld [vmem:[#allocation6 + $0x1a8] sm:$0xff]
        %v840 = vld [vmem:[#allocation6 + $0x1b0] sm:$0xff]
        %v841 = vld [vmem:[#allocation6 + $0x1b8] sm:$0xff]
        %v842 = vld [vmem:[#allocation6 + $0x1c0] sm:$0xff]
        %v843 = vld [vmem:[#allocation6 + $0x1c8] sm:$0xff]
        %v844 = vld [vmem:[#allocation6 + $0x1d0] sm:$0xff]
        %v845 = vld [vmem:[#allocation6 + $0x1d8] sm:$0xff]
        %v846 = vld [vmem:[#allocation6 + $0x1e0] sm:$0xff]
        %v847 = vld [vmem:[#allocation6 + $0x1e8] sm:$0xff]
        %v848 = vld [vmem:[#allocation6 + $0x1f0] sm:$0xff]
        %v849 = vld [vmem:[#allocation6 + $0x1f8] sm:$0xff]
        %s850 = scalar_lea.vmem [#allocation6], 512
        %v851 = vld [vmem:[%s850] sm:$0xff]
        %v852 = vld [vmem:[%s850 + $0x8] sm:$0xff]
        %v853 = vld [vmem:[%s850 + $0x10] sm:$0xff]
        %v854 = vld [vmem:[%s850 + $0x18] sm:$0xff]
        %v855 = vld [vmem:[%s850 + $0x20] sm:$0xff]
        %v856 = vld [vmem:[%s850 + $0x28] sm:$0xff]
        %v857 = vld [vmem:[%s850 + $0x30] sm:$0xff]
        %v858 = vld [vmem:[%s850 + $0x38] sm:$0xff]
        %v859 = vld [vmem:[%s850 + $0x40] sm:$0xff]
        %v860 = vld [vmem:[%s850 + $0x48] sm:$0xff]
        %v861 = vld [vmem:[%s850 + $0x50] sm:$0xff]
        %v862 = vld [vmem:[%s850 + $0x58] sm:$0xff]
        %v863 = vld [vmem:[%s850 + $0x60] sm:$0xff]
        %v864 = vld [vmem:[%s850 + $0x68] sm:$0xff]
        %v865 = vld [vmem:[%s850 + $0x70] sm:$0xff]
        %v866 = vld [vmem:[%s850 + $0x78] sm:$0xff]
        %v867 = vld [vmem:[%s850 + $0x80] sm:$0xff]
        %v868 = vld [vmem:[%s850 + $0x88] sm:$0xff]
        %v869 = vld [vmem:[%s850 + $0x90] sm:$0xff]
        %v870 = vld [vmem:[%s850 + $0x98] sm:$0xff]
        %v871 = vld [vmem:[%s850 + $0xa0] sm:$0xff]
        %v872 = vld [vmem:[%s850 + $0xa8] sm:$0xff]
        %v873 = vld [vmem:[%s850 + $0xb0] sm:$0xff]
        %v874 = vld [vmem:[%s850 + $0xb8] sm:$0xff]
        %v875 = vld [vmem:[%s850 + $0xc0] sm:$0xff]
        %v876 = vld [vmem:[%s850 + $0xc8] sm:$0xff]
        %v877 = vld [vmem:[%s850 + $0xd0] sm:$0xff]
        %v878 = vld [vmem:[%s850 + $0xd8] sm:$0xff]
        %v879 = vld [vmem:[%s850 + $0xe0] sm:$0xff]
        %v880 = vld [vmem:[%s850 + $0xe8] sm:$0xff]
        %v881 = vld [vmem:[%s850 + $0xf0] sm:$0xff]
        %v882 = vld [vmem:[%s850 + $0xf8] sm:$0xff]
        %v883 = vld [vmem:[%s850 + $0x100] sm:$0xff]
        %v884 = vld [vmem:[%s850 + $0x108] sm:$0xff]
        %v885 = vld [vmem:[%s850 + $0x110] sm:$0xff]
        %v886 = vld [vmem:[%s850 + $0x118] sm:$0xff]
        %v887 = vld [vmem:[%s850 + $0x120] sm:$0xff]
        %v888 = vld [vmem:[%s850 + $0x128] sm:$0xff]
        %v889 = vld [vmem:[%s850 + $0x130] sm:$0xff]
        %v890 = vld [vmem:[%s850 + $0x138] sm:$0xff]
        %v891 = vld [vmem:[%s850 + $0x140] sm:$0xff]
        %v892 = vld [vmem:[%s850 + $0x148] sm:$0xff]
        %v893 = vld [vmem:[%s850 + $0x150] sm:$0xff]
        %v894 = vld [vmem:[%s850 + $0x158] sm:$0xff]
        %v895 = vld [vmem:[%s850 + $0x160] sm:$0xff]
        %v896 = vld [vmem:[%s850 + $0x168] sm:$0xff]
        %v897 = vld [vmem:[%s850 + $0x170] sm:$0xff]
        %v898 = vld [vmem:[%s850 + $0x178] sm:$0xff]
        %v899 = vld [vmem:[%s850 + $0x180] sm:$0xff]
        %v900 = vld [vmem:[%s850 + $0x188] sm:$0xff]
        %v901 = vld [vmem:[%s850 + $0x190] sm:$0xff]
        %v902 = vld [vmem:[%s850 + $0x198] sm:$0xff]
        %v903 = vld [vmem:[%s850 + $0x1a0] sm:$0xff]
        %v904 = vld [vmem:[%s850 + $0x1a8] sm:$0xff]
        %v905 = vld [vmem:[%s850 + $0x1b0] sm:$0xff]
        %v906 = vld [vmem:[%s850 + $0x1b8] sm:$0xff]
        %v907 = vld [vmem:[%s850 + $0x1c0] sm:$0xff]
        %v908 = vld [vmem:[%s850 + $0x1c8] sm:$0xff]
        %v909 = vld [vmem:[%s850 + $0x1d0] sm:$0xff]
        %v910 = vld [vmem:[%s850 + $0x1d8] sm:$0xff]
        %v911 = vld [vmem:[%s850 + $0x1e0] sm:$0xff]
        %v912 = vld [vmem:[%s850 + $0x1e8] sm:$0xff]
        %v913 = vld [vmem:[%s850 + $0x1f0] sm:$0xff]
        %v914 = vld [vmem:[%s850 + $0x1f8] sm:$0xff]
        %915 = vmatprep.subr.mxu0 %v852
        %916 = vmatpush1.msra.mxu0 %v851
        %917 = vmatprep.subr.mxu0 %v854
        %918 = vmatpush1.msra.mxu0 %v853
        %919 = vmatprep.subr.mxu0 %v856
        %920 = vmatpush1.msra.mxu0 %v855
        %921 = vmatprep.subr.mxu0 %v858
        %922 = vmatpush1.msra.mxu0 %v857
        %923 = vmatprep.subr.mxu0 %v860
        %924 = vmatpush1.msra.mxu0 %v859
        %925 = vmatprep.subr.mxu0 %v862
        %926 = vmatpush1.msra.mxu0 %v861
        %927 = vmatprep.subr.mxu0 %v864
        %928 = vmatpush1.msra.mxu0 %v863
        %929 = vmatprep.subr.mxu0 %v866
        %930 = vmatpush1.msra.mxu0 %v865
        %931 = vmatprep.subr.mxu0 %v868
        %932 = vmatpush1.msra.mxu0 %v867
        %933 = vmatprep.subr.mxu0 %v870
        %934 = vmatpush1.msra.mxu0 %v869
        %935 = vmatprep.subr.mxu0 %v872
        %936 = vmatpush1.msra.mxu0 %v871
        %937 = vmatprep.subr.mxu0 %v874
        %938 = vmatpush1.msra.mxu0 %v873
        %939 = vmatprep.subr.mxu0 %v876
        %940 = vmatpush1.msra.mxu0 %v875
        %941 = vmatprep.subr.mxu0 %v878
        %942 = vmatpush1.msra.mxu0 %v877
        %943 = vmatprep.subr.mxu0 %v880
        %944 = vmatpush1.msra.mxu0 %v879
        %945 = vmatprep.subr.mxu0 %v882
        %946 = vmatpush1.msra.mxu0 %v881
        %947 = vmatprep.subr.mxu0 %v884
        %948 = vmatpush1.msra.mxu0 %v883
        %949 = vmatprep.subr.mxu0 %v886
        %950 = vmatpush1.msra.mxu0 %v885
        %951 = vmatprep.subr.mxu0 %v888
        %952 = vmatpush1.msra.mxu0 %v887
        %953 = vmatprep.subr.mxu0 %v890
        %954 = vmatpush1.msra.mxu0 %v889
        %955 = vmatprep.subr.mxu0 %v892
        %956 = vmatpush1.msra.mxu0 %v891
        %957 = vmatprep.subr.mxu0 %v894
        %958 = vmatpush1.msra.mxu0 %v893
        %959 = vmatprep.subr.mxu0 %v896
        %960 = vmatpush1.msra.mxu0 %v895
        %961 = vmatprep.subr.mxu0 %v898
        %962 = vmatpush1.msra.mxu0 %v897
        %963 = vmatprep.subr.mxu0 %v900
        %964 = vmatpush1.msra.mxu0 %v899
        %965 = vmatprep.subr.mxu0 %v902
        %966 = vmatpush1.msra.mxu0 %v901
        %967 = vmatprep.subr.mxu0 %v904
        %968 = vmatpush1.msra.mxu0 %v903
        %969 = vmatprep.subr.mxu0 %v906
        %970 = vmatpush1.msra.mxu0 %v905
        %971 = vmatprep.subr.mxu0 %v908
        %972 = vmatpush1.msra.mxu0 %v907
        %973 = vmatprep.subr.mxu0 %v910
        %974 = vmatpush1.msra.mxu0 %v909
        %975 = vmatprep.subr.mxu0 %v912
        %976 = vmatpush1.msra.mxu0 %v911
        %977 = vmatprep.subr.mxu0 %v914
        %978 = vmatpush1.msra.mxu0 %v913
        %979 = vmatprep.mubr.f32.mxu0 %v755
        %980 = vmatmul.mubr.f32.gmra.mrb[0].mxu0 %v754
        %v981 = vpop.f32.mrb[0].mxu0
        %v982 = vadd.f32 0.0, %v981
        %v983 = vpop.f32.mrb[0].mxu0
        %v984 = vadd.f32 0.0, %v983
        %985 = vmatprep.mubr.f32.mxu0 %v757
        %986 = vmatmul.mubr.f32.gmra.mrb[0].mxu0 %v756
        %v987 = vpop.f32.mrb[0].mxu0
        %v988 = vadd.f32 0.0, %v987
        %v989 = vpop.f32.mrb[0].mxu0
        %v990 = vadd.f32 0.0, %v989
        %991 = vdwg.mxu0
        %992 = vmatprep.subr.mxu0 %v787
        %993 = vmatpush1.msra.mxu0 %v786
        %994 = vmatprep.subr.mxu0 %v789
        %995 = vmatpush1.msra.mxu0 %v788
        %996 = vmatprep.subr.mxu0 %v791
        %997 = vmatpush1.msra.mxu0 %v790
        %998 = vmatprep.subr.mxu0 %v793
        %999 = vmatpush1.msra.mxu0 %v792
        %1000 = vmatprep.subr.mxu0 %v795
        %1001 = vmatpush1.msra.mxu0 %v794
        %1002 = vmatprep.subr.mxu0 %v797
        %1003 = vmatpush1.msra.mxu0 %v796
        %1004 = vmatprep.subr.mxu0 %v799
        %1005 = vmatpush1.msra.mxu0 %v798
        %1006 = vmatprep.subr.mxu0 %v801
        %1007 = vmatpush1.msra.mxu0 %v800
        %1008 = vmatprep.subr.mxu0 %v803
        %1009 = vmatpush1.msra.mxu0 %v802
        %1010 = vmatprep.subr.mxu0 %v805
        %1011 = vmatpush1.msra.mxu0 %v804
        %1012 = vmatprep.subr.mxu0 %v807
        %1013 = vmatpush1.msra.mxu0 %v806
        %1014 = vmatprep.subr.mxu0 %v809
        %1015 = vmatpush1.msra.mxu0 %v808
        %1016 = vmatprep.subr.mxu0 %v811
        %1017 = vmatpush1.msra.mxu0 %v810
        %1018 = vmatprep.subr.mxu0 %v813
        %1019 = vmatpush1.msra.mxu0 %v812
        %1020 = vmatprep.subr.mxu0 %v815
        %1021 = vmatpush1.msra.mxu0 %v814
        %1022 = vmatprep.subr.mxu0 %v817
        %1023 = vmatpush1.msra.mxu0 %v816
        %1024 = vmatprep.subr.mxu0 %v819
        %1025 = vmatpush1.msra.mxu0 %v818
        %1026 = vmatprep.subr.mxu0 %v821
        %1027 = vmatpush1.msra.mxu0 %v820
        %1028 = vmatprep.subr.mxu0 %v823
        %1029 = vmatpush1.msra.mxu0 %v822
        %1030 = vmatprep.subr.mxu0 %v825
        %1031 = vmatpush1.msra.mxu0 %v824
        %1032 = vmatprep.subr.mxu0 %v827
        %1033 = vmatpush1.msra.mxu0 %v826
        %1034 = vmatprep.subr.mxu0 %v829
        %1035 = vmatpush1.msra.mxu0 %v828
        %1036 = vmatprep.subr.mxu0 %v831
        %1037 = vmatpush1.msra.mxu0 %v830
        %1038 = vmatprep.subr.mxu0 %v833
        %1039 = vmatpush1.msra.mxu0 %v832
        %1040 = vmatprep.subr.mxu0 %v835
        %1041 = vmatpush1.msra.mxu0 %v834
        %1042 = vmatprep.subr.mxu0 %v837
        %1043 = vmatpush1.msra.mxu0 %v836
        %1044 = vmatprep.subr.mxu0 %v839
        %1045 = vmatpush1.msra.mxu0 %v838
        %1046 = vmatprep.subr.mxu0 %v841
        %1047 = vmatpush1.msra.mxu0 %v840
        %1048 = vmatprep.subr.mxu0 %v843
        %1049 = vmatpush1.msra.mxu0 %v842
        %1050 = vmatprep.subr.mxu0 %v845
        %1051 = vmatpush1.msra.mxu0 %v844
        %1052 = vmatprep.subr.mxu0 %v847
        %1053 = vmatpush1.msra.mxu0 %v846
        %1054 = vmatprep.subr.mxu0 %v849
        %1055 = vmatpush1.msra.mxu0 %v848
        %1056 = vmatprep.mubr.f32.mxu0 %v773
        %1057 = vmatmul.mubr.f32.gmra.mrb[0].mxu0 %v772
        %v1058 = vpop.f32.mrb[0].mxu0
        %v1059 = vadd.f32 %v982, %v1058
        %v1060 = vpop.f32.mrb[0].mxu0
        %v1061 = vadd.f32 %v984, %v1060
        %1062 = vmatprep.mubr.f32.mxu0 %v767
        %1063 = vmatmul.mubr.f32.gmra.mrb[0].mxu0 %v765
        %v1064 = vpop.f32.mrb[0].mxu0
        %v1065 = vadd.f32 %v988, %v1064
        %v1066 = vpop.f32.mrb[0].mxu0
        %v1067 = vadd.f32 %v990, %v1066
        %1068 = vdwg.mxu0
        %s1069 = scalar_lea.vmem [#allocation6], 1024
        %v1070 = vld [vmem:[%s1069] sm:$0xff]
        %v1071 = vld [vmem:[%s1069 + $0x8] sm:$0xff]
        %v1072 = vld [vmem:[%s1069 + $0x10] sm:$0xff]
        %v1073 = vld [vmem:[%s1069 + $0x18] sm:$0xff]
        %v1074 = vld [vmem:[%s1069 + $0x20] sm:$0xff]
        %v1075 = vld [vmem:[%s1069 + $0x28] sm:$0xff]
        %v1076 = vld [vmem:[%s1069 + $0x30] sm:$0xff]
        %v1077 = vld [vmem:[%s1069 + $0x38] sm:$0xff]
        %v1078 = vld [vmem:[%s1069 + $0x40] sm:$0xff]
        %v1079 = vld [vmem:[%s1069 + $0x48] sm:$0xff]
        %v1080 = vld [vmem:[%s1069 + $0x50] sm:$0xff]
        %v1081 = vld [vmem:[%s1069 + $0x58] sm:$0xff]
        %v1082 = vld [vmem:[%s1069 + $0x60] sm:$0xff]
        %v1083 = vld [vmem:[%s1069 + $0x68] sm:$0xff]
        %v1084 = vld [vmem:[%s1069 + $0x70] sm:$0xff]
        %v1085 = vld [vmem:[%s1069 + $0x78] sm:$0xff]
        %v1086 = vld [vmem:[%s1069 + $0x80] sm:$0xff]
        %v1087 = vld [vmem:[%s1069 + $0x88] sm:$0xff]
        %v1088 = vld [vmem:[%s1069 + $0x90] sm:$0xff]
        %v1089 = vld [vmem:[%s1069 + $0x98] sm:$0xff]
        %v1090 = vld [vmem:[%s1069 + $0xa0] sm:$0xff]
        %v1091 = vld [vmem:[%s1069 + $0xa8] sm:$0xff]
        %v1092 = vld [vmem:[%s1069 + $0xb0] sm:$0xff]
        %v1093 = vld [vmem:[%s1069 + $0xb8] sm:$0xff]
        %v1094 = vld [vmem:[%s1069 + $0xc0] sm:$0xff]
        %v1095 = vld [vmem:[%s1069 + $0xc8] sm:$0xff]
        %v1096 = vld [vmem:[%s1069 + $0xd0] sm:$0xff]
        %v1097 = vld [vmem:[%s1069 + $0xd8] sm:$0xff]
        %v1098 = vld [vmem:[%s1069 + $0xe0] sm:$0xff]
        %v1099 = vld [vmem:[%s1069 + $0xe8] sm:$0xff]
        %v1100 = vld [vmem:[%s1069 + $0xf0] sm:$0xff]
        %v1101 = vld [vmem:[%s1069 + $0xf8] sm:$0xff]
        %v1102 = vld [vmem:[%s1069 + $0x100] sm:$0xff]
        %v1103 = vld [vmem:[%s1069 + $0x108] sm:$0xff]
        %v1104 = vld [vmem:[%s1069 + $0x110] sm:$0xff]
        %v1105 = vld [vmem:[%s1069 + $0x118] sm:$0xff]
        %v1106 = vld [vmem:[%s1069 + $0x120] sm:$0xff]
        %v1107 = vld [vmem:[%s1069 + $0x128] sm:$0xff]
        %v1108 = vld [vmem:[%s1069 + $0x130] sm:$0xff]
        %v1109 = vld [vmem:[%s1069 + $0x138] sm:$0xff]
        %v1110 = vld [vmem:[%s1069 + $0x140] sm:$0xff]
        %v1111 = vld [vmem:[%s1069 + $0x148] sm:$0xff]
        %v1112 = vld [vmem:[%s1069 + $0x150] sm:$0xff]
        %v1113 = vld [vmem:[%s1069 + $0x158] sm:$0xff]
        %v1114 = vld [vmem:[%s1069 + $0x160] sm:$0xff]
        %v1115 = vld [vmem:[%s1069 + $0x168] sm:$0xff]
        %v1116 = vld [vmem:[%s1069 + $0x170] sm:$0xff]
        %v1117 = vld [vmem:[%s1069 + $0x178] sm:$0xff]
        %v1118 = vld [vmem:[%s1069 + $0x180] sm:$0xff]
        %v1119 = vld [vmem:[%s1069 + $0x188] sm:$0xff]
        %v1120 = vld [vmem:[%s1069 + $0x190] sm:$0xff]
        %v1121 = vld [vmem:[%s1069 + $0x198] sm:$0xff]
        %v1122 = vld [vmem:[%s1069 + $0x1a0] sm:$0xff]
        %v1123 = vld [vmem:[%s1069 + $0x1a8] sm:$0xff]
        %v1124 = vld [vmem:[%s1069 + $0x1b0] sm:$0xff]
        %v1125 = vld [vmem:[%s1069 + $0x1b8] sm:$0xff]
        %v1126 = vld [vmem:[%s1069 + $0x1c0] sm:$0xff]
        %v1127 = vld [vmem:[%s1069 + $0x1c8] sm:$0xff]
        %v1128 = vld [vmem:[%s1069 + $0x1d0] sm:$0xff]
        %v1129 = vld [vmem:[%s1069 + $0x1d8] sm:$0xff]
        %v1130 = vld [vmem:[%s1069 + $0x1e0] sm:$0xff]
        %v1131 = vld [vmem:[%s1069 + $0x1e8] sm:$0xff]
        %v1132 = vld [vmem:[%s1069 + $0x1f0] sm:$0xff]
        %v1133 = vld [vmem:[%s1069 + $0x1f8] sm:$0xff]
        %1134 = vmatprep.subr.mxu0 %v1071
        %1135 = vmatpush1.msra.mxu0 %v1070
        %1136 = vmatprep.subr.mxu0 %v1073
        %1137 = vmatpush1.msra.mxu0 %v1072
        %1138 = vmatprep.subr.mxu0 %v1075
        %1139 = vmatpush1.msra.mxu0 %v1074
        %1140 = vmatprep.subr.mxu0 %v1077
        %1141 = vmatpush1.msra.mxu0 %v1076
        %1142 = vmatprep.subr.mxu0 %v1079
        %1143 = vmatpush1.msra.mxu0 %v1078
        %1144 = vmatprep.subr.mxu0 %v1081
        %1145 = vmatpush1.msra.mxu0 %v1080
        %1146 = vmatprep.subr.mxu0 %v1083
        %1147 = vmatpush1.msra.mxu0 %v1082
        %1148 = vmatprep.subr.mxu0 %v1085
        %1149 = vmatpush1.msra.mxu0 %v1084
        %1150 = vmatprep.subr.mxu0 %v1087
        %1151 = vmatpush1.msra.mxu0 %v1086
        %1152 = vmatprep.subr.mxu0 %v1089
        %1153 = vmatpush1.msra.mxu0 %v1088
        %1154 = vmatprep.subr.mxu0 %v1091
        %1155 = vmatpush1.msra.mxu0 %v1090
        %1156 = vmatprep.subr.mxu0 %v1093
        %1157 = vmatpush1.msra.mxu0 %v1092
        %1158 = vmatprep.subr.mxu0 %v1095
        %1159 = vmatpush1.msra.mxu0 %v1094
        %1160 = vmatprep.subr.mxu0 %v1097
        %1161 = vmatpush1.msra.mxu0 %v1096
        %1162 = vmatprep.subr.mxu0 %v1099
        %1163 = vmatpush1.msra.mxu0 %v1098
        %1164 = vmatprep.subr.mxu0 %v1101
        %1165 = vmatpush1.msra.mxu0 %v1100
        %1166 = vmatprep.subr.mxu0 %v1103
        %1167 = vmatpush1.msra.mxu0 %v1102
        %1168 = vmatprep.subr.mxu0 %v1105
        %1169 = vmatpush1.msra.mxu0 %v1104
        %1170 = vmatprep.subr.mxu0 %v1107
        %1171 = vmatpush1.msra.mxu0 %v1106
        %1172 = vmatprep.subr.mxu0 %v1109
        %1173 = vmatpush1.msra.mxu0 %v1108
        %1174 = vmatprep.subr.mxu0 %v1111
        %1175 = vmatpush1.msra.mxu0 %v1110
        %1176 = vmatprep.subr.mxu0 %v1113
        %1177 = vmatpush1.msra.mxu0 %v1112
        %1178 = vmatprep.subr.mxu0 %v1115
        %1179 = vmatpush1.msra.mxu0 %v1114
        %1180 = vmatprep.subr.mxu0 %v1117
        %1181 = vmatpush1.msra.mxu0 %v1116
        %1182 = vmatprep.subr.mxu0 %v1119
        %1183 = vmatpush1.msra.mxu0 %v1118
        %1184 = vmatprep.subr.mxu0 %v1121
        %1185 = vmatpush1.msra.mxu0 %v1120
        %1186 = vmatprep.subr.mxu0 %v1123
        %1187 = vmatpush1.msra.mxu0 %v1122
        %1188 = vmatprep.subr.mxu0 %v1125
        %1189 = vmatpush1.msra.mxu0 %v1124
        %1190 = vmatprep.subr.mxu0 %v1127
        %1191 = vmatpush1.msra.mxu0 %v1126
        %1192 = vmatprep.subr.mxu0 %v1129
        %1193 = vmatpush1.msra.mxu0 %v1128
        %1194 = vmatprep.subr.mxu0 %v1131
        %1195 = vmatpush1.msra.mxu0 %v1130
        %1196 = vmatprep.subr.mxu0 %v1133
        %1197 = vmatpush1.msra.mxu0 %v1132
        %1198 = vmatprep.mubr.f32.mxu0 %v779
        %1199 = vmatmul.mubr.f32.gmra.mrb[0].mxu0 %v776
        %v1200 = vpop.f32.mrb[0].mxu0
        %v1201 = vadd.f32 0.0, %v1200
        %v1202 = vpop.f32.mrb[0].mxu0
        %v1203 = vadd.f32 0.0, %v1202
        %1204 = vmatprep.mubr.f32.mxu0 %v785
        %1205 = vmatmul.mubr.f32.gmra.mrb[0].mxu0 %v784
        %v1206 = vpop.f32.mrb[0].mxu0
        %v1207 = vadd.f32 0.0, %v1206
        %v1208 = vpop.f32.mrb[0].mxu0
        %v1209 = vadd.f32 0.0, %v1208
        %1210 = vdwg.mxu0
        %v1211 = vadd.f32 %v1059, %v1201
        %v1212 = vadd.f32 %v1061, %v1203
        %v1213 = vadd.f32 %v1065, %v1207
        %v1214 = vadd.f32 %v1067, %v1209
        %v1215 = vadd.f32 %v1211, %v1213
        %v1216 = vrot.slane %v1215, 4
        %v1217 = vadd.f32 %v1215, %v1216
        %v1218 = vrot.slane %v1217, 2
        %v1219 = vadd.f32 %v1217, %v1218
        %v1220 = vrot.slane %v1219, 1
        %v1221 = vadd.f32 %v1219, %v1220
        %v1222 = vadd.f32 %v1212, %v1214
        %v1223 = vrot.slane %v1222, 4
        %v1224 = vadd.f32 %v1222, %v1223
        %v1225 = vrot.slane %v1224, 2
        %v1226 = vadd.f32 %v1224, %v1225
        %v1227 = vrot.slane %v1226, 1
        %v1228 = vadd.f32 %v1226, %v1227
        %v1229 = vld [vmem:[%s3] sm:$0xff]
        %v1230 = vld [vmem:[%s3 + $0x8] sm:$0xff]
        %v1231 = vld [vmem:[%s3 + $0x10] sm:$0xff]
        %v1232 = vld [vmem:[%s3 + $0x18] sm:$0xff]
        %v1233 = vld [vmem:[%s3 + $0x20] sm:$0xff]
        %v1234 = vld [vmem:[%s3 + $0x28] sm:$0xff]
        %v1235 = vld [vmem:[%s3 + $0x30] sm:$0xff]
        %v1236 = vld [vmem:[%s3 + $0x38] sm:$0xff]
        %v1237 = vld [vmem:[%s3 + $0x40] sm:$0xff]
        %v1238 = vld [vmem:[%s3 + $0x48] sm:$0xff]
        %v1239 = vld [vmem:[%s3 + $0x50] sm:$0xff]
        %v1240 = vld [vmem:[%s3 + $0x58] sm:$0xff]
        %v1241 = vld [vmem:[%s3 + $0x60] sm:$0xff]
        %v1242 = vld [vmem:[%s3 + $0x68] sm:$0xff]
        %v1243 = vld [vmem:[%s3 + $0x70] sm:$0xff]
        %v1244 = vld [vmem:[%s3 + $0x78] sm:$0xff]
        %v1245 = vld [vmem:[%s3 + $0x80] sm:$0xff]
        %v1246 = vld [vmem:[%s3 + $0x88] sm:$0xff]
        %v1247 = vld [vmem:[%s3 + $0x90] sm:$0xff]
        %v1248 = vld [vmem:[%s3 + $0x98] sm:$0xff]
        %v1249 = vld [vmem:[%s3 + $0xa0] sm:$0xff]
        %v1250 = vld [vmem:[%s3 + $0xa8] sm:$0xff]
        %v1251 = vld [vmem:[%s3 + $0xb0] sm:$0xff]
        %v1252 = vld [vmem:[%s3 + $0xb8] sm:$0xff]
        %v1253 = vld [vmem:[%s3 + $0xc0] sm:$0xff]
        %v1254 = vld [vmem:[%s3 + $0xc8] sm:$0xff]
        %v1255 = vld [vmem:[%s3 + $0xd0] sm:$0xff]
        %v1256 = vld [vmem:[%s3 + $0xd8] sm:$0xff]
        %v1257 = vld [vmem:[%s3 + $0xe0] sm:$0xff]
        %v1258 = vld [vmem:[%s3 + $0xe8] sm:$0xff]
        %v1259 = vld [vmem:[%s3 + $0xf0] sm:$0xff]
        %v1260 = vld [vmem:[%s3 + $0xf8] sm:$0xff]
        %1261 = vmatprep.subr.mxu0 0.0
        %1262 = vmatpush1.msra.mxu0 %v1229
        %1263 = vmatprep.subr.mxu0 0.0
        %1264 = vmatpush1.msra.mxu0 %v1230
        %1265 = vmatprep.subr.mxu0 0.0
        %1266 = vmatpush1.msra.mxu0 %v1231
        %1267 = vmatprep.subr.mxu0 0.0
        %1268 = vmatpush1.msra.mxu0 %v1232
        %1269 = vmatprep.subr.mxu0 0.0
        %1270 = vmatpush1.msra.mxu0 %v1233
        %1271 = vmatprep.subr.mxu0 0.0
        %1272 = vmatpush1.msra.mxu0 %v1234
        %1273 = vmatprep.subr.mxu0 0.0
        %1274 = vmatpush1.msra.mxu0 %v1235
        %1275 = vmatprep.subr.mxu0 0.0
        %1276 = vmatpush1.msra.mxu0 %v1236
        %1277 = vmatprep.subr.mxu0 0.0
        %1278 = vmatpush1.msra.mxu0 %v1237
        %1279 = vmatprep.subr.mxu0 0.0
        %1280 = vmatpush1.msra.mxu0 %v1238
        %1281 = vmatprep.subr.mxu0 0.0
        %1282 = vmatpush1.msra.mxu0 %v1239
        %1283 = vmatprep.subr.mxu0 0.0
        %1284 = vmatpush1.msra.mxu0 %v1240
        %1285 = vmatprep.subr.mxu0 0.0
        %1286 = vmatpush1.msra.mxu0 %v1241
        %1287 = vmatprep.subr.mxu0 0.0
        %1288 = vmatpush1.msra.mxu0 %v1242
        %1289 = vmatprep.subr.mxu0 0.0
        %1290 = vmatpush1.msra.mxu0 %v1243
        %1291 = vmatprep.subr.mxu0 0.0
        %1292 = vmatpush1.msra.mxu0 %v1244
        %1293 = vmatprep.subr.mxu0 0.0
        %1294 = vmatpush1.msra.mxu0 %v1245
        %1295 = vmatprep.subr.mxu0 0.0
        %1296 = vmatpush1.msra.mxu0 %v1246
        %1297 = vmatprep.subr.mxu0 0.0
        %1298 = vmatpush1.msra.mxu0 %v1247
        %1299 = vmatprep.subr.mxu0 0.0
        %1300 = vmatpush1.msra.mxu0 %v1248
        %1301 = vmatprep.subr.mxu0 0.0
        %1302 = vmatpush1.msra.mxu0 %v1249
        %1303 = vmatprep.subr.mxu0 0.0
        %1304 = vmatpush1.msra.mxu0 %v1250
        %1305 = vmatprep.subr.mxu0 0.0
        %1306 = vmatpush1.msra.mxu0 %v1251
        %1307 = vmatprep.subr.mxu0 0.0
        %1308 = vmatpush1.msra.mxu0 %v1252
        %1309 = vmatprep.subr.mxu0 0.0
        %1310 = vmatpush1.msra.mxu0 %v1253
        %1311 = vmatprep.subr.mxu0 0.0
        %1312 = vmatpush1.msra.mxu0 %v1254
        %1313 = vmatprep.subr.mxu0 0.0
        %1314 = vmatpush1.msra.mxu0 %v1255
        %1315 = vmatprep.subr.mxu0 0.0
        %1316 = vmatpush1.msra.mxu0 %v1256
        %1317 = vmatprep.subr.mxu0 0.0
        %1318 = vmatpush1.msra.mxu0 %v1257
        %1319 = vmatprep.subr.mxu0 0.0
        %1320 = vmatpush1.msra.mxu0 %v1258
        %1321 = vmatprep.subr.mxu0 0.0
        %1322 = vmatpush1.msra.mxu0 %v1259
        %1323 = vmatprep.subr.mxu0 0.0
        %1324 = vmatpush1.msra.mxu0 %v1260
        %1325 = vmatprep.mubr.f32.mxu0 %v1228
        %1326 = vmatmul.mubr.f32.gmra.mrb[0].mxu0 %v1221
        %v1327 = vpop.f32.mrb[0].mxu0
        %v1328 = vadd.f32 0.0, %v1327
        %v1329 = vpop.f32.mrb[0].mxu0
        %1330 = vdwg.mxu0
        %v1331 = vmax.f32 %v1328, 0.0
        %v1332 = vld [vmem:[%s4] sm:$0xff]
        %v1334 = vcombine.high %v1332, %v1332
        %vm1335 = vcmask 31744
        %v1337 = vsel %vm1335, %v1331, 0
        %vm1339 = vcmask 1043456
        %v1340 = vsel %vm1339, %v1332, 0
        %v1342 = vsel %vm1339, %v1334, 0
        %1344 = vmatprep.subr.mxu0 %v1342
        %1345 = vmatpush1.msra.mxu0 %v1340
        %1346 = vmatprep.subr.mxu0 0.0
        %1347 = vmatpush1.msra.mxu0 0.0
        %1348 = vmatprep.subr.mxu0 0.0
        %1349 = vmatpush1.msra.mxu0 0.0
        %1350 = vmatprep.subr.mxu0 0.0
        %1351 = vmatpush1.msra.mxu0 0.0
        %1352 = vmatprep.subr.mxu0 0.0
        %1353 = vmatpush1.msra.mxu0 0.0
        %1354 = vmatprep.subr.mxu0 0.0
        %1355 = vmatpush1.msra.mxu0 0.0
        %1356 = vmatprep.subr.mxu0 0.0
        %1357 = vmatpush1.msra.mxu0 0.0
        %1358 = vmatprep.subr.mxu0 0.0
        %1359 = vmatpush1.msra.mxu0 0.0
        %1360 = vmatprep.subr.mxu0 0.0
        %1361 = vmatpush1.msra.mxu0 0.0
        %1362 = vmatprep.subr.mxu0 0.0
        %1363 = vmatpush1.msra.mxu0 0.0
        %1364 = vmatprep.subr.mxu0 0.0
        %1365 = vmatpush1.msra.mxu0 0.0
        %1366 = vmatprep.subr.mxu0 0.0
        %1367 = vmatpush1.msra.mxu0 0.0
        %1368 = vmatprep.subr.mxu0 0.0
        %1369 = vmatpush1.msra.mxu0 0.0
        %1370 = vmatprep.subr.mxu0 0.0
        %1371 = vmatpush1.msra.mxu0 0.0
        %1372 = vmatprep.subr.mxu0 0.0
        %1373 = vmatpush1.msra.mxu0 0.0
        %1374 = vmatprep.subr.mxu0 0.0
        %1375 = vmatpush1.msra.mxu0 0.0
        %1376 = vmatprep.subr.mxu0 0.0
        %1377 = vmatpush1.msra.mxu0 0.0
        %1378 = vmatprep.subr.mxu0 0.0
        %1379 = vmatpush1.msra.mxu0 0.0
        %1380 = vmatprep.subr.mxu0 0.0
        %1381 = vmatpush1.msra.mxu0 0.0
        %1382 = vmatprep.subr.mxu0 0.0
        %1383 = vmatpush1.msra.mxu0 0.0
        %1384 = vmatprep.subr.mxu0 0.0
        %1385 = vmatpush1.msra.mxu0 0.0
        %1386 = vmatprep.subr.mxu0 0.0
        %1387 = vmatpush1.msra.mxu0 0.0
        %1388 = vmatprep.subr.mxu0 0.0
        %1389 = vmatpush1.msra.mxu0 0.0
        %1390 = vmatprep.subr.mxu0 0.0
        %1391 = vmatpush1.msra.mxu0 0.0
        %1392 = vmatprep.subr.mxu0 0.0
        %1393 = vmatpush1.msra.mxu0 0.0
        %1394 = vmatprep.subr.mxu0 0.0
        %1395 = vmatpush1.msra.mxu0 0.0
        %1396 = vmatprep.subr.mxu0 0.0
        %1397 = vmatpush1.msra.mxu0 0.0
        %1398 = vmatprep.subr.mxu0 0.0
        %1399 = vmatpush1.msra.mxu0 0.0
        %1400 = vmatprep.subr.mxu0 0.0
        %1401 = vmatpush1.msra.mxu0 0.0
        %1402 = vmatprep.subr.mxu0 0.0
        %1403 = vmatpush1.msra.mxu0 0.0
        %1404 = vmatprep.subr.mxu0 0.0
        %1405 = vmatpush1.msra.mxu0 0.0
        %1406 = vmatprep.subr.mxu0 0.0
        %1407 = vmatpush1.msra.mxu0 0.0
        %1408 = vmatprep.mubr.f32.mxu0 0.0
        %1409 = vmatmul.mubr.f32.gmra.mrb[0].mxu0 %v1337
        %v1410 = vpop.f32.mrb[0].mxu0
        %v1411 = vadd.f32 0.0, %v1410
        %v1412 = vpop.f32.mrb[0].mxu0
        %v1413 = vadd.f32 0.0, %v1412
        %1414 = vdwg.mxu0
        %v1415 = vxor.u32 %v1411, 2147483648
        %v1416 = vxor.u32 %v1413, 2147483648
        %v1417 = vmul.f32 %v1415, 1.442695
        %v1418 = vpow.pop %v1417
        %v1419 = vmul.f32 %v1416, 1.442695
        %v1420 = vpow.pop %v1419
        %v1421 = vadd.f32 %v1418, 1.0
        %v1422 = vadd.f32 %v1420, 1.0
        %v1423 = vrcp.pop %v1421
        %v1424 = vmul.f32 1.0, %v1423
        %v1425 = vrcp.pop %v1422
        %v1426 = vmul.f32 1.0, %v1425
        %v1427 = vlaneseq
        %v1428 = vshrl.u32 %v1427, 7
        %v1429 = vsub.s32 0, %v1428
        %v1430 = vrot.slane %v1424, %v1429
        %v1431 = vlaneseq
        %v1432 = vshrl.u32 %v1431, 7
        %v1433 = vsub.s32 0, %v1432
        %v1434 = vrot.slane %v1426, %v1433
        %v1435 = vmul.f32 %v1211, %v1430
        %v1436 = vmul.f32 %v1212, %v1434
        %v1437 = vmul.f32 %v1213, %v1430
        %v1438 = vmul.f32 %v1214, %v1434
        %v1439 = vadd.f32 %v1435, %v281
        %v1440 = vadd.f32 %v1436, %v282
        %v1441 = vadd.f32 %v1437, %v283
        %v1442 = vadd.f32 %v1438, %v284
        %1443 = vst [vmem:[%s275] sm:$0xff] %v1439
        %1444 = vst [vmem:[%s275 + $0x8] sm:$0xff] %v1440
        %1445 = vst [vmem:[%s275 + $0x10] sm:$0xff] %v1441
        %1446 = vst [vmem:[%s275 + $0x18] sm:$0xff] %v1442
        %s1447 = sand.u32 %s162, 1
        %s1448 = scalar_lea.sflag [#allocation5], %s1447
        %s1449 = sand.u32 %s162, 1
        %s1450 = smul.addr %s1449, 32
        %s1451 = scalar_lea.vmem [#allocation8], %s1450
        // Predicated region
        $region53: #{tpu_custom_call.1} parent=43 // pred_check
          %p1452 = pneg %p172
        $region54: #{tpu_custom_call.1} parent=43 // pred_check_branch
          %1454 = sbr.rel (%p1452) target = $region56
        $region55: #{tpu_custom_call.1} parent=43 // pred_region
          %s1456 = ssub.s32 512, 512
          %1457 = vsyncadd %s1448, %s1456
          %s1458 = smul.addr %s23, 4
          %s1459 = smul.addr %s1458, 128
          %s1460 = scalar_lea.hbm %s6, %s1459
          %s1461 = sshll.u32 %s1451, 4
          %s1462 = int_to_ptr.vmem [resolvable:$true] %s1461
          %1467 = dma.vmem_to_hbm [thread:$0]  %s1462, 512, %s1460, %s1448, 256, 256, 16
        $region56: #{tpu_custom_call.1} parent=43 // pred_fallthru
          _
      $region44: #{tpu_custom_call.1} parent=5 // pred_fallthru
        _
      %p1468 = scmp.le.s32.totalorder 2, %s18
      // Predicated region
      $region57: #{tpu_custom_call.1} parent=5 // pred_check
        %p1469 = pneg %p1468
      $region58: #{tpu_custom_call.1} parent=5 // pred_check_branch
        %1471 = sbr.rel (%p1469) target = $region60
      $region59: #{tpu_custom_call.1} parent=5 // pred_region
        %s1472 = ssub.s32 %s18, 2
        // Predicated region
        $region61: #{tpu_custom_call.1} parent=59 // pred_check
          %p1473 = pneg %p178
        $region62: #{tpu_custom_call.1} parent=59 // pred_check_branch
          %1475 = sbr.rel (%p1473) target = $region64
        $region63: #{tpu_custom_call.1} parent=59 // pred_region
          %s1476 = sand.u32 %s163, 1
          %s1477 = scalar_lea.sflag [#allocation5], %s1476
          %s1478 = sand.u32 %s163, 1
          %s1479 = smul.addr %s1478, 32
          %s1480 = scalar_lea.vmem [#allocation8], %s1479
          %1481 = dma.done %s1477, 512
        $region64: #{tpu_custom_call.1} parent=59 // pred_fallthru
          _
      $region60: #{tpu_custom_call.1} parent=5 // pred_fallthru
        _
    $region6: #{tpu_custom_call.1} parent=1 // loop_footer
      %s22 = sadd.s32 1, %s18
    $region7: #{tpu_custom_call.1} parent=1 // loop_footer_branch
      %17 = sbr.rel target = $region3
    $region8: #{tpu_custom_call.1} parent=1 // loop_exit
      _
    %1482 = vsyncpa [#allocation4], 1
    %s1483 = scalar_lea.sflag [#allocation4], 1
    %1484 = vsyncpa %s1483, 1
    %1485 = vsyncpa [#allocation7], 1
    %1486 = vsyncpa [#allocation5], 1
    %s1487 = scalar_lea.sflag [#allocation5], 1
    %1488 = vsyncpa %s1487, 1

</llo_original>
